<compile_context>
chip_gen: v6e
topology: v6e:2x2x1
jax: 0.10.0
libtpu: 0.0.40
codegen_flags: <defaults>
</compile_context>

<pallas_src>
import functools
import math

import jax
import jax.numpy as jnp
from jax import lax
from jax.experimental import pallas as pl
from jax.experimental.pallas import tpu as pltpu


def _attnpool_kernel(x_ref, possp_ref, pos0_ref, avg_ref, mask_ref,
                     wq_ref, bq_ref, wkv_ref, bkv_ref, wc_ref, bc_ref,
                     o_ref, *, scale: float):
    # x_ref    : (b_tile*S, C)      flattened spatial tokens, compute dtype
    # possp_ref: (b_tile*S, C)      pos_emb[1:] tiled b_tile times, compute dtype
    # pos0_ref : (1, C)             pos_emb[0], f32
    # avg_ref  : (b_tile, b_tile*S) block-diagonal 1/S averaging matrix
    # mask_ref : (num_heads, C)     static 0/1 head-membership mask, f32
    # wq_ref   : (C, C)             q_proj.weight.T, compute dtype
    # wkv_ref  : (C, 2C)            [k_proj|v_proj].weight.T fused, compute dtype
    # wc_ref   : (C, out_dim)       c_proj.weight.T, compute dtype
    # b*_ref   : (1, ...)           biases, f32
    # o_ref    : (b_tile, out_dim)
    f32 = jnp.float32
    cdt = x_ref.dtype
    BS, C = x_ref.shape
    B = avg_ref.shape[0]
    S = BS // B
    dn = (((1,), (0,)), ((), ()))          # canonical (M, K) @ (K, N)

    x = x_ref[...]                                          # (B*S, C) cdt
    tok = x + possp_ref[...]                                # pos add, compute dtype

    # Mean token via block-diagonal averaging matmul (f32 accumulation).
    mean_x = lax.dot_general(avg_ref[...], x, dn, preferred_element_type=f32)
    mean_tok = mean_x + pos0_ref[...]                       # (B, C) f32
    mean_c = mean_tok.astype(cdt)

    # Projections; bias add in f32.  Only the mean token's q is needed
    # (the module returns x[0]).
    kv_sp = (lax.dot_general(tok, wkv_ref[...], dn, preferred_element_type=f32)
             + bkv_ref[...])                                # (B*S, 2C) f32
    q = (lax.dot_general(mean_c, wq_ref[...], dn, preferred_element_type=f32)
         + bq_ref[...]) * scale                             # (B, C) f32
    kv_mean = (lax.dot_general(mean_c, wkv_ref[...], dn, preferred_element_type=f32)
               + bkv_ref[...])                              # (B, 2C) f32
    k_mean = kv_mean[:, :C]
    v_mean = kv_mean[:, C:]

    # Compute-dtype operands for the attention einsums (f32 accumulation kept).
    k_sp = kv_sp[:, :C].astype(cdt).reshape(B, S, C)
    v_sp = kv_sp[:, C:].astype(cdt).reshape(B, S, C)

    mask = mask_ref[...]                                    # (nh, C) f32, 0/1
    qh = q[:, None, :] * mask[None, :, :]                   # (B, nh, C) f32

    scores_sp = jnp.einsum('bhc,bsc->bhs', qh.astype(cdt), k_sp,
                           preferred_element_type=f32)      # (B, nh, S)
    scores_mean = jnp.sum(qh * k_mean[:, None, :], axis=-1)  # (B, nh)

    # Softmax over S+1 tokens (mean token kept separate), f32 statistics.
    m = jnp.maximum(jnp.max(scores_sp, axis=-1), scores_mean)
    e_sp = jnp.exp(scores_sp - m[:, :, None])
    e_mean = jnp.exp(scores_mean - m)
    denom = jnp.sum(e_sp, axis=-1) + e_mean
    if cdt == jnp.float32:
        inv = 1.0 / denom                       # full-precision path
    else:
        inv = pl.reciprocal(denom, approx=True)  # EUP slot — effectively free
    p_sp = (e_sp * inv[:, :, None]).astype(cdt)
    p_mean = e_mean * inv

    pv = jnp.einsum('bhs,bsc->bhc', p_sp, v_sp, preferred_element_type=f32)
    pv = pv + p_mean[:, :, None] * v_mean[:, None, :]
    attn = jnp.sum(pv * mask[None, :, :], axis=1)           # (B, C) f32

    out = (lax.dot_general(attn.astype(cdt), wc_ref[...], dn,
                           preferred_element_type=f32) + bc_ref[...])
    o_ref[...] = out.astype(o_ref.dtype)


def attention_pool_2d(x_nchw, pos_emb, wq, bq, wk, bk, wv, bv, wc, bc,
                      num_heads: int, *, b_tile=None,
                      compute_dtype=jnp.bfloat16):
    """Pallas implementation of AttentionPool2d.forward. Returns (N, out_dim)."""
    N, C, H, W = x_nchw.shape
    S = H * W
    out_dim = wc.shape[0]
    assert C % num_heads == 0, "embed_dim must be divisible by num_heads"
    assert pos_emb.shape == (S + 1, C)
    head_dim = C // num_heads
    out_dtype = x_nchw.dtype
    cdt = jnp.dtype(compute_dtype)
    csz = cdt.itemsize
    osz = jnp.dtype(out_dtype).itemsize

    # Output-block sublane alignment (8 rows f32 / 16 bf16 / 32 int8-fp8) and
    # a projection-matmul M = b_tile*S of >= 256 rows for the 256-row MXU.
    sub = max(8, 32 // osz)
    if b_tile is None:
        b_tile = min(32, -(-256 // S))
    b_tile = int(pl.cdiv(max(int(b_tile), 1), sub) * sub)

    # Layout plumbing in the wrapper (free): NCHW -> (N, S, C) -> flat (N*S, C).
    x_seq = jnp.transpose(x_nchw.reshape(N, C, S), (0, 2, 1)).astype(cdt)
    n_pad = int(pl.cdiv(N, b_tile)) * b_tile
    if n_pad != N:
        x_seq = jnp.pad(x_seq, ((0, n_pad - N), (0, 0), (0, 0)))
    x_flat = x_seq.reshape(n_pad * S, C)

    pos0 = pos_emb[0:1].astype(jnp.float32)                     # (1, C)
    pos_sp_t = jnp.tile(pos_emb[1:].astype(cdt), (b_tile, 1))   # (b_tile*S, C)

    # Block-diagonal per-batch averaging matrix (mean token inside the kernel).
    rows = jnp.arange(b_tile, dtype=jnp.int32)[:, None]
    cols = jnp.arange(b_tile * S, dtype=jnp.int32)[None, :]
    avg = jnp.where(cols // S == rows, 1.0 / S, 0.0).astype(cdt)

    # Static 0/1 head-membership mask, shape (num_heads, C).
    mask_t = (jnp.arange(C)[None, :] // head_dim
              == jnp.arange(num_heads)[:, None]).astype(jnp.float32)

    # Weights pre-transposed to (in, out); spatial K/V fused into one slab.
    wq_t = wq.T.astype(cdt)
    wkv_t = jnp.concatenate([wk.T, wv.T], axis=1).astype(cdt)    # (C, 2C)
    wc_t = wc.T.astype(cdt)                                      # (C, out_dim)
    bq2 = bq.reshape(1, C).astype(jnp.float32)
    bkv2 = jnp.concatenate([bk, bv]).reshape(1, 2 * C).astype(jnp.float32)
    bc2 = bc.reshape(1, out_dim).astype(jnp.float32)

    kernel = functools.partial(_attnpool_kernel, scale=head_dim ** -0.5)

    # Per-shape VMEM budget, clamped to the physical VMEM when queryable.
    weight_bytes = (3 * C * C + C * out_dim) * csz + (3 * C + out_dim) * 4
    const_bytes = (b_tile * S * C + b_tile * b_tile * S) * csz \
        + (num_heads + 1) * C * 4
    x_block = b_tile * S * C * csz
    out_block = b_tile * out_dim * osz
    interm = b_tile * S * 2 * C * (4 + csz) \
        + b_tile * num_heads * (2 * S + 4 * C) * 4
    need = (2 * weight_bytes + 2 * const_bytes + 3 * x_block + 3 * out_block
            + interm + (4 << 20))
    try:
        phys = int(pltpu.get_tpu_info().vmem_capacity_bytes)
    except Exception:
        phys = 64 * 1024 * 1024                 # conservative: v7x per-core VMEM
    vmem_limit = int(min(max(need, 32 * 1024 * 1024), int(phys * 0.85)))

    # Advisory cost estimate so XLA schedules surrounding ops sensibly.
    proj_flops = 2 * C * (2 * C * S + 3 * C + out_dim) + 2 * S * C
    attn_flops = 4 * num_heads * S * C
    cost = pl.CostEstimate(
        flops=int(n_pad * (proj_flops + attn_flops)),
        transcendentals=int(n_pad * num_heads * (S + 1)),
        bytes_accessed=int(weight_bytes + const_bytes
                           + n_pad * S * C * csz + n_pad * out_dim * osz),
    )

    grid = (n_pad // b_tile,)

    def _call(single_buffer: bool):
        def const2d(shape):
            if single_buffer:
                return pl.BlockSpec(shape, lambda b: (0, 0),
                                    pipeline_mode=pl.Buffered(1))
            return pl.BlockSpec(shape, lambda b: (0, 0))

        in_specs = [
            pl.BlockSpec((b_tile * S, C), lambda b: (b, 0)),    # x (batch tile)
            const2d((b_tile * S, C)),                           # pos_emb[1:] tiled
            const2d((1, C)),                                    # pos_emb[0]
            const2d((b_tile, b_tile * S)),                      # averaging matrix
            const2d((num_heads, C)),                            # head mask
            const2d((C, C)), const2d((1, C)),                   # wq^T, bq
            const2d((C, 2 * C)), const2d((1, 2 * C)),           # [wk|wv]^T, bias
            const2d((C, out_dim)), const2d((1, out_dim)),       # wc^T, bc
        ]
        return pl.pallas_call(
            kernel,
            grid=grid,
            in_specs=in_specs,
            out_specs=pl.BlockSpec((b_tile, out_dim), lambda b: (b, 0)),
            out_shape=jax.ShapeDtypeStruct((n_pad, out_dim), out_dtype),
            compiler_params=pltpu.CompilerParams(
                dimension_semantics=("parallel",),
                vmem_limit_bytes=vmem_limit),
            cost_estimate=cost,
        )(x_flat, pos_sp_t, pos0, avg, mask_t,
          wq_t, bq2, wkv_t, bkv2, wc_t, bc2)

    try:
        out = _call(single_buffer=True)
    except Exception:
        # TODO(synk): drop this fallback once pl.Buffered(1) single-buffering of
        # constant-index blocks is guaranteed by the deployed jax version.
        out = _call(single_buffer=False)
    return out[:N]


def attention_pool_2d_ref(x_nchw, pos_emb, wq, bq, wk, bk, wv, bv, wc, bc,
                          num_heads: int):
    """Pure-JAX reference mirroring F.multi_head_attention_forward semantics."""
    N, C, H, W = x_nchw.shape
    x = jnp.transpose(x_nchw.reshape(N, C, H * W), (2, 0, 1))        # (S, N, C)
    x = jnp.concatenate([x.mean(axis=0, keepdims=True), x], axis=0)  # (S+1, N, C)
    x = x + pos_emb[:, None, :]
    S1 = x.shape[0]
    hd = C // num_heads
    q = x @ wq.T + bq
    k = x @ wk.T + bk
    v = x @ wv.T + bv
    q = q.reshape(S1, N, num_heads, hd).transpose(1, 2, 0, 3)        # (N, h, S1, hd)
    k = k.reshape(S1, N, num_heads, hd).transpose(1, 2, 0, 3)
    v = v.reshape(S1, N, num_heads, hd).transpose(1, 2, 0, 3)
    scores = (q * (hd ** -0.5)) @ jnp.swapaxes(k, -1, -2)
    p = jax.nn.softmax(scores, axis=-1)
    o = (p @ v).transpose(2, 0, 1, 3).reshape(S1, N, C)
    o = o @ wc.T + bc
    return o[0]


if __name__ == "__main__":
    # Small, module-consistent shapes. batch=12 with b_tile=8 exercises a
    # grid of 2 plus the batch-padding path.
    batch = 12
    spacial_dim = 4          # H = W = 4  ->  S = 16
    embed_dim = 32
    num_heads = 4
    output_dim = 16

    key = jax.random.PRNGKey(0)
    ks = jax.random.split(key, 10)
    x = jax.random.normal(ks[0], (batch, embed_dim, spacial_dim, spacial_dim),
                          dtype=jnp.float32)

    pos_emb = jax.random.normal(ks[1], (spacial_dim ** 2 + 1, embed_dim),
                                dtype=jnp.float32) / math.sqrt(embed_dim)
    scale_w = 1.0 / math.sqrt(embed_dim)
    wq = jax.random.normal(ks[2], (embed_dim, embed_dim), jnp.float32) * scale_w
    bq = jax.random.normal(ks[3], (embed_dim,), jnp.float32) * 0.1
    wk = jax.random.normal(ks[4], (embed_dim, embed_dim), jnp.float32) * scale_w
    bk = jax.random.normal(ks[5], (embed_dim,), jnp.float32) * 0.1
    wv = jax.random.normal(ks[6], (embed_dim, embed_dim), jnp.float32) * scale_w
    bv = jax.random.normal(ks[7], (embed_dim,), jnp.float32) * 0.1
    wc = jax.random.normal(ks[8], (output_dim, embed_dim), jnp.float32) * scale_w
    bc = jax.random.normal(ks[9], (output_dim,), jnp.float32) * 0.1

    ref = attention_pool_2d_ref(x, pos_emb, wq, bq, wk, bk, wv, bv, wc, bc,
                                num_heads)

    # 1) Full-precision path (compute_dtype=f32): tight structural check.
    out_f32 = attention_pool_2d(x, pos_emb, wq, bq, wk, bk, wv, bv, wc, bc,
                                num_heads, b_tile=8,
                                compute_dtype=jnp.float32)
    out_f32 = jax.block_until_ready(out_f32)
    assert out_f32.shape == (batch, output_dim)
    assert jnp.allclose(out_f32, ref, atol=1e-4, rtol=1e-4), (out_f32, ref)

    # 2) Default bf16 MXU path (the performance configuration): looser check.
    out_bf16 = attention_pool_2d(x, pos_emb, wq, bq, wk, bk, wv, bv, wc, bc,
                                 num_heads)
    out_bf16 = jax.block_until_ready(out_bf16)
    assert out_bf16.shape == (batch, output_dim)
    assert jnp.allclose(out_bf16, ref, atol=5e-2, rtol=5e-2), (out_bf16, ref)

    print("KERNEL_OK")
</pallas_src>

<mosaic_0001>
module attributes {stable_mosaic.version = 11 : i64} {
  func.func @_attnpool_kernel(%arg0: i32, %arg1: memref<128x32xf32, #tpu.memory_space<vmem>>, %arg2: memref<128x32xf32, #tpu.memory_space<vmem>>, %arg3: memref<1x32xf32, #tpu.memory_space<vmem>>, %arg4: memref<8x128xf32, #tpu.memory_space<vmem>>, %arg5: memref<4x32xf32, #tpu.memory_space<vmem>>, %arg6: memref<32x32xf32, #tpu.memory_space<vmem>>, %arg7: memref<1x32xf32, #tpu.memory_space<vmem>>, %arg8: memref<32x64xf32, #tpu.memory_space<vmem>>, %arg9: memref<1x64xf32, #tpu.memory_space<vmem>>, %arg10: memref<32x16xf32, #tpu.memory_space<vmem>>, %arg11: memref<1x16xf32, #tpu.memory_space<vmem>>, %arg12: memref<8x16xf32, #tpu.memory_space<vmem>>) attributes {dimension_semantics = [#tpu.dimension_semantics<parallel>], iteration_bounds = array<i64: 2>, scalar_prefetch = 0 : i64, scratch_operands = 0 : i64, tpu.core_type = #tpu.core_type<tc>, window_params = [{transform_indices = @transform_0, window_bounds = array<i64: 128, 32>}, {pipeline_mode = #tpu.pipeline_mode<synchronous>, transform_indices = @transform_1, window_bounds = array<i64: 128, 32>}, {pipeline_mode = #tpu.pipeline_mode<synchronous>, transform_indices = @transform_2, window_bounds = array<i64: 1, 32>}, {pipeline_mode = #tpu.pipeline_mode<synchronous>, transform_indices = @transform_3, window_bounds = array<i64: 8, 128>}, {pipeline_mode = #tpu.pipeline_mode<synchronous>, transform_indices = @transform_4, window_bounds = array<i64: 4, 32>}, {pipeline_mode = #tpu.pipeline_mode<synchronous>, transform_indices = @transform_5, window_bounds = array<i64: 32, 32>}, {pipeline_mode = #tpu.pipeline_mode<synchronous>, transform_indices = @transform_6, window_bounds = array<i64: 1, 32>}, {pipeline_mode = #tpu.pipeline_mode<synchronous>, transform_indices = @transform_7, window_bounds = array<i64: 32, 64>}, {pipeline_mode = #tpu.pipeline_mode<synchronous>, transform_indices = @transform_8, window_bounds = array<i64: 1, 64>}, {pipeline_mode = #tpu.pipeline_mode<synchronous>, transform_indices = @transform_9, window_bounds = array<i64: 32, 16>}, {pipeline_mode = #tpu.pipeline_mode<synchronous>, transform_indices = @transform_10, window_bounds = array<i64: 1, 16>}, {transform_indices = @transform_11, window_bounds = array<i64: 8, 16>}]} {
    %c0 = arith.constant 0 : index
    %c0_0 = arith.constant 0 : index
    %0 = vector.load %arg1[%c0, %c0_0] : memref<128x32xf32, #tpu.memory_space<vmem>>, vector<128x32xf32>
    %c0_1 = arith.constant 0 : index
    %c0_2 = arith.constant 0 : index
    %1 = vector.load %arg2[%c0_1, %c0_2] : memref<128x32xf32, #tpu.memory_space<vmem>>, vector<128x32xf32>
    %2 = arith.addf %0, %1 : vector<128x32xf32>
    %c0_3 = arith.constant 0 : index
    %c0_4 = arith.constant 0 : index
    %3 = vector.load %arg4[%c0_3, %c0_4] : memref<8x128xf32, #tpu.memory_space<vmem>>, vector<8x128xf32>
    %cst = arith.constant dense<0.000000e+00> : vector<8x32xf32>
    %4 = tpu.matmul %3, %0, %cst {dimension_numbers = #tpu.dot_dimension_numbers<[1], [0], [0], [1], [0, 0, 1, 1], [], []>} : vector<8x128xf32>, vector<128x32xf32>, vector<8x32xf32> -> vector<8x32xf32>
    %c0_5 = arith.constant 0 : index
    %c0_6 = arith.constant 0 : index
    %5 = vector.load %arg3[%c0_5, %c0_6] : memref<1x32xf32, #tpu.memory_space<vmem>>, vector<1x32xf32>
    %6 = vector.broadcast %5 : vector<1x32xf32> to vector<8x32xf32>
    %7 = arith.addf %4, %6 : vector<8x32xf32>
    %c0_7 = arith.constant 0 : index
    %c0_8 = arith.constant 0 : index
    %8 = vector.load %arg8[%c0_7, %c0_8] : memref<32x64xf32, #tpu.memory_space<vmem>>, vector<32x64xf32>
    %cst_9 = arith.constant dense<0.000000e+00> : vector<128x64xf32>
    %9 = tpu.matmul %2, %8, %cst_9 {dimension_numbers = #tpu.dot_dimension_numbers<[1], [0], [0], [1], [0, 0, 1, 1], [], []>} : vector<128x32xf32>, vector<32x64xf32>, vector<128x64xf32> -> vector<128x64xf32>
    %c0_10 = arith.constant 0 : index
    %c0_11 = arith.constant 0 : index
    %10 = vector.load %arg9[%c0_10, %c0_11] : memref<1x64xf32, #tpu.memory_space<vmem>>, vector<1x64xf32>
    %11 = vector.broadcast %10 : vector<1x64xf32> to vector<128x64xf32>
    %12 = arith.addf %9, %11 : vector<128x64xf32>
    %c0_12 = arith.constant 0 : index
    %c0_13 = arith.constant 0 : index
    %13 = vector.load %arg6[%c0_12, %c0_13] : memref<32x32xf32, #tpu.memory_space<vmem>>, vector<32x32xf32>
    %cst_14 = arith.constant dense<0.000000e+00> : vector<8x32xf32>
    %14 = tpu.matmul %7, %13, %cst_14 {dimension_numbers = #tpu.dot_dimension_numbers<[1], [0], [0], [1], [0, 0, 1, 1], [], []>} : vector<8x32xf32>, vector<32x32xf32>, vector<8x32xf32> -> vector<8x32xf32>
    %c0_15 = arith.constant 0 : index
    %c0_16 = arith.constant 0 : index
    %15 = vector.load %arg7[%c0_15, %c0_16] : memref<1x32xf32, #tpu.memory_space<vmem>>, vector<1x32xf32>
    %16 = vector.broadcast %15 : vector<1x32xf32> to vector<8x32xf32>
    %17 = arith.addf %14, %16 : vector<8x32xf32>
    %cst_17 = arith.constant 0.353553385 : f32
    %18 = vector.broadcast %cst_17 : f32 to vector<8x32xf32>
    %19 = arith.mulf %17, %18 : vector<8x32xf32>
    %c0_18 = arith.constant 0 : index
    %c0_19 = arith.constant 0 : index
    %20 = vector.load %arg8[%c0_18, %c0_19] : memref<32x64xf32, #tpu.memory_space<vmem>>, vector<32x64xf32>
    %cst_20 = arith.constant dense<0.000000e+00> : vector<8x64xf32>
    %21 = tpu.matmul %7, %20, %cst_20 {dimension_numbers = #tpu.dot_dimension_numbers<[1], [0], [0], [1], [0, 0, 1, 1], [], []>} : vector<8x32xf32>, vector<32x64xf32>, vector<8x64xf32> -> vector<8x64xf32>
    %c0_21 = arith.constant 0 : index
    %c0_22 = arith.constant 0 : index
    %22 = vector.load %arg9[%c0_21, %c0_22] : memref<1x64xf32, #tpu.memory_space<vmem>>, vector<1x64xf32>
    %23 = vector.broadcast %22 : vector<1x64xf32> to vector<8x64xf32>
    %24 = arith.addf %21, %23 : vector<8x64xf32>
    %25 = vector.extract_strided_slice %24 {offsets = [0, 0], sizes = [8, 32], strides = [1, 1]} : vector<8x64xf32> to vector<8x32xf32>
    %26 = vector.extract_strided_slice %24 {offsets = [0, 32], sizes = [8, 32], strides = [1, 1]} : vector<8x64xf32> to vector<8x32xf32>
    %27 = vector.extract_strided_slice %12 {offsets = [0, 0], sizes = [128, 32], strides = [1, 1]} : vector<128x64xf32> to vector<128x32xf32>
    %28 = vector.shape_cast %27 : vector<128x32xf32> to vector<8x16x32xf32>
    %29 = vector.extract_strided_slice %12 {offsets = [0, 32], sizes = [128, 32], strides = [1, 1]} : vector<128x64xf32> to vector<128x32xf32>
    %30 = vector.shape_cast %29 : vector<128x32xf32> to vector<8x16x32xf32>
    %c0_23 = arith.constant 0 : index
    %c0_24 = arith.constant 0 : index
    %31 = vector.load %arg5[%c0_23, %c0_24] : memref<4x32xf32, #tpu.memory_space<vmem>>, vector<4x32xf32>
    %32 = vector.shape_cast %19 : vector<8x32xf32> to vector<8x1x32xf32>
    %33 = vector.shape_cast %31 : vector<4x32xf32> to vector<1x4x32xf32>
    %34 = vector.broadcast %32 : vector<8x1x32xf32> to vector<8x4x32xf32>
    %35 = vector.broadcast %33 : vector<1x4x32xf32> to vector<8x4x32xf32>
    %36 = arith.mulf %34, %35 : vector<8x4x32xf32>
    "tpu.trace_start"() <{level = 10 : i32, message = "bhc,bsc->bhs"}> : () -> ()
    %cst_25 = arith.constant dense<0.000000e+00> : vector<8x4x16xf32>
    %37 = tpu.matmul %36, %28, %cst_25 {dimension_numbers = #tpu.dot_dimension_numbers<[2], [2], [1], [1], [0, 0, 0, 1, 1, 1], [0], [0]>} : vector<8x4x32xf32>, vector<8x16x32xf32>, vector<8x4x16xf32> -> vector<8x4x16xf32>
    "tpu.trace_stop"() : () -> ()
    %38 = vector.shape_cast %25 : vector<8x32xf32> to vector<8x1x32xf32>
    %39 = vector.broadcast %38 : vector<8x1x32xf32> to vector<8x4x32xf32>
    %40 = arith.mulf %36, %39 : vector<8x4x32xf32>
    %cst_26 = arith.constant dense<0.000000e+00> : vector<8x4xf32>
    %41 = vector.multi_reduction <add>, %40, %cst_26 [2] : vector<8x4x32xf32> to vector<8x4xf32>
    %cst_27 = arith.constant dense<0xFF800000> : vector<8x4xf32>
    %42 = vector.multi_reduction <maximumf>, %37, %cst_27 [2] : vector<8x4x16xf32> to vector<8x4xf32>
    %43 = arith.maximumf %42, %41 : vector<8x4xf32>
    %44 = vector.shape_cast %43 : vector<8x4xf32> to vector<8x4x1xf32>
    %45 = vector.broadcast %44 : vector<8x4x1xf32> to vector<8x4x16xf32>
    %46 = arith.subf %37, %45 : vector<8x4x16xf32>
    %47 = math.exp %46 : vector<8x4x16xf32>
    %48 = arith.subf %41, %43 : vector<8x4xf32>
    %49 = math.exp %48 : vector<8x4xf32>
    %cst_28 = arith.constant dense<0.000000e+00> : vector<8x4xf32>
    %50 = vector.multi_reduction <add>, %47, %cst_28 [2] : vector<8x4x16xf32> to vector<8x4xf32>
    %51 = arith.addf %50, %49 : vector<8x4xf32>
    %cst_29 = arith.constant 1.000000e+00 : f32
    %52 = vector.broadcast %cst_29 : f32 to vector<8x4xf32>
    %53 = arith.divf %52, %51 : vector<8x4xf32>
    %54 = vector.shape_cast %53 : vector<8x4xf32> to vector<8x4x1xf32>
    %55 = vector.broadcast %54 : vector<8x4x1xf32> to vector<8x4x16xf32>
    %56 = arith.mulf %47, %55 : vector<8x4x16xf32>
    %57 = arith.mulf %49, %53 : vector<8x4xf32>
    "tpu.trace_start"() <{level = 10 : i32, message = "bhs,bsc->bhc"}> : () -> ()
    %cst_30 = arith.constant dense<0.000000e+00> : vector<8x4x32xf32>
    %58 = tpu.matmul %56, %30, %cst_30 {dimension_numbers = #tpu.dot_dimension_numbers<[2], [1], [1], [2], [0, 0, 0, 1, 1, 2], [0], [0]>} : vector<8x4x16xf32>, vector<8x16x32xf32>, vector<8x4x32xf32> -> vector<8x4x32xf32>
    "tpu.trace_stop"() : () -> ()
    %59 = vector.shape_cast %57 : vector<8x4xf32> to vector<8x4x1xf32>
    %60 = vector.shape_cast %26 : vector<8x32xf32> to vector<8x1x32xf32>
    %61 = vector.broadcast %59 : vector<8x4x1xf32> to vector<8x4x32xf32>
    %62 = vector.broadcast %60 : vector<8x1x32xf32> to vector<8x4x32xf32>
    %63 = arith.mulf %61, %62 : vector<8x4x32xf32>
    %64 = arith.addf %58, %63 : vector<8x4x32xf32>
    %65 = vector.shape_cast %31 : vector<4x32xf32> to vector<1x4x32xf32>
    %66 = vector.broadcast %65 : vector<1x4x32xf32> to vector<8x4x32xf32>
    %67 = arith.mulf %64, %66 : vector<8x4x32xf32>
    %cst_31 = arith.constant dense<0.000000e+00> : vector<8x32xf32>
    %68 = vector.multi_reduction <add>, %67, %cst_31 [1] : vector<8x4x32xf32> to vector<8x32xf32>
    %c0_32 = arith.constant 0 : index
    %c0_33 = arith.constant 0 : index
    %69 = vector.load %arg10[%c0_32, %c0_33] : memref<32x16xf32, #tpu.memory_space<vmem>>, vector<32x16xf32>
    %cst_34 = arith.constant dense<0.000000e+00> : vector<8x16xf32>
    %70 = tpu.matmul %68, %69, %cst_34 {dimension_numbers = #tpu.dot_dimension_numbers<[1], [0], [0], [1], [0, 0, 1, 1], [], []>} : vector<8x32xf32>, vector<32x16xf32>, vector<8x16xf32> -> vector<8x16xf32>
    %c0_35 = arith.constant 0 : index
    %c0_36 = arith.constant 0 : index
    %71 = vector.load %arg11[%c0_35, %c0_36] : memref<1x16xf32, #tpu.memory_space<vmem>>, vector<1x16xf32>
    %72 = vector.broadcast %71 : vector<1x16xf32> to vector<8x16xf32>
    %73 = arith.addf %70, %72 : vector<8x16xf32>
    %c0_37 = arith.constant 0 : index
    %c0_38 = arith.constant 0 : index
    %74 = vector.load %arg12[%c0_37, %c0_38] : memref<8x16xf32, #tpu.memory_space<vmem>>, vector<8x16xf32>
    tpu.vector_store %arg12[%c0_37, %c0_38], %73 {strides = array<i32>} : memref<8x16xf32, #tpu.memory_space<vmem>>, vector<8x16xf32>,
    return
  }
  func.func @transform_0(%arg0: i32) -> (i32, i32) {
    %c0_i32 = arith.constant 0 : i32
    %c0_i32_0 = arith.constant 0 : i32
    return %arg0, %c0_i32 : i32, i32
  }
  func.func @transform_1(%arg0: i32) -> (i32, i32) {
    %c0_i32 = arith.constant 0 : i32
    %c0_i32_0 = arith.constant 0 : i32
    %c0_i32_1 = arith.constant 0 : i32
    return %c0_i32, %c0_i32_0 : i32, i32
  }
  func.func @transform_2(%arg0: i32) -> (i32, i32) {
    %c0_i32 = arith.constant 0 : i32
    %c0_i32_0 = arith.constant 0 : i32
    %c0_i32_1 = arith.constant 0 : i32
    return %c0_i32, %c0_i32_0 : i32, i32
  }
  func.func @transform_3(%arg0: i32) -> (i32, i32) {
    %c0_i32 = arith.constant 0 : i32
    %c0_i32_0 = arith.constant 0 : i32
    %c0_i32_1 = arith.constant 0 : i32
    return %c0_i32, %c0_i32_0 : i32, i32
  }
  func.func @transform_4(%arg0: i32) -> (i32, i32) {
    %c0_i32 = arith.constant 0 : i32
    %c0_i32_0 = arith.constant 0 : i32
    %c0_i32_1 = arith.constant 0 : i32
    return %c0_i32, %c0_i32_0 : i32, i32
  }
  func.func @transform_5(%arg0: i32) -> (i32, i32) {
    %c0_i32 = arith.constant 0 : i32
    %c0_i32_0 = arith.constant 0 : i32
    %c0_i32_1 = arith.constant 0 : i32
    return %c0_i32, %c0_i32_0 : i32, i32
  }
  func.func @transform_6(%arg0: i32) -> (i32, i32) {
    %c0_i32 = arith.constant 0 : i32
    %c0_i32_0 = arith.constant 0 : i32
    %c0_i32_1 = arith.constant 0 : i32
    return %c0_i32, %c0_i32_0 : i32, i32
  }
  func.func @transform_7(%arg0: i32) -> (i32, i32) {
    %c0_i32 = arith.constant 0 : i32
    %c0_i32_0 = arith.constant 0 : i32
    %c0_i32_1 = arith.constant 0 : i32
    return %c0_i32, %c0_i32_0 : i32, i32
  }
  func.func @transform_8(%arg0: i32) -> (i32, i32) {
    %c0_i32 = arith.constant 0 : i32
    %c0_i32_0 = arith.constant 0 : i32
    %c0_i32_1 = arith.constant 0 : i32
    return %c0_i32, %c0_i32_0 : i32, i32
  }
  func.func @transform_9(%arg0: i32) -> (i32, i32) {
    %c0_i32 = arith.constant 0 : i32
    %c0_i32_0 = arith.constant 0 : i32
    %c0_i32_1 = arith.constant 0 : i32
    return %c0_i32, %c0_i32_0 : i32, i32
  }
  func.func @transform_10(%arg0: i32) -> (i32, i32) {
    %c0_i32 = arith.constant 0 : i32
    %c0_i32_0 = arith.constant 0 : i32
    %c0_i32_1 = arith.constant 0 : i32
    return %c0_i32, %c0_i32_0 : i32, i32
  }
  func.func @transform_11(%arg0: i32) -> (i32, i32) {
    %c0_i32 = arith.constant 0 : i32
    %c0_i32_0 = arith.constant 0 : i32
    return %arg0, %c0_i32 : i32, i32
  }
}

module attributes {stable_mosaic.version = 11 : i64} {
  func.func @_attnpool_kernel(%arg0: i32, %arg1: memref<128x32xf32, #tpu.memory_space<vmem>>, %arg2: memref<128x32xf32, #tpu.memory_space<vmem>>, %arg3: memref<1x32xf32, #tpu.memory_space<vmem>>, %arg4: memref<8x128xf32, #tpu.memory_space<vmem>>, %arg5: memref<4x32xf32, #tpu.memory_space<vmem>>, %arg6: memref<32x32xf32, #tpu.memory_space<vmem>>, %arg7: memref<1x32xf32, #tpu.memory_space<vmem>>, %arg8: memref<32x64xf32, #tpu.memory_space<vmem>>, %arg9: memref<1x64xf32, #tpu.memory_space<vmem>>, %arg10: memref<32x16xf32, #tpu.memory_space<vmem>>, %arg11: memref<1x16xf32, #tpu.memory_space<vmem>>, %arg12: memref<8x16xf32, #tpu.memory_space<vmem>>) attributes {dimension_semantics = [#tpu.dimension_semantics<parallel>], iteration_bounds = array<i64: 2>, scalar_prefetch = 0 : i64, scratch_operands = 0 : i64, tpu.core_type = #tpu.core_type<tc>, window_params = [{transform_indices = @transform_0, window_bounds = array<i64: 128, 32>}, {pipeline_mode = #tpu.pipeline_mode<synchronous>, transform_indices = @transform_1, window_bounds = array<i64: 128, 32>}, {pipeline_mode = #tpu.pipeline_mode<synchronous>, transform_indices = @transform_2, window_bounds = array<i64: 1, 32>}, {pipeline_mode = #tpu.pipeline_mode<synchronous>, transform_indices = @transform_3, window_bounds = array<i64: 8, 128>}, {pipeline_mode = #tpu.pipeline_mode<synchronous>, transform_indices = @transform_4, window_bounds = array<i64: 4, 32>}, {pipeline_mode = #tpu.pipeline_mode<synchronous>, transform_indices = @transform_5, window_bounds = array<i64: 32, 32>}, {pipeline_mode = #tpu.pipeline_mode<synchronous>, transform_indices = @transform_6, window_bounds = array<i64: 1, 32>}, {pipeline_mode = #tpu.pipeline_mode<synchronous>, transform_indices = @transform_7, window_bounds = array<i64: 32, 64>}, {pipeline_mode = #tpu.pipeline_mode<synchronous>, transform_indices = @transform_8, window_bounds = array<i64: 1, 64>}, {pipeline_mode = #tpu.pipeline_mode<synchronous>, transform_indices = @transform_9, window_bounds = array<i64: 32, 16>}, {pipeline_mode = #tpu.pipeline_mode<synchronous>, transform_indices = @transform_10, window_bounds = array<i64: 1, 16>}, {transform_indices = @transform_11, window_bounds = array<i64: 8, 16>}]} {
    %c0 = arith.constant 0 : index
    %c0_0 = arith.constant 0 : index
    %0 = vector.load %arg1[%c0, %c0_0] : memref<128x32xf32, #tpu.memory_space<vmem>>, vector<128x32xf32>
    %c0_1 = arith.constant 0 : index
    %c0_2 = arith.constant 0 : index
    %1 = vector.load %arg2[%c0_1, %c0_2] : memref<128x32xf32, #tpu.memory_space<vmem>>, vector<128x32xf32>
    %2 = arith.addf %0, %1 : vector<128x32xf32>
    %c0_3 = arith.constant 0 : index
    %c0_4 = arith.constant 0 : index
    %3 = vector.load %arg4[%c0_3, %c0_4] : memref<8x128xf32, #tpu.memory_space<vmem>>, vector<8x128xf32>
    %cst = arith.constant dense<0.000000e+00> : vector<8x32xf32>
    %4 = tpu.matmul %3, %0, %cst {dimension_numbers = #tpu.dot_dimension_numbers<[1], [0], [0], [1], [0, 0, 1, 1], [], []>} : vector<8x128xf32>, vector<128x32xf32>, vector<8x32xf32> -> vector<8x32xf32>
    %c0_5 = arith.constant 0 : index
    %c0_6 = arith.constant 0 : index
    %5 = vector.load %arg3[%c0_5, %c0_6] : memref<1x32xf32, #tpu.memory_space<vmem>>, vector<1x32xf32>
    %6 = vector.broadcast %5 : vector<1x32xf32> to vector<8x32xf32>
    %7 = arith.addf %4, %6 : vector<8x32xf32>
    %c0_7 = arith.constant 0 : index
    %c0_8 = arith.constant 0 : index
    %8 = vector.load %arg8[%c0_7, %c0_8] : memref<32x64xf32, #tpu.memory_space<vmem>>, vector<32x64xf32>
    %cst_9 = arith.constant dense<0.000000e+00> : vector<128x64xf32>
    %9 = tpu.matmul %2, %8, %cst_9 {dimension_numbers = #tpu.dot_dimension_numbers<[1], [0], [0], [1], [0, 0, 1, 1], [], []>} : vector<128x32xf32>, vector<32x64xf32>, vector<128x64xf32> -> vector<128x64xf32>
    %c0_10 = arith.constant 0 : index
    %c0_11 = arith.constant 0 : index
    %10 = vector.load %arg9[%c0_10, %c0_11] : memref<1x64xf32, #tpu.memory_space<vmem>>, vector<1x64xf32>
    %11 = vector.broadcast %10 : vector<1x64xf32> to vector<128x64xf32>
    %12 = arith.addf %9, %11 : vector<128x64xf32>
    %c0_12 = arith.constant 0 : index
    %c0_13 = arith.constant 0 : index
    %13 = vector.load %arg6[%c0_12, %c0_13] : memref<32x32xf32, #tpu.memory_space<vmem>>, vector<32x32xf32>
    %cst_14 = arith.constant dense<0.000000e+00> : vector<8x32xf32>
    %14 = tpu.matmul %7, %13, %cst_14 {dimension_numbers = #tpu.dot_dimension_numbers<[1], [0], [0], [1], [0, 0, 1, 1], [], []>} : vector<8x32xf32>, vector<32x32xf32>, vector<8x32xf32> -> vector<8x32xf32>
    %c0_15 = arith.constant 0 : index
    %c0_16 = arith.constant 0 : index
    %15 = vector.load %arg7[%c0_15, %c0_16] : memref<1x32xf32, #tpu.memory_space<vmem>>, vector<1x32xf32>
    %16 = vector.broadcast %15 : vector<1x32xf32> to vector<8x32xf32>
    %17 = arith.addf %14, %16 : vector<8x32xf32>
    %cst_17 = arith.constant 0.353553385 : f32
    %18 = vector.broadcast %cst_17 : f32 to vector<8x32xf32>
    %19 = arith.mulf %17, %18 : vector<8x32xf32>
    %c0_18 = arith.constant 0 : index
    %c0_19 = arith.constant 0 : index
    %20 = vector.load %arg8[%c0_18, %c0_19] : memref<32x64xf32, #tpu.memory_space<vmem>>, vector<32x64xf32>
    %cst_20 = arith.constant dense<0.000000e+00> : vector<8x64xf32>
    %21 = tpu.matmul %7, %20, %cst_20 {dimension_numbers = #tpu.dot_dimension_numbers<[1], [0], [0], [1], [0, 0, 1, 1], [], []>} : vector<8x32xf32>, vector<32x64xf32>, vector<8x64xf32> -> vector<8x64xf32>
    %c0_21 = arith.constant 0 : index
    %c0_22 = arith.constant 0 : index
    %22 = vector.load %arg9[%c0_21, %c0_22] : memref<1x64xf32, #tpu.memory_space<vmem>>, vector<1x64xf32>
    %23 = vector.broadcast %22 : vector<1x64xf32> to vector<8x64xf32>
    %24 = arith.addf %21, %23 : vector<8x64xf32>
    %25 = vector.extract_strided_slice %24 {offsets = [0, 0], sizes = [8, 32], strides = [1, 1]} : vector<8x64xf32> to vector<8x32xf32>
    %26 = vector.extract_strided_slice %24 {offsets = [0, 32], sizes = [8, 32], strides = [1, 1]} : vector<8x64xf32> to vector<8x32xf32>
    %27 = vector.extract_strided_slice %12 {offsets = [0, 0], sizes = [128, 32], strides = [1, 1]} : vector<128x64xf32> to vector<128x32xf32>
    %28 = vector.shape_cast %27 : vector<128x32xf32> to vector<8x16x32xf32>
    %29 = vector.extract_strided_slice %12 {offsets = [0, 32], sizes = [128, 32], strides = [1, 1]} : vector<128x64xf32> to vector<128x32xf32>
    %30 = vector.shape_cast %29 : vector<128x32xf32> to vector<8x16x32xf32>
    %c0_23 = arith.constant 0 : index
    %c0_24 = arith.constant 0 : index
    %31 = vector.load %arg5[%c0_23, %c0_24] : memref<4x32xf32, #tpu.memory_space<vmem>>, vector<4x32xf32>
    %32 = vector.shape_cast %19 : vector<8x32xf32> to vector<8x1x32xf32>
    %33 = vector.shape_cast %31 : vector<4x32xf32> to vector<1x4x32xf32>
    %34 = vector.broadcast %32 : vector<8x1x32xf32> to vector<8x4x32xf32>
    %35 = vector.broadcast %33 : vector<1x4x32xf32> to vector<8x4x32xf32>
    %36 = arith.mulf %34, %35 : vector<8x4x32xf32>
    "tpu.trace_start"() <{level = 10 : i32, message = "bhc,bsc->bhs"}> : () -> ()
    %cst_25 = arith.constant dense<0.000000e+00> : vector<8x4x16xf32>
    %37 = tpu.matmul %36, %28, %cst_25 {dimension_numbers = #tpu.dot_dimension_numbers<[2], [2], [1], [1], [0, 0, 0, 1, 1, 1], [0], [0]>} : vector<8x4x32xf32>, vector<8x16x32xf32>, vector<8x4x16xf32> -> vector<8x4x16xf32>
    "tpu.trace_stop"() : () -> ()
    %38 = vector.shape_cast %25 : vector<8x32xf32> to vector<8x1x32xf32>
    %39 = vector.broadcast %38 : vector<8x1x32xf32> to vector<8x4x32xf32>
    %40 = arith.mulf %36, %39 : vector<8x4x32xf32>
    %cst_26 = arith.constant dense<0.000000e+00> : vector<8x4xf32>
    %41 = vector.multi_reduction <add>, %40, %cst_26 [2] : vector<8x4x32xf32> to vector<8x4xf32>
    %cst_27 = arith.constant dense<0xFF800000> : vector<8x4xf32>
    %42 = vector.multi_reduction <maximumf>, %37, %cst_27 [2] : vector<8x4x16xf32> to vector<8x4xf32>
    %43 = arith.maximumf %42, %41 : vector<8x4xf32>
    %44 = vector.shape_cast %43 : vector<8x4xf32> to vector<8x4x1xf32>
    %45 = vector.broadcast %44 : vector<8x4x1xf32> to vector<8x4x16xf32>
    %46 = arith.subf %37, %45 : vector<8x4x16xf32>
    %47 = math.exp %46 : vector<8x4x16xf32>
    %48 = arith.subf %41, %43 : vector<8x4xf32>
    %49 = math.exp %48 : vector<8x4xf32>
    %cst_28 = arith.constant dense<0.000000e+00> : vector<8x4xf32>
    %50 = vector.multi_reduction <add>, %47, %cst_28 [2] : vector<8x4x16xf32> to vector<8x4xf32>
    %51 = arith.addf %50, %49 : vector<8x4xf32>
    %cst_29 = arith.constant 1.000000e+00 : f32
    %52 = vector.broadcast %cst_29 : f32 to vector<8x4xf32>
    %53 = arith.divf %52, %51 : vector<8x4xf32>
    %54 = vector.shape_cast %53 : vector<8x4xf32> to vector<8x4x1xf32>
    %55 = vector.broadcast %54 : vector<8x4x1xf32> to vector<8x4x16xf32>
    %56 = arith.mulf %47, %55 : vector<8x4x16xf32>
    %57 = arith.mulf %49, %53 : vector<8x4xf32>
    "tpu.trace_start"() <{level = 10 : i32, message = "bhs,bsc->bhc"}> : () -> ()
    %cst_30 = arith.constant dense<0.000000e+00> : vector<8x4x32xf32>
    %58 = tpu.matmul %56, %30, %cst_30 {dimension_numbers = #tpu.dot_dimension_numbers<[2], [1], [1], [2], [0, 0, 0, 1, 1, 2], [0], [0]>} : vector<8x4x16xf32>, vector<8x16x32xf32>, vector<8x4x32xf32> -> vector<8x4x32xf32>
    "tpu.trace_stop"() : () -> ()
    %59 = vector.shape_cast %57 : vector<8x4xf32> to vector<8x4x1xf32>
    %60 = vector.shape_cast %26 : vector<8x32xf32> to vector<8x1x32xf32>
    %61 = vector.broadcast %59 : vector<8x4x1xf32> to vector<8x4x32xf32>
    %62 = vector.broadcast %60 : vector<8x1x32xf32> to vector<8x4x32xf32>
    %63 = arith.mulf %61, %62 : vector<8x4x32xf32>
    %64 = arith.addf %58, %63 : vector<8x4x32xf32>
    %65 = vector.shape_cast %31 : vector<4x32xf32> to vector<1x4x32xf32>
    %66 = vector.broadcast %65 : vector<1x4x32xf32> to vector<8x4x32xf32>
    %67 = arith.mulf %64, %66 : vector<8x4x32xf32>
    %cst_31 = arith.constant dense<0.000000e+00> : vector<8x32xf32>
    %68 = vector.multi_reduction <add>, %67, %cst_31 [1] : vector<8x4x32xf32> to vector<8x32xf32>
    %c0_32 = arith.constant 0 : index
    %c0_33 = arith.constant 0 : index
    %69 = vector.load %arg10[%c0_32, %c0_33] : memref<32x16xf32, #tpu.memory_space<vmem>>, vector<32x16xf32>
    %cst_34 = arith.constant dense<0.000000e+00> : vector<8x16xf32>
    %70 = tpu.matmul %68, %69, %cst_34 {dimension_numbers = #tpu.dot_dimension_numbers<[1], [0], [0], [1], [0, 0, 1, 1], [], []>} : vector<8x32xf32>, vector<32x16xf32>, vector<8x16xf32> -> vector<8x16xf32>
    %c0_35 = arith.constant 0 : index
    %c0_36 = arith.constant 0 : index
    %71 = vector.load %arg11[%c0_35, %c0_36] : memref<1x16xf32, #tpu.memory_space<vmem>>, vector<1x16xf32>
    %72 = vector.broadcast %71 : vector<1x16xf32> to vector<8x16xf32>
    %73 = arith.addf %70, %72 : vector<8x16xf32>
    %c0_37 = arith.constant 0 : index
    %c0_38 = arith.constant 0 : index
    %74 = vector.load %arg12[%c0_37, %c0_38] : memref<8x16xf32, #tpu.memory_space<vmem>>, vector<8x16xf32>
    tpu.vector_store %arg12[%c0_37, %c0_38], %73 {strides = array<i32>} : memref<8x16xf32, #tpu.memory_space<vmem>>, vector<8x16xf32>,
    return
  }
  func.func @transform_0(%arg0: i32) -> (i32, i32) {
    %c0_i32 = arith.constant 0 : i32
    %c0_i32_0 = arith.constant 0 : i32
    return %arg0, %c0_i32 : i32, i32
  }
  func.func @transform_1(%arg0: i32) -> (i32, i32) {
    %c0_i32 = arith.constant 0 : i32
    %c0_i32_0 = arith.constant 0 : i32
    %c0_i32_1 = arith.constant 0 : i32
    return %c0_i32, %c0_i32_0 : i32, i32
  }
  func.func @transform_2(%arg0: i32) -> (i32, i32) {
    %c0_i32 = arith.constant 0 : i32
    %c0_i32_0 = arith.constant 0 : i32
    %c0_i32_1 = arith.constant 0 : i32
    return %c0_i32, %c0_i32_0 : i32, i32
  }
  func.func @transform_3(%arg0: i32) -> (i32, i32) {
    %c0_i32 = arith.constant 0 : i32
    %c0_i32_0 = arith.constant 0 : i32
    %c0_i32_1 = arith.constant 0 : i32
    return %c0_i32, %c0_i32_0 : i32, i32
  }
  func.func @transform_4(%arg0: i32) -> (i32, i32) {
    %c0_i32 = arith.constant 0 : i32
    %c0_i32_0 = arith.constant 0 : i32
    %c0_i32_1 = arith.constant 0 : i32
    return %c0_i32, %c0_i32_0 : i32, i32
  }
  func.func @transform_5(%arg0: i32) -> (i32, i32) {
    %c0_i32 = arith.constant 0 : i32
    %c0_i32_0 = arith.constant 0 : i32
    %c0_i32_1 = arith.constant 0 : i32
    return %c0_i32, %c0_i32_0 : i32, i32
  }
  func.func @transform_6(%arg0: i32) -> (i32, i32) {
    %c0_i32 = arith.constant 0 : i32
    %c0_i32_0 = arith.constant 0 : i32
    %c0_i32_1 = arith.constant 0 : i32
    return %c0_i32, %c0_i32_0 : i32, i32
  }
  func.func @transform_7(%arg0: i32) -> (i32, i32) {
    %c0_i32 = arith.constant 0 : i32
    %c0_i32_0 = arith.constant 0 : i32
    %c0_i32_1 = arith.constant 0 : i32
    return %c0_i32, %c0_i32_0 : i32, i32
  }
  func.func @transform_8(%arg0: i32) -> (i32, i32) {
    %c0_i32 = arith.constant 0 : i32
    %c0_i32_0 = arith.constant 0 : i32
    %c0_i32_1 = arith.constant 0 : i32
    return %c0_i32, %c0_i32_0 : i32, i32
  }
  func.func @transform_9(%arg0: i32) -> (i32, i32) {
    %c0_i32 = arith.constant 0 : i32
    %c0_i32_0 = arith.constant 0 : i32
    %c0_i32_1 = arith.constant 0 : i32
    return %c0_i32, %c0_i32_0 : i32, i32
  }
  func.func @transform_10(%arg0: i32) -> (i32, i32) {
    %c0_i32 = arith.constant 0 : i32
    %c0_i32_0 = arith.constant 0 : i32
    %c0_i32_1 = arith.constant 0 : i32
    return %c0_i32, %c0_i32_0 : i32, i32
  }
  func.func @transform_11(%arg0: i32) -> (i32, i32) {
    %c0_i32 = arith.constant 0 : i32
    %c0_i32_0 = arith.constant 0 : i32
    return %arg0, %c0_i32 : i32, i32
  }
}

</mosaic_0001>

<llo_original>
// kernel: tpu_custom_call.1
$region0: #{tpu_custom_call.1}
  #allocation0 [shape = 'u32[]', space=smem, size = 0x4, offset = 0x4, fixed_abs, tag = 'smem constant byte address 0x4 - core index']
  #allocation1 [shape = 'u32[144,128]{1,0:T(1,128)}', space=vmem, size = 0x12000, scoped, tag = 'internal scratch']
  %s0 = inlined_call_operand.vmem [shape: f32[256,32], index: 0, kind: input, shape index: {}]
  %s1 = inlined_call_operand.vmem [shape: f32[128,32], index: 1, kind: input, shape index: {}]
  %s2 = inlined_call_operand.vmem [shape: f32[1,32], index: 2, kind: input, shape index: {}]
  %s3 = inlined_call_operand.vmem [shape: f32[8,128], index: 3, kind: input, shape index: {}]
  %s4 = inlined_call_operand.vmem [shape: f32[4,32], index: 4, kind: input, shape index: {}]
  %s5 = inlined_call_operand.vmem [shape: f32[32,32], index: 5, kind: input, shape index: {}]
  %s6 = inlined_call_operand.vmem [shape: f32[1,32], index: 6, kind: input, shape index: {}]
  %s7 = inlined_call_operand.vmem [shape: f32[32,64], index: 7, kind: input, shape index: {}]
  %s8 = inlined_call_operand.vmem [shape: f32[1,64], index: 8, kind: input, shape index: {}]
  %s9 = inlined_call_operand.vmem [shape: f32[32,16], index: 9, kind: input, shape index: {}]
  %s10 = inlined_call_operand.vmem [shape: f32[1,16], index: 10, kind: input, shape index: {}]
  %s11 = inlined_call_operand.hbm [shape: f32[16,16], index: 11, kind: output, shape index: {}]
  %s12 = sld [smem:[#allocation0]]
  $region77: #{tpu_custom_call.1} parent=0
    _
  %s14 = ssub.s32 1, %s12
  %s15 = scalar_select 0, %s14, %s12
  $region1: #{tpu_custom_call.1} parent=0
    #allocation2 [shape = 'u8[8192]{0}', space=vmem, size = 0x2000, scoped, tag = 'output window, operand 0']
    #allocation3 [shape = 's32[2]{0}', space=sflag, size = 0x8, scoped, tag = 'scoped memory for tpu_custom_call.1']
    %16 = vsyncpa [#allocation3], 0
    %s17 = scalar_lea.sflag [#allocation3], 1
    %18 = vsyncpa %s17, 0
    loop: start=0, step=1, limit=4
    $region2: #{tpu_custom_call.1} parent=1 // loop_pre_header
      _
    $region3: #{tpu_custom_call.1} parent=1 // loop_header
      %s20 = sphi 0, %s24
      %p21 = scmp.ge.s32.totalorder %s20, 4
      %s30 = sphi 0, %s32
      %s33 = sphi 0, %s30
      %s34 = sphi 0, %s33
      %s50 = sphi 0, %s34
      %s54 = sphi 0, %s54
      %s56 = sphi 0, %s54
      %s57 = sphi 0, %s56
      %s71 = sphi 0, %s57
      %s75 = sphi 0, %s75
      %s77 = sphi 0, %s75
      %s78 = sphi 0, %s77
      %s92 = sphi 0, %s78
      %s96 = sphi 0, %s96
      %s98 = sphi 0, %s96
      %s99 = sphi 0, %s98
      %s113 = sphi 0, %s99
      %s117 = sphi 0, %s117
      %s119 = sphi 0, %s117
      %s120 = sphi 0, %s119
      %s134 = sphi 0, %s120
      %s138 = sphi 0, %s138
      %s140 = sphi 0, %s138
      %s141 = sphi 0, %s140
      %s155 = sphi 0, %s141
      %s159 = sphi 0, %s159
      %s161 = sphi 0, %s159
      %s162 = sphi 0, %s161
      %s176 = sphi 0, %s162
      %s180 = sphi 0, %s180
      %s182 = sphi 0, %s180
      %s183 = sphi 0, %s182
      %s197 = sphi 0, %s183
      %s201 = sphi 0, %s201
      %s203 = sphi 0, %s201
      %s204 = sphi 0, %s203
      %s218 = sphi 0, %s204
      %s222 = sphi 0, %s222
      %s224 = sphi 0, %s222
      %s225 = sphi 0, %s224
      %s239 = sphi 0, %s225
      %s243 = sphi 0, %s243
      %s245 = sphi 0, %s243
      %s246 = sphi 0, %s245
      %s260 = sphi 0, %s246
      %s266 = sphi 0, %s268
      %s269 = sphi 0, %s266
      %s270 = sphi 0, %s269
      %s286 = sphi 0, %s270
    $region4: #{tpu_custom_call.1} parent=1 // loop_header_branch
      %23 = sbr.rel (%p21) target = $region8
    $region5: #{tpu_custom_call.1} parent=1 // loop_body
      %s25 = ssub.s32 %s20, 1
      %s26 = ssub.s32 %s20, 2
      %s27 = sadd.s32 %s20, 1
      %s28 = ssub.s32 %s20, %s27
      %p29 = scmp.eq.s32.totalorder %s28, 0
      %s31 = sadd.s32 %s30, 1
      %s32 = scalar_select %p29, %s30, %s31
      %p35 = pneg %p29
      %p36 = scmp.eq.s32.totalorder %s20, 1
      %p37 = por %p35, %p36
      %p38 = scmp.ne.s32.totalorder %s30, %s33
      %p39 = scmp.eq.s32.totalorder %s20, 0
      %p40 = por %p38, %p39
      %p41 = scmp.ne.s32.totalorder %s30, %s33
      %p42 = scmp.eq.s32.totalorder %s25, 1
      %p43 = por %p41, %p42
      %p44 = scmp.ne.s32.totalorder %s33, %s34
      %p45 = scmp.eq.s32.totalorder %s25, 0
      %p46 = por %p44, %p45
      %p47 = scmp.ne.s32.totalorder %s33, %s34
      %p48 = scmp.eq.s32.totalorder %s26, 1
      %p49 = por %p47, %p48
      %p51 = scmp.ne.s32.totalorder %s34, %s50
      %p52 = scmp.eq.s32.totalorder %s26, 0
      %p53 = por %p51, %p52
      %s55 = sadd.s32 %s54, 1
      %p58 = scmp.eq.s32.totalorder %s20, 1
      %p59 = scmp.ne.s32.totalorder %s54, %s56
      %p60 = scmp.eq.s32.totalorder %s20, 0
      %p61 = por %p59, %p60
      %p62 = scmp.ne.s32.totalorder %s54, %s56
      %p63 = scmp.eq.s32.totalorder %s25, 1
      %p64 = por %p62, %p63
      %p65 = scmp.ne.s32.totalorder %s56, %s57
      %p66 = scmp.eq.s32.totalorder %s25, 0
      %p67 = por %p65, %p66
      %p68 = scmp.ne.s32.totalorder %s56, %s57
      %p69 = scmp.eq.s32.totalorder %s26, 1
      %p70 = por %p68, %p69
      %p72 = scmp.ne.s32.totalorder %s57, %s71
      %p73 = scmp.eq.s32.totalorder %s26, 0
      %p74 = por %p72, %p73
      %s76 = sadd.s32 %s75, 1
      %p79 = scmp.eq.s32.totalorder %s20, 1
      %p80 = scmp.ne.s32.totalorder %s75, %s77
      %p81 = scmp.eq.s32.totalorder %s20, 0
      %p82 = por %p80, %p81
      %p83 = scmp.ne.s32.totalorder %s75, %s77
      %p84 = scmp.eq.s32.totalorder %s25, 1
      %p85 = por %p83, %p84
      %p86 = scmp.ne.s32.totalorder %s77, %s78
      %p87 = scmp.eq.s32.totalorder %s25, 0
      %p88 = por %p86, %p87
      %p89 = scmp.ne.s32.totalorder %s77, %s78
      %p90 = scmp.eq.s32.totalorder %s26, 1
      %p91 = por %p89, %p90
      %p93 = scmp.ne.s32.totalorder %s78, %s92
      %p94 = scmp.eq.s32.totalorder %s26, 0
      %p95 = por %p93, %p94
      %s97 = sadd.s32 %s96, 1
      %p100 = scmp.eq.s32.totalorder %s20, 1
      %p101 = scmp.ne.s32.totalorder %s96, %s98
      %p102 = scmp.eq.s32.totalorder %s20, 0
      %p103 = por %p101, %p102
      %p104 = scmp.ne.s32.totalorder %s96, %s98
      %p105 = scmp.eq.s32.totalorder %s25, 1
      %p106 = por %p104, %p105
      %p107 = scmp.ne.s32.totalorder %s98, %s99
      %p108 = scmp.eq.s32.totalorder %s25, 0
      %p109 = por %p107, %p108
      %p110 = scmp.ne.s32.totalorder %s98, %s99
      %p111 = scmp.eq.s32.totalorder %s26, 1
      %p112 = por %p110, %p111
      %p114 = scmp.ne.s32.totalorder %s99, %s113
      %p115 = scmp.eq.s32.totalorder %s26, 0
      %p116 = por %p114, %p115
      %s118 = sadd.s32 %s117, 1
      %p121 = scmp.eq.s32.totalorder %s20, 1
      %p122 = scmp.ne.s32.totalorder %s117, %s119
      %p123 = scmp.eq.s32.totalorder %s20, 0
      %p124 = por %p122, %p123
      %p125 = scmp.ne.s32.totalorder %s117, %s119
      %p126 = scmp.eq.s32.totalorder %s25, 1
      %p127 = por %p125, %p126
      %p128 = scmp.ne.s32.totalorder %s119, %s120
      %p129 = scmp.eq.s32.totalorder %s25, 0
      %p130 = por %p128, %p129
      %p131 = scmp.ne.s32.totalorder %s119, %s120
      %p132 = scmp.eq.s32.totalorder %s26, 1
      %p133 = por %p131, %p132
      %p135 = scmp.ne.s32.totalorder %s120, %s134
      %p136 = scmp.eq.s32.totalorder %s26, 0
      %p137 = por %p135, %p136
      %s139 = sadd.s32 %s138, 1
      %p142 = scmp.eq.s32.totalorder %s20, 1
      %p143 = scmp.ne.s32.totalorder %s138, %s140
      %p144 = scmp.eq.s32.totalorder %s20, 0
      %p145 = por %p143, %p144
      %p146 = scmp.ne.s32.totalorder %s138, %s140
      %p147 = scmp.eq.s32.totalorder %s25, 1
      %p148 = por %p146, %p147
      %p149 = scmp.ne.s32.totalorder %s140, %s141
      %p150 = scmp.eq.s32.totalorder %s25, 0
      %p151 = por %p149, %p150
      %p152 = scmp.ne.s32.totalorder %s140, %s141
      %p153 = scmp.eq.s32.totalorder %s26, 1
      %p154 = por %p152, %p153
      %p156 = scmp.ne.s32.totalorder %s141, %s155
      %p157 = scmp.eq.s32.totalorder %s26, 0
      %p158 = por %p156, %p157
      %s160 = sadd.s32 %s159, 1
      %p163 = scmp.eq.s32.totalorder %s20, 1
      %p164 = scmp.ne.s32.totalorder %s159, %s161
      %p165 = scmp.eq.s32.totalorder %s20, 0
      %p166 = por %p164, %p165
      %p167 = scmp.ne.s32.totalorder %s159, %s161
      %p168 = scmp.eq.s32.totalorder %s25, 1
      %p169 = por %p167, %p168
      %p170 = scmp.ne.s32.totalorder %s161, %s162
      %p171 = scmp.eq.s32.totalorder %s25, 0
      %p172 = por %p170, %p171
      %p173 = scmp.ne.s32.totalorder %s161, %s162
      %p174 = scmp.eq.s32.totalorder %s26, 1
      %p175 = por %p173, %p174
      %p177 = scmp.ne.s32.totalorder %s162, %s176
      %p178 = scmp.eq.s32.totalorder %s26, 0
      %p179 = por %p177, %p178
      %s181 = sadd.s32 %s180, 1
      %p184 = scmp.eq.s32.totalorder %s20, 1
      %p185 = scmp.ne.s32.totalorder %s180, %s182
      %p186 = scmp.eq.s32.totalorder %s20, 0
      %p187 = por %p185, %p186
      %p188 = scmp.ne.s32.totalorder %s180, %s182
      %p189 = scmp.eq.s32.totalorder %s25, 1
      %p190 = por %p188, %p189
      %p191 = scmp.ne.s32.totalorder %s182, %s183
      %p192 = scmp.eq.s32.totalorder %s25, 0
      %p193 = por %p191, %p192
      %p194 = scmp.ne.s32.totalorder %s182, %s183
      %p195 = scmp.eq.s32.totalorder %s26, 1
      %p196 = por %p194, %p195
      %p198 = scmp.ne.s32.totalorder %s183, %s197
      %p199 = scmp.eq.s32.totalorder %s26, 0
      %p200 = por %p198, %p199
      %s202 = sadd.s32 %s201, 1
      %p205 = scmp.eq.s32.totalorder %s20, 1
      %p206 = scmp.ne.s32.totalorder %s201, %s203
      %p207 = scmp.eq.s32.totalorder %s20, 0
      %p208 = por %p206, %p207
      %p209 = scmp.ne.s32.totalorder %s201, %s203
      %p210 = scmp.eq.s32.totalorder %s25, 1
      %p211 = por %p209, %p210
      %p212 = scmp.ne.s32.totalorder %s203, %s204
      %p213 = scmp.eq.s32.totalorder %s25, 0
      %p214 = por %p212, %p213
      %p215 = scmp.ne.s32.totalorder %s203, %s204
      %p216 = scmp.eq.s32.totalorder %s26, 1
      %p217 = por %p215, %p216
      %p219 = scmp.ne.s32.totalorder %s204, %s218
      %p220 = scmp.eq.s32.totalorder %s26, 0
      %p221 = por %p219, %p220
      %s223 = sadd.s32 %s222, 1
      %p226 = scmp.eq.s32.totalorder %s20, 1
      %p227 = scmp.ne.s32.totalorder %s222, %s224
      %p228 = scmp.eq.s32.totalorder %s20, 0
      %p229 = por %p227, %p228
      %p230 = scmp.ne.s32.totalorder %s222, %s224
      %p231 = scmp.eq.s32.totalorder %s25, 1
      %p232 = por %p230, %p231
      %p233 = scmp.ne.s32.totalorder %s224, %s225
      %p234 = scmp.eq.s32.totalorder %s25, 0
      %p235 = por %p233, %p234
      %p236 = scmp.ne.s32.totalorder %s224, %s225
      %p237 = scmp.eq.s32.totalorder %s26, 1
      %p238 = por %p236, %p237
      %p240 = scmp.ne.s32.totalorder %s225, %s239
      %p241 = scmp.eq.s32.totalorder %s26, 0
      %p242 = por %p240, %p241
      %s244 = sadd.s32 %s243, 1
      %p247 = scmp.eq.s32.totalorder %s20, 1
      %p248 = scmp.ne.s32.totalorder %s243, %s245
      %p249 = scmp.eq.s32.totalorder %s20, 0
      %p250 = por %p248, %p249
      %p251 = scmp.ne.s32.totalorder %s243, %s245
      %p252 = scmp.eq.s32.totalorder %s25, 1
      %p253 = por %p251, %p252
      %p254 = scmp.ne.s32.totalorder %s245, %s246
      %p255 = scmp.eq.s32.totalorder %s25, 0
      %p256 = por %p254, %p255
      %p257 = scmp.ne.s32.totalorder %s245, %s246
      %p258 = scmp.eq.s32.totalorder %s26, 1
      %p259 = por %p257, %p258
      %p261 = scmp.ne.s32.totalorder %s246, %s260
      %p262 = scmp.eq.s32.totalorder %s26, 0
      %p263 = por %p261, %p262
      %s264 = ssub.s32 %s20, %s27
      %p265 = scmp.eq.s32.totalorder %s264, 0
      %s267 = sadd.s32 %s266, 1
      %s268 = scalar_select %p265, %s266, %s267
      %p271 = pneg %p265
      %p272 = scmp.eq.s32.totalorder %s20, 1
      %p273 = por %p271, %p272
      %p274 = scmp.ne.s32.totalorder %s266, %s269
      %p275 = scmp.eq.s32.totalorder %s20, 0
      %p276 = por %p274, %p275
      %p277 = scmp.ne.s32.totalorder %s266, %s269
      %p278 = scmp.eq.s32.totalorder %s25, 1
      %p279 = por %p277, %p278
      %p280 = scmp.ne.s32.totalorder %s269, %s270
      %p281 = scmp.eq.s32.totalorder %s25, 0
      %p282 = por %p280, %p281
      %p283 = scmp.ne.s32.totalorder %s269, %s270
      %p284 = scmp.eq.s32.totalorder %s26, 1
      %p285 = por %p283, %p284
      %p287 = scmp.ne.s32.totalorder %s270, %s286
      %p288 = scmp.eq.s32.totalorder %s26, 0
      %p289 = por %p287, %p288
      %p290 = scmp.le.s32.totalorder 1, %s20
      %p291 = scmp.lt.s32.totalorder %s20, 3
      %p292 = pnand %p290, %p291
      %p293 = pneg %p292
      // Predicated region
      $region9: #{tpu_custom_call.1} parent=5 // pred_check
        _
      $region10: #{tpu_custom_call.1} parent=5 // pred_check_branch
        %295 = sbr.rel (%p292) target = $region12
      $region11: #{tpu_custom_call.1} parent=5 // pred_region
        %s296 = ssub.s32 %s20, 1
        // Predicated region
        $region13: #{tpu_custom_call.1} parent=11 // pred_check
          %p297 = pneg %p67
        $region14: #{tpu_custom_call.1} parent=11 // pred_check_branch
          %299 = sbr.rel (%p297) target = $region16
        $region15: #{tpu_custom_call.1} parent=11 // pred_region
          _
        $region16: #{tpu_custom_call.1} parent=11 // pred_fallthru
          _
        // Predicated region
        $region17: #{tpu_custom_call.1} parent=11 // pred_check
          %p300 = pneg %p88
        $region18: #{tpu_custom_call.1} parent=11 // pred_check_branch
          %302 = sbr.rel (%p300) target = $region20
        $region19: #{tpu_custom_call.1} parent=11 // pred_region
          _
        $region20: #{tpu_custom_call.1} parent=11 // pred_fallthru
          _
        // Predicated region
        $region21: #{tpu_custom_call.1} parent=11 // pred_check
          %p303 = pneg %p109
        $region22: #{tpu_custom_call.1} parent=11 // pred_check_branch
          %305 = sbr.rel (%p303) target = $region24
        $region23: #{tpu_custom_call.1} parent=11 // pred_region
          _
        $region24: #{tpu_custom_call.1} parent=11 // pred_fallthru
          _
        // Predicated region
        $region25: #{tpu_custom_call.1} parent=11 // pred_check
          %p306 = pneg %p130
        $region26: #{tpu_custom_call.1} parent=11 // pred_check_branch
          %308 = sbr.rel (%p306) target = $region28
        $region27: #{tpu_custom_call.1} parent=11 // pred_region
          _
        $region28: #{tpu_custom_call.1} parent=11 // pred_fallthru
          _
        // Predicated region
        $region29: #{tpu_custom_call.1} parent=11 // pred_check
          %p309 = pneg %p151
        $region30: #{tpu_custom_call.1} parent=11 // pred_check_branch
          %311 = sbr.rel (%p309) target = $region32
        $region31: #{tpu_custom_call.1} parent=11 // pred_region
          _
        $region32: #{tpu_custom_call.1} parent=11 // pred_fallthru
          _
        // Predicated region
        $region33: #{tpu_custom_call.1} parent=11 // pred_check
          %p312 = pneg %p172
        $region34: #{tpu_custom_call.1} parent=11 // pred_check_branch
          %314 = sbr.rel (%p312) target = $region36
        $region35: #{tpu_custom_call.1} parent=11 // pred_region
          _
        $region36: #{tpu_custom_call.1} parent=11 // pred_fallthru
          _
        // Predicated region
        $region37: #{tpu_custom_call.1} parent=11 // pred_check
          %p315 = pneg %p193
        $region38: #{tpu_custom_call.1} parent=11 // pred_check_branch
          %317 = sbr.rel (%p315) target = $region40
        $region39: #{tpu_custom_call.1} parent=11 // pred_region
          _
        $region40: #{tpu_custom_call.1} parent=11 // pred_fallthru
          _
        // Predicated region
        $region41: #{tpu_custom_call.1} parent=11 // pred_check
          %p318 = pneg %p214
        $region42: #{tpu_custom_call.1} parent=11 // pred_check_branch
          %320 = sbr.rel (%p318) target = $region44
        $region43: #{tpu_custom_call.1} parent=11 // pred_region
          _
        $region44: #{tpu_custom_call.1} parent=11 // pred_fallthru
          _
        // Predicated region
        $region45: #{tpu_custom_call.1} parent=11 // pred_check
          %p321 = pneg %p235
        $region46: #{tpu_custom_call.1} parent=11 // pred_check_branch
          %323 = sbr.rel (%p321) target = $region48
        $region47: #{tpu_custom_call.1} parent=11 // pred_region
          _
        $region48: #{tpu_custom_call.1} parent=11 // pred_fallthru
          _
        // Predicated region
        $region49: #{tpu_custom_call.1} parent=11 // pred_check
          %p324 = pneg %p256
        $region50: #{tpu_custom_call.1} parent=11 // pred_check_branch
          %326 = sbr.rel (%p324) target = $region52
        $region51: #{tpu_custom_call.1} parent=11 // pred_region
          _
        $region52: #{tpu_custom_call.1} parent=11 // pred_fallthru
          _
      $region12: #{tpu_custom_call.1} parent=5 // pred_fallthru
        _
      %p327 = scmp.lt.s32.totalorder %s20, 2
      // Predicated region
      $region53: #{tpu_custom_call.1} parent=5 // pred_check
        %p328 = pneg %p327
      $region54: #{tpu_custom_call.1} parent=5 // pred_check_branch
        %330 = sbr.rel (%p328) target = $region56
      $region55: #{tpu_custom_call.1} parent=5 // pred_region
        // Predicated region
        $region57: #{tpu_custom_call.1} parent=55 // pred_check
          %p331 = pneg %p40
        $region58: #{tpu_custom_call.1} parent=55 // pred_check_branch
          %333 = sbr.rel (%p331) target = $region60
        $region59: #{tpu_custom_call.1} parent=55 // pred_region
          %s334 = smul.u32 16, %s20
          %p335 = scmp.lt.s32.totalorder %s334, 31
          %s336 = scalar_select %p335, %s334, 31
          %s337 = smul.addr %s336, 8
          %s338 = scalar_lea.vmem %s0, %s337
          %s339 = smul.u32 16, %s20
        $region60: #{tpu_custom_call.1} parent=55 // pred_fallthru
          _
      $region56: #{tpu_custom_call.1} parent=5 // pred_fallthru
        _
      %p340 = scmp.le.s32.totalorder 1, %s20
      %p341 = scmp.lt.s32.totalorder %s20, 3
      %p342 = pnand %p340, %p341
      %p343 = pneg %p342
      // Predicated region
      $region61: #{tpu_custom_call.1} parent=5 // pred_check
        _
      $region62: #{tpu_custom_call.1} parent=5 // pred_check_branch
        %345 = sbr.rel (%p342) target = $region64
      $region63: #{tpu_custom_call.1} parent=5 // pred_region
        %s346 = ssub.s32 %s20, 1
        %s347 = smul.u32 16, %s25
        %p348 = scmp.lt.s32.totalorder %s347, 31
        %s349 = scalar_select %p348, %s347, 31
        %s350 = smul.addr %s349, 8
        %s351 = scalar_lea.vmem %s0, %s350
        %p352 = pneg %p46
        %p353 = pneg %p43
        %p354 = pneg %p67
        %p355 = pneg %p64
        %p356 = pneg %p88
        %p357 = pneg %p85
        %p358 = pneg %p109
        %p359 = pneg %p106
        %p360 = pneg %p130
        %p361 = pneg %p127
        %p362 = pneg %p151
        %p363 = pneg %p148
        %p364 = pneg %p172
        %p365 = pneg %p169
        %p366 = pneg %p193
        %p367 = pneg %p190
        %p368 = pneg %p214
        %p369 = pneg %p211
        %p370 = pneg %p235
        %p371 = pneg %p232
        %p372 = pneg %p256
        %p373 = pneg %p253
        %p374 = pneg %p282
        %p375 = pneg %p279
        %s376 = sand.u32 %s269, 1
        %s377 = scalar_lea.sflag [#allocation3], %s376
        %s378 = sand.u32 %s269, 1
        %s379 = smul.addr %s378, 8
        %s380 = scalar_lea.vmem [#allocation2], %s379
        %s381 = smul.u32 16, %s25
        %p382 = scmp.lt.s32.totalorder %s381, 31
        %s383 = scalar_select %p382, %s381, 31
        %s384 = smul.addr %s383, 8
        %s385 = scalar_lea.vmem %s0, %s384
        %s386 = smul.u32 16, %s25
        %v387 = vld [vmem:[%s385] sm:$0xff]
        %v388 = vld [vmem:[%s385 + $0x8] sm:$0xff]
        %v389 = vld [vmem:[%s385 + $0x10] sm:$0xff]
        %v390 = vld [vmem:[%s385 + $0x18] sm:$0xff]
        %v391 = vld [vmem:[%s385 + $0x20] sm:$0xff]
        %v392 = vld [vmem:[%s385 + $0x28] sm:$0xff]
        %v393 = vld [vmem:[%s385 + $0x30] sm:$0xff]
        %v394 = vld [vmem:[%s385 + $0x38] sm:$0xff]
        %v395 = vld [vmem:[%s385 + $0x40] sm:$0xff]
        %v396 = vld [vmem:[%s385 + $0x48] sm:$0xff]
        %v397 = vld [vmem:[%s385 + $0x50] sm:$0xff]
        %v398 = vld [vmem:[%s385 + $0x58] sm:$0xff]
        %v399 = vld [vmem:[%s385 + $0x60] sm:$0xff]
        %v400 = vld [vmem:[%s385 + $0x68] sm:$0xff]
        %v401 = vld [vmem:[%s385 + $0x70] sm:$0xff]
        %v402 = vld [vmem:[%s385 + $0x78] sm:$0xff]
        %v403 = vld [vmem:[%s1] sm:$0xff]
        %v404 = vld [vmem:[%s1 + $0x8] sm:$0xff]
        %v405 = vld [vmem:[%s1 + $0x10] sm:$0xff]
        %v406 = vld [vmem:[%s1 + $0x18] sm:$0xff]
        %v407 = vld [vmem:[%s1 + $0x20] sm:$0xff]
        %v408 = vld [vmem:[%s1 + $0x28] sm:$0xff]
        %v409 = vld [vmem:[%s1 + $0x30] sm:$0xff]
        %v410 = vld [vmem:[%s1 + $0x38] sm:$0xff]
        %v411 = vld [vmem:[%s1 + $0x40] sm:$0xff]
        %v412 = vld [vmem:[%s1 + $0x48] sm:$0xff]
        %v413 = vld [vmem:[%s1 + $0x50] sm:$0xff]
        %v414 = vld [vmem:[%s1 + $0x58] sm:$0xff]
        %v415 = vld [vmem:[%s1 + $0x60] sm:$0xff]
        %v416 = vld [vmem:[%s1 + $0x68] sm:$0xff]
        %v417 = vld [vmem:[%s1 + $0x70] sm:$0xff]
        %v418 = vld [vmem:[%s1 + $0x78] sm:$0xff]
        %v419 = vadd.f32 %v387, %v403
        %v420 = vadd.f32 %v388, %v404
        %v421 = vadd.f32 %v389, %v405
        %v422 = vadd.f32 %v390, %v406
        %v423 = vadd.f32 %v391, %v407
        %v424 = vadd.f32 %v392, %v408
        %v425 = vadd.f32 %v393, %v409
        %v426 = vadd.f32 %v394, %v410
        %v427 = vadd.f32 %v395, %v411
        %v428 = vadd.f32 %v396, %v412
        %v429 = vadd.f32 %v397, %v413
        %v430 = vadd.f32 %v398, %v414
        %v431 = vadd.f32 %v399, %v415
        %v432 = vadd.f32 %v400, %v416
        %v433 = vadd.f32 %v401, %v417
        %v434 = vadd.f32 %v402, %v418
        %v435 = vld [vmem:[%s3] sm:$0xff]
        %v436 = vld [vmem:[%s2] sm:$0x1]
        %v438 = vlaneseq
        %v439 = vshrl.u32 %v438, 7
        %v440 = vsub.s32 0, %v439
        %v441 = vrot.slane %v436, %v440
        %443 = vmatprep.subr.mxu0 0.0
        %444 = vmatpush1.msra.mxu0 %v402
        %445 = vmatprep.subr.mxu0 0.0
        %446 = vmatpush1.msra.mxu0 %v401
        %447 = vmatprep.subr.mxu0 0.0
        %448 = vmatpush1.msra.mxu0 %v400
        %449 = vmatprep.subr.mxu0 0.0
        %450 = vmatpush1.msra.mxu0 %v399
        %451 = vmatprep.subr.mxu0 0.0
        %452 = vmatpush1.msra.mxu0 %v398
        %453 = vmatprep.subr.mxu0 0.0
        %454 = vmatpush1.msra.mxu0 %v397
        %455 = vmatprep.subr.mxu0 0.0
        %456 = vmatpush1.msra.mxu0 %v396
        %457 = vmatprep.subr.mxu0 0.0
        %458 = vmatpush1.msra.mxu0 %v395
        %459 = vmatprep.subr.mxu0 0.0
        %460 = vmatpush1.msra.mxu0 %v394
        %461 = vmatprep.subr.mxu0 0.0
        %462 = vmatpush1.msra.mxu0 %v393
        %463 = vmatprep.subr.mxu0 0.0
        %464 = vmatpush1.msra.mxu0 %v392
        %465 = vmatprep.subr.mxu0 0.0
        %466 = vmatpush1.msra.mxu0 %v391
        %467 = vmatprep.subr.mxu0 0.0
        %468 = vmatpush1.msra.mxu0 %v390
        %469 = vmatprep.subr.mxu0 0.0
        %470 = vmatpush1.msra.mxu0 %v389
        %471 = vmatprep.subr.mxu0 0.0
        %472 = vmatpush1.msra.mxu0 %v388
        %473 = vmatprep.subr.mxu0 0.0
        %474 = vmatpush1.msra.mxu0 %v387
        %475 = vmatprep.subr.mxu0 0.0
        %476 = vmatpush2.msra.mxu0 0.0
        %477 = vmatprep.subr.mxu0 0.0
        %478 = vmatpush2.msra.mxu0 0.0
        %479 = vmatprep.subr.mxu0 0.0
        %480 = vmatpush2.msra.mxu0 0.0
        %481 = vmatprep.subr.mxu0 0.0
        %482 = vmatpush2.msra.mxu0 0.0
        %483 = vmatprep.subr.mxu0 0.0
        %484 = vmatpush2.msra.mxu0 0.0
        %485 = vmatprep.subr.mxu0 0.0
        %486 = vmatpush2.msra.mxu0 0.0
        %487 = vmatprep.subr.mxu0 0.0
        %488 = vmatpush2.msra.mxu0 0.0
        %489 = vmatprep.subr.mxu0 0.0
        %490 = vmatpush2.msra.mxu0 0.0
        %491 = vmatprep.subr.mxu0 0.0
        %492 = vmatpush2.msra.mxu0 0.0
        %493 = vmatprep.subr.mxu0 0.0
        %494 = vmatpush2.msra.mxu0 0.0
        %495 = vmatprep.subr.mxu0 0.0
        %496 = vmatpush2.msra.mxu0 0.0
        %497 = vmatprep.subr.mxu0 0.0
        %498 = vmatpush2.msra.mxu0 0.0
        %499 = vmatprep.subr.mxu0 0.0
        %500 = vmatpush2.msra.mxu0 0.0
        %501 = vmatprep.subr.mxu0 0.0
        %502 = vmatpush2.msra.mxu0 0.0
        %503 = vmatprep.subr.mxu0 0.0
        %504 = vmatpush2.msra.mxu0 0.0
        %505 = vmatprep.subr.mxu0 0.0
        %506 = vmatpush2.msra.mxu0 0.0
        %507 = vmatprep.mubr.f32.mxu0 0.0
        %508 = vmatmul.mubr.f32.gmra.mxu0 %v435
        %v509 = vpop.f32.mrf.mxu0
        %v510 = vadd.f32 %v441, %v509
        %v511 = vpop.f32.mrf.mxu0
        %512 = vdwg.mxu0
        %v513 = vld [vmem:[%s7] sm:$0xff]
        %v514 = vld [vmem:[%s7 + $0x8] sm:$0xff]
        %v515 = vld [vmem:[%s7 + $0x10] sm:$0xff]
        %v516 = vld [vmem:[%s7 + $0x18] sm:$0xff]
        %v517 = vld [vmem:[%s8] sm:$0x1]
        %v519 = vlaneseq
        %v520 = vshrl.u32 %v519, 7
        %v521 = vsub.s32 0, %v520
        %v522 = vrot.slane %v517, %v521
        %vm524 = vcmask 261120
        %v526 = vsel %vm524, %v419, 0
        %v529 = vsel %vm524, %v420, 0
        %v532 = vsel %vm524, %v421, 0
        %v535 = vsel %vm524, %v422, 0
        %v538 = vsel %vm524, %v423, 0
        %v541 = vsel %vm524, %v424, 0
        %v544 = vsel %vm524, %v425, 0
        %v547 = vsel %vm524, %v426, 0
        %v550 = vsel %vm524, %v427, 0
        %v553 = vsel %vm524, %v428, 0
        %v556 = vsel %vm524, %v429, 0
        %v559 = vsel %vm524, %v430, 0
        %v562 = vsel %vm524, %v431, 0
        %v565 = vsel %vm524, %v432, 0
        %v568 = vsel %vm524, %v433, 0
        %v571 = vsel %vm524, %v434, 0
        %573 = vmatprep.subr.mxu0 0.0
        %574 = vmatpush1.msra.mxu0 0.0
        %575 = vmatprep.subr.mxu0 0.0
        %576 = vmatpush1.msra.mxu0 0.0
        %577 = vmatprep.subr.mxu0 0.0
        %578 = vmatpush1.msra.mxu0 0.0
        %579 = vmatprep.subr.mxu0 0.0
        %580 = vmatpush1.msra.mxu0 0.0
        %581 = vmatprep.subr.mxu0 0.0
        %582 = vmatpush1.msra.mxu0 0.0
        %583 = vmatprep.subr.mxu0 0.0
        %584 = vmatpush1.msra.mxu0 0.0
        %585 = vmatprep.subr.mxu0 0.0
        %586 = vmatpush1.msra.mxu0 0.0
        %587 = vmatprep.subr.mxu0 0.0
        %588 = vmatpush1.msra.mxu0 0.0
        %589 = vmatprep.subr.mxu0 0.0
        %590 = vmatpush1.msra.mxu0 0.0
        %591 = vmatprep.subr.mxu0 0.0
        %592 = vmatpush1.msra.mxu0 0.0
        %593 = vmatprep.subr.mxu0 0.0
        %594 = vmatpush1.msra.mxu0 0.0
        %595 = vmatprep.subr.mxu0 0.0
        %596 = vmatpush1.msra.mxu0 0.0
        %597 = vmatprep.subr.mxu0 0.0
        %598 = vmatpush1.msra.mxu0 %v516
        %599 = vmatprep.subr.mxu0 0.0
        %600 = vmatpush1.msra.mxu0 %v515
        %601 = vmatprep.subr.mxu0 0.0
        %602 = vmatpush1.msra.mxu0 %v514
        %603 = vmatprep.subr.mxu0 0.0
        %604 = vmatpush1.msra.mxu0 %v513
        %605 = vmatprep.subr.mxu0 0.0
        %606 = vmatpush2.msra.mxu0 0.0
        %607 = vmatprep.subr.mxu0 0.0
        %608 = vmatpush2.msra.mxu0 0.0
        %609 = vmatprep.subr.mxu0 0.0
        %610 = vmatpush2.msra.mxu0 0.0
        %611 = vmatprep.subr.mxu0 0.0
        %612 = vmatpush2.msra.mxu0 0.0
        %613 = vmatprep.subr.mxu0 0.0
        %614 = vmatpush2.msra.mxu0 0.0
        %615 = vmatprep.subr.mxu0 0.0
        %616 = vmatpush2.msra.mxu0 0.0
        %617 = vmatprep.subr.mxu0 0.0
        %618 = vmatpush2.msra.mxu0 0.0
        %619 = vmatprep.subr.mxu0 0.0
        %620 = vmatpush2.msra.mxu0 0.0
        %621 = vmatprep.subr.mxu0 0.0
        %622 = vmatpush2.msra.mxu0 0.0
        %623 = vmatprep.subr.mxu0 0.0
        %624 = vmatpush2.msra.mxu0 0.0
        %625 = vmatprep.subr.mxu0 0.0
        %626 = vmatpush2.msra.mxu0 0.0
        %627 = vmatprep.subr.mxu0 0.0
        %628 = vmatpush2.msra.mxu0 0.0
        %629 = vmatprep.subr.mxu0 0.0
        %630 = vmatpush2.msra.mxu0 0.0
        %631 = vmatprep.subr.mxu0 0.0
        %632 = vmatpush2.msra.mxu0 0.0
        %633 = vmatprep.subr.mxu0 0.0
        %634 = vmatpush2.msra.mxu0 0.0
        %635 = vmatprep.subr.mxu0 0.0
        %636 = vmatpush2.msra.mxu0 0.0
        %637 = vmatprep.mubr.f32.mxu0 0.0
        %638 = vmatmul.mubr.f32.gmra.mxu0 %v526
        %v639 = vpop.f32.mrf.mxu0
        %v640 = vadd.f32 %v522, %v639
        %v641 = vpop.f32.mrf.mxu0
        %642 = vmatprep.mubr.f32.mxu0 0.0
        %643 = vmatmul.mubr.f32.gmra.mxu0 %v529
        %v644 = vpop.f32.mrf.mxu0
        %v645 = vadd.f32 %v522, %v644
        %v646 = vpop.f32.mrf.mxu0
        %647 = vmatprep.mubr.f32.mxu0 0.0
        %648 = vmatmul.mubr.f32.gmra.mxu0 %v532
        %v649 = vpop.f32.mrf.mxu0
        %v650 = vadd.f32 %v522, %v649
        %v651 = vpop.f32.mrf.mxu0
        %652 = vmatprep.mubr.f32.mxu0 0.0
        %653 = vmatmul.mubr.f32.gmra.mxu0 %v535
        %v654 = vpop.f32.mrf.mxu0
        %v655 = vadd.f32 %v522, %v654
        %v656 = vpop.f32.mrf.mxu0
        %657 = vmatprep.mubr.f32.mxu0 0.0
        %658 = vmatmul.mubr.f32.gmra.mxu0 %v538
        %v659 = vpop.f32.mrf.mxu0
        %v660 = vadd.f32 %v522, %v659
        %v661 = vpop.f32.mrf.mxu0
        %662 = vmatprep.mubr.f32.mxu0 0.0
        %663 = vmatmul.mubr.f32.gmra.mxu0 %v541
        %v664 = vpop.f32.mrf.mxu0
        %v665 = vadd.f32 %v522, %v664
        %v666 = vpop.f32.mrf.mxu0
        %667 = vmatprep.mubr.f32.mxu0 0.0
        %668 = vmatmul.mubr.f32.gmra.mxu0 %v544
        %v669 = vpop.f32.mrf.mxu0
        %v670 = vadd.f32 %v522, %v669
        %v671 = vpop.f32.mrf.mxu0
        %672 = vmatprep.mubr.f32.mxu0 0.0
        %673 = vmatmul.mubr.f32.gmra.mxu0 %v547
        %v674 = vpop.f32.mrf.mxu0
        %v675 = vadd.f32 %v522, %v674
        %v676 = vpop.f32.mrf.mxu0
        %677 = vmatprep.mubr.f32.mxu0 0.0
        %678 = vmatmul.mubr.f32.gmra.mxu0 %v550
        %v679 = vpop.f32.mrf.mxu0
        %v680 = vadd.f32 %v522, %v679
        %v681 = vpop.f32.mrf.mxu0
        %682 = vmatprep.mubr.f32.mxu0 0.0
        %683 = vmatmul.mubr.f32.gmra.mxu0 %v553
        %v684 = vpop.f32.mrf.mxu0
        %v685 = vadd.f32 %v522, %v684
        %v686 = vpop.f32.mrf.mxu0
        %687 = vmatprep.mubr.f32.mxu0 0.0
        %688 = vmatmul.mubr.f32.gmra.mxu0 %v556
        %v689 = vpop.f32.mrf.mxu0
        %v690 = vadd.f32 %v522, %v689
        %v691 = vpop.f32.mrf.mxu0
        %692 = vmatprep.mubr.f32.mxu0 0.0
        %693 = vmatmul.mubr.f32.gmra.mxu0 %v559
        %v694 = vpop.f32.mrf.mxu0
        %v695 = vadd.f32 %v522, %v694
        %v696 = vpop.f32.mrf.mxu0
        %697 = vmatprep.mubr.f32.mxu0 0.0
        %698 = vmatmul.mubr.f32.gmra.mxu0 %v562
        %v699 = vpop.f32.mrf.mxu0
        %v700 = vadd.f32 %v522, %v699
        %v701 = vpop.f32.mrf.mxu0
        %702 = vmatprep.mubr.f32.mxu0 0.0
        %703 = vmatmul.mubr.f32.gmra.mxu0 %v565
        %v704 = vpop.f32.mrf.mxu0
        %v705 = vadd.f32 %v522, %v704
        %v706 = vpop.f32.mrf.mxu0
        %707 = vmatprep.mubr.f32.mxu0 0.0
        %708 = vmatmul.mubr.f32.gmra.mxu0 %v568
        %v709 = vpop.f32.mrf.mxu0
        %v710 = vadd.f32 %v522, %v709
        %v711 = vpop.f32.mrf.mxu0
        %712 = vmatprep.mubr.f32.mxu0 0.0
        %713 = vmatmul.mubr.f32.gmra.mxu0 %v571
        %v714 = vpop.f32.mrf.mxu0
        %v715 = vadd.f32 %v522, %v714
        %v716 = vpop.f32.mrf.mxu0
        %717 = vdwg.mxu0
        %v718 = vld [vmem:[%s5] sm:$0xff]
        %v719 = vld [vmem:[%s5 + $0x8] sm:$0xff]
        %v720 = vld [vmem:[%s5 + $0x10] sm:$0xff]
        %v721 = vld [vmem:[%s5 + $0x18] sm:$0xff]
        %v722 = vld [vmem:[%s6] sm:$0x1]
        %v724 = vlaneseq
        %v725 = vshrl.u32 %v724, 7
        %v726 = vsub.s32 0, %v725
        %v727 = vrot.slane %v722, %v726
        %v730 = vsel %vm524, %v510, 0
        %732 = vmatprep.subr.mxu0 0.0
        %733 = vmatpush1.msra.mxu0 0.0
        %734 = vmatprep.subr.mxu0 0.0
        %735 = vmatpush1.msra.mxu0 0.0
        %736 = vmatprep.subr.mxu0 0.0
        %737 = vmatpush1.msra.mxu0 0.0
        %738 = vmatprep.subr.mxu0 0.0
        %739 = vmatpush1.msra.mxu0 0.0
        %740 = vmatprep.subr.mxu0 0.0
        %741 = vmatpush1.msra.mxu0 0.0
        %742 = vmatprep.subr.mxu0 0.0
        %743 = vmatpush1.msra.mxu0 0.0
        %744 = vmatprep.subr.mxu0 0.0
        %745 = vmatpush1.msra.mxu0 0.0
        %746 = vmatprep.subr.mxu0 0.0
        %747 = vmatpush1.msra.mxu0 0.0
        %748 = vmatprep.subr.mxu0 0.0
        %749 = vmatpush1.msra.mxu0 0.0
        %750 = vmatprep.subr.mxu0 0.0
        %751 = vmatpush1.msra.mxu0 0.0
        %752 = vmatprep.subr.mxu0 0.0
        %753 = vmatpush1.msra.mxu0 0.0
        %754 = vmatprep.subr.mxu0 0.0
        %755 = vmatpush1.msra.mxu0 0.0
        %756 = vmatprep.subr.mxu0 0.0
        %757 = vmatpush1.msra.mxu0 %v721
        %758 = vmatprep.subr.mxu0 0.0
        %759 = vmatpush1.msra.mxu0 %v720
        %760 = vmatprep.subr.mxu0 0.0
        %761 = vmatpush1.msra.mxu0 %v719
        %762 = vmatprep.subr.mxu0 0.0
        %763 = vmatpush1.msra.mxu0 %v718
        %764 = vmatprep.subr.mxu0 0.0
        %765 = vmatpush2.msra.mxu0 0.0
        %766 = vmatprep.subr.mxu0 0.0
        %767 = vmatpush2.msra.mxu0 0.0
        %768 = vmatprep.subr.mxu0 0.0
        %769 = vmatpush2.msra.mxu0 0.0
        %770 = vmatprep.subr.mxu0 0.0
        %771 = vmatpush2.msra.mxu0 0.0
        %772 = vmatprep.subr.mxu0 0.0
        %773 = vmatpush2.msra.mxu0 0.0
        %774 = vmatprep.subr.mxu0 0.0
        %775 = vmatpush2.msra.mxu0 0.0
        %776 = vmatprep.subr.mxu0 0.0
        %777 = vmatpush2.msra.mxu0 0.0
        %778 = vmatprep.subr.mxu0 0.0
        %779 = vmatpush2.msra.mxu0 0.0
        %780 = vmatprep.subr.mxu0 0.0
        %781 = vmatpush2.msra.mxu0 0.0
        %782 = vmatprep.subr.mxu0 0.0
        %783 = vmatpush2.msra.mxu0 0.0
        %784 = vmatprep.subr.mxu0 0.0
        %785 = vmatpush2.msra.mxu0 0.0
        %786 = vmatprep.subr.mxu0 0.0
        %787 = vmatpush2.msra.mxu0 0.0
        %788 = vmatprep.subr.mxu0 0.0
        %789 = vmatpush2.msra.mxu0 0.0
        %790 = vmatprep.subr.mxu0 0.0
        %791 = vmatpush2.msra.mxu0 0.0
        %792 = vmatprep.subr.mxu0 0.0
        %793 = vmatpush2.msra.mxu0 0.0
        %794 = vmatprep.subr.mxu0 0.0
        %795 = vmatpush2.msra.mxu0 0.0
        %796 = vmatprep.mubr.f32.mxu0 0.0
        %797 = vmatmul.mubr.f32.gmra.mxu0 %v730
        %v798 = vpop.f32.mrf.mxu0
        %v799 = vadd.f32 %v727, %v798
        %v800 = vpop.f32.mrf.mxu0
        %801 = vdwg.mxu0
        %v802 = vmul.f32 %v799, 0.35355338
        %803 = vmatprep.subr.mxu0 0.0
        %804 = vmatpush1.msra.mxu0 0.0
        %805 = vmatprep.subr.mxu0 0.0
        %806 = vmatpush1.msra.mxu0 0.0
        %807 = vmatprep.subr.mxu0 0.0
        %808 = vmatpush1.msra.mxu0 0.0
        %809 = vmatprep.subr.mxu0 0.0
        %810 = vmatpush1.msra.mxu0 0.0
        %811 = vmatprep.subr.mxu0 0.0
        %812 = vmatpush1.msra.mxu0 0.0
        %813 = vmatprep.subr.mxu0 0.0
        %814 = vmatpush1.msra.mxu0 0.0
        %815 = vmatprep.subr.mxu0 0.0
        %816 = vmatpush1.msra.mxu0 0.0
        %817 = vmatprep.subr.mxu0 0.0
        %818 = vmatpush1.msra.mxu0 0.0
        %819 = vmatprep.subr.mxu0 0.0
        %820 = vmatpush1.msra.mxu0 0.0
        %821 = vmatprep.subr.mxu0 0.0
        %822 = vmatpush1.msra.mxu0 0.0
        %823 = vmatprep.subr.mxu0 0.0
        %824 = vmatpush1.msra.mxu0 0.0
        %825 = vmatprep.subr.mxu0 0.0
        %826 = vmatpush1.msra.mxu0 0.0
        %827 = vmatprep.subr.mxu0 0.0
        %828 = vmatpush1.msra.mxu0 %v516
        %829 = vmatprep.subr.mxu0 0.0
        %830 = vmatpush1.msra.mxu0 %v515
        %831 = vmatprep.subr.mxu0 0.0
        %832 = vmatpush1.msra.mxu0 %v514
        %833 = vmatprep.subr.mxu0 0.0
        %834 = vmatpush1.msra.mxu0 %v513
        %835 = vmatprep.subr.mxu0 0.0
        %836 = vmatpush2.msra.mxu0 0.0
        %837 = vmatprep.subr.mxu0 0.0
        %838 = vmatpush2.msra.mxu0 0.0
        %839 = vmatprep.subr.mxu0 0.0
        %840 = vmatpush2.msra.mxu0 0.0
        %841 = vmatprep.subr.mxu0 0.0
        %842 = vmatpush2.msra.mxu0 0.0
        %843 = vmatprep.subr.mxu0 0.0
        %844 = vmatpush2.msra.mxu0 0.0
        %845 = vmatprep.subr.mxu0 0.0
        %846 = vmatpush2.msra.mxu0 0.0
        %847 = vmatprep.subr.mxu0 0.0
        %848 = vmatpush2.msra.mxu0 0.0
        %849 = vmatprep.subr.mxu0 0.0
        %850 = vmatpush2.msra.mxu0 0.0
        %851 = vmatprep.subr.mxu0 0.0
        %852 = vmatpush2.msra.mxu0 0.0
        %853 = vmatprep.subr.mxu0 0.0
        %854 = vmatpush2.msra.mxu0 0.0
        %855 = vmatprep.subr.mxu0 0.0
        %856 = vmatpush2.msra.mxu0 0.0
        %857 = vmatprep.subr.mxu0 0.0
        %858 = vmatpush2.msra.mxu0 0.0
        %859 = vmatprep.subr.mxu0 0.0
        %860 = vmatpush2.msra.mxu0 0.0
        %861 = vmatprep.subr.mxu0 0.0
        %862 = vmatpush2.msra.mxu0 0.0
        %863 = vmatprep.subr.mxu0 0.0
        %864 = vmatpush2.msra.mxu0 0.0
        %865 = vmatprep.subr.mxu0 0.0
        %866 = vmatpush2.msra.mxu0 0.0
        %867 = vmatprep.mubr.f32.mxu0 0.0
        %868 = vmatmul.mubr.f32.gmra.mxu0 %v730
        %v869 = vpop.f32.mrf.mxu0
        %v870 = vadd.f32 %v522, %v869
        %v871 = vpop.f32.mrf.mxu0
        %872 = vdwg.mxu0
        %v873 = vld [vmem:[%s4] sm:$0xf]
        %v875 = vcombine.high %v802, %v802
        %v877 = vunpack.c.l.s4 1966171168
        %v878 = vunpack.c.0.s8 %v877
        %v879 = vlaneseq
        %v880 = vshrl.u32 %v879, 7
        %v881 = vsub.s32 %v878, %v880
        %v882 = vrot.slane %v802, %v881
        %v884 = vunpack.c.l.s4 1966171168
        %v885 = vunpack.c.0.s8 %v884
        %v886 = vlaneseq
        %v887 = vshrl.u32 %v886, 7
        %v888 = vsub.s32 %v885, %v887
        %v889 = vrot.slane %v875, %v888
        %v890 = vcombine.high %v882, %v882
        %v891 = vcombine.high %v889, %v889
        %v893 = vunpack.c.l.s4 1966171168
        %v894 = vunpack.c.0.s8 %v893
        %v895 = vlaneseq
        %v896 = vshrl.u32 %v895, 7
        %v897 = vsub.s32 %v894, %v896
        %v898 = vrot.slane %v882, %v897
        %v900 = vunpack.c.l.s4 1966171168
        %v901 = vunpack.c.0.s8 %v900
        %v902 = vlaneseq
        %v903 = vshrl.u32 %v902, 7
        %v904 = vsub.s32 %v901, %v903
        %v905 = vrot.slane %v889, %v904
        %v907 = vunpack.c.l.s4 1966171168
        %v908 = vunpack.c.0.s8 %v907
        %v909 = vlaneseq
        %v910 = vshrl.u32 %v909, 7
        %v911 = vsub.s32 %v908, %v910
        %v912 = vrot.slane %v890, %v911
        %v914 = vunpack.c.l.s4 1966171168
        %v915 = vunpack.c.0.s8 %v914
        %v916 = vlaneseq
        %v917 = vshrl.u32 %v916, 7
        %v918 = vsub.s32 %v915, %v917
        %v919 = vrot.slane %v891, %v918
        %v920 = vcombine.high %v898, %v898
        %v921 = vcombine.high %v905, %v905
        %v922 = vcombine.high %v912, %v912
        %v923 = vcombine.high %v919, %v919
        %v924 = vlaneseq
        %v925 = vshrl.u32 %v924, 7
        %v926 = vsub.s32 0, %v925
        %v927 = vrot.slane %v898, %v926
        %v928 = vlaneseq
        %v929 = vshrl.u32 %v928, 7
        %v930 = vsub.s32 0, %v929
        %v931 = vrot.slane %v912, %v930
        %v932 = vlaneseq
        %v933 = vshrl.u32 %v932, 7
        %v934 = vsub.s32 0, %v933
        %v935 = vrot.slane %v920, %v934
        %v936 = vlaneseq
        %v937 = vshrl.u32 %v936, 7
        %v938 = vsub.s32 0, %v937
        %v939 = vrot.slane %v922, %v938
        %v940 = vlaneseq
        %v941 = vshrl.u32 %v940, 7
        %v942 = vsub.s32 0, %v941
        %v943 = vrot.slane %v905, %v942
        %v944 = vlaneseq
        %v945 = vshrl.u32 %v944, 7
        %v946 = vsub.s32 0, %v945
        %v947 = vrot.slane %v919, %v946
        %v948 = vlaneseq
        %v949 = vshrl.u32 %v948, 7
        %v950 = vsub.s32 0, %v949
        %v951 = vrot.slane %v921, %v950
        %v952 = vlaneseq
        %v953 = vshrl.u32 %v952, 7
        %v954 = vsub.s32 0, %v953
        %v955 = vrot.slane %v923, %v954
        %v964 = vmul.f32 %v927, %v873
        %v965 = vmul.f32 %v931, %v873
        %v966 = vmul.f32 %v935, %v873
        %v967 = vmul.f32 %v939, %v873
        %v968 = vmul.f32 %v943, %v873
        %v969 = vmul.f32 %v947, %v873
        %v970 = vmul.f32 %v951, %v873
        %v971 = vmul.f32 %v955, %v873
        %v973 = vsel %vm524, %v964, 0
        %v976 = vsel %vm524, %v640, 0
        %v979 = vsel %vm524, %v645, 0
        %981 = vmatprep.subr.mxu0 0.0
        %982 = vmatpush1.xpose.msra.mxu0 0.0
        %983 = vmatprep.subr.mxu0 0.0
        %984 = vmatpush1.xpose.msra.mxu0 0.0
        %985 = vmatprep.subr.mxu0 0.0
        %986 = vmatpush1.xpose.msra.mxu0 0.0
        %987 = vmatprep.subr.mxu0 0.0
        %988 = vmatpush1.xpose.msra.mxu0 0.0
        %989 = vmatprep.subr.mxu0 0.0
        %990 = vmatpush1.xpose.msra.mxu0 0.0
        %991 = vmatprep.subr.mxu0 0.0
        %992 = vmatpush1.xpose.msra.mxu0 0.0
        %993 = vmatprep.subr.mxu0 0.0
        %994 = vmatpush1.xpose.msra.mxu0 0.0
        %995 = vmatprep.subr.mxu0 0.0
        %996 = vmatpush1.xpose.msra.mxu0 0.0
        %997 = vmatprep.subr.mxu0 0.0
        %998 = vmatpush1.xpose.msra.mxu0 0.0
        %999 = vmatprep.subr.mxu0 0.0
        %1000 = vmatpush1.xpose.msra.mxu0 0.0
        %1001 = vmatprep.subr.mxu0 0.0
        %1002 = vmatpush1.xpose.msra.mxu0 0.0
        %1003 = vmatprep.subr.mxu0 0.0
        %1004 = vmatpush1.xpose.msra.mxu0 0.0
        %1005 = vmatprep.subr.mxu0 0.0
        %1006 = vmatpush1.xpose.msra.mxu0 0.0
        %1007 = vmatprep.subr.mxu0 0.0
        %1008 = vmatpush1.xpose.msra.mxu0 0.0
        %1009 = vmatprep.subr.mxu0 0.0
        %1010 = vmatpush1.xpose.msra.mxu0 %v979
        %1011 = vmatprep.subr.mxu0 0.0
        %1012 = vmatpush1.xpose.msra.mxu0 %v976
        %1013 = vmatprep.subr.mxu0 0.0
        %1014 = vmatpush2.xpose.msra.mxu0 0.0
        %1015 = vmatprep.subr.mxu0 0.0
        %1016 = vmatpush2.xpose.msra.mxu0 0.0
        %1017 = vmatprep.subr.mxu0 0.0
        %1018 = vmatpush2.xpose.msra.mxu0 0.0
        %1019 = vmatprep.subr.mxu0 0.0
        %1020 = vmatpush2.xpose.msra.mxu0 0.0
        %1021 = vmatprep.subr.mxu0 0.0
        %1022 = vmatpush2.xpose.msra.mxu0 0.0
        %1023 = vmatprep.subr.mxu0 0.0
        %1024 = vmatpush2.xpose.msra.mxu0 0.0
        %1025 = vmatprep.subr.mxu0 0.0
        %1026 = vmatpush2.xpose.msra.mxu0 0.0
        %1027 = vmatprep.subr.mxu0 0.0
        %1028 = vmatpush2.xpose.msra.mxu0 0.0
        %1029 = vmatprep.subr.mxu0 0.0
        %1030 = vmatpush2.xpose.msra.mxu0 0.0
        %1031 = vmatprep.subr.mxu0 0.0
        %1032 = vmatpush2.xpose.msra.mxu0 0.0
        %1033 = vmatprep.subr.mxu0 0.0
        %1034 = vmatpush2.xpose.msra.mxu0 0.0
        %1035 = vmatprep.subr.mxu0 0.0
        %1036 = vmatpush2.xpose.msra.mxu0 0.0
        %1037 = vmatprep.subr.mxu0 0.0
        %1038 = vmatpush2.xpose.msra.mxu0 0.0
        %1039 = vmatprep.subr.mxu0 0.0
        %1040 = vmatpush2.xpose.msra.mxu0 0.0
        %1041 = vmatprep.subr.mxu0 0.0
        %1042 = vmatpush2.xpose.msra.mxu0 0.0
        %1043 = vmatprep.subr.mxu0 0.0
        %1044 = vmatpush2.xpose.msra.mxu0 0.0
        %1045 = vmatprep.mubr.f32.mxu0 0.0
        %1046 = vmatmul.mubr.f32.gmra.mxu0 %v973
        %v1047 = vpop.f32.mrf.mxu0
        %v1048 = vadd.f32 0.0, %v1047
        %v1049 = vpop.f32.mrf.mxu0
        %1050 = vdwg.mxu0
        %v1052 = vsel %vm524, %v965, 0
        %v1055 = vsel %vm524, %v650, 0
        %v1058 = vsel %vm524, %v655, 0
        %1060 = vmatprep.subr.mxu0 0.0
        %1061 = vmatpush1.xpose.msra.mxu0 0.0
        %1062 = vmatprep.subr.mxu0 0.0
        %1063 = vmatpush1.xpose.msra.mxu0 0.0
        %1064 = vmatprep.subr.mxu0 0.0
        %1065 = vmatpush1.xpose.msra.mxu0 0.0
        %1066 = vmatprep.subr.mxu0 0.0
        %1067 = vmatpush1.xpose.msra.mxu0 0.0
        %1068 = vmatprep.subr.mxu0 0.0
        %1069 = vmatpush1.xpose.msra.mxu0 0.0
        %1070 = vmatprep.subr.mxu0 0.0
        %1071 = vmatpush1.xpose.msra.mxu0 0.0
        %1072 = vmatprep.subr.mxu0 0.0
        %1073 = vmatpush1.xpose.msra.mxu0 0.0
        %1074 = vmatprep.subr.mxu0 0.0
        %1075 = vmatpush1.xpose.msra.mxu0 0.0
        %1076 = vmatprep.subr.mxu0 0.0
        %1077 = vmatpush1.xpose.msra.mxu0 0.0
        %1078 = vmatprep.subr.mxu0 0.0
        %1079 = vmatpush1.xpose.msra.mxu0 0.0
        %1080 = vmatprep.subr.mxu0 0.0
        %1081 = vmatpush1.xpose.msra.mxu0 0.0
        %1082 = vmatprep.subr.mxu0 0.0
        %1083 = vmatpush1.xpose.msra.mxu0 0.0
        %1084 = vmatprep.subr.mxu0 0.0
        %1085 = vmatpush1.xpose.msra.mxu0 0.0
        %1086 = vmatprep.subr.mxu0 0.0
        %1087 = vmatpush1.xpose.msra.mxu0 0.0
        %1088 = vmatprep.subr.mxu0 0.0
        %1089 = vmatpush1.xpose.msra.mxu0 %v1058
        %1090 = vmatprep.subr.mxu0 0.0
        %1091 = vmatpush1.xpose.msra.mxu0 %v1055
        %1092 = vmatprep.subr.mxu0 0.0
        %1093 = vmatpush2.xpose.msra.mxu0 0.0
        %1094 = vmatprep.subr.mxu0 0.0
        %1095 = vmatpush2.xpose.msra.mxu0 0.0
        %1096 = vmatprep.subr.mxu0 0.0
        %1097 = vmatpush2.xpose.msra.mxu0 0.0
        %1098 = vmatprep.subr.mxu0 0.0
        %1099 = vmatpush2.xpose.msra.mxu0 0.0
        %1100 = vmatprep.subr.mxu0 0.0
        %1101 = vmatpush2.xpose.msra.mxu0 0.0
        %1102 = vmatprep.subr.mxu0 0.0
        %1103 = vmatpush2.xpose.msra.mxu0 0.0
        %1104 = vmatprep.subr.mxu0 0.0
        %1105 = vmatpush2.xpose.msra.mxu0 0.0
        %1106 = vmatprep.subr.mxu0 0.0
        %1107 = vmatpush2.xpose.msra.mxu0 0.0
        %1108 = vmatprep.subr.mxu0 0.0
        %1109 = vmatpush2.xpose.msra.mxu0 0.0
        %1110 = vmatprep.subr.mxu0 0.0
        %1111 = vmatpush2.xpose.msra.mxu0 0.0
        %1112 = vmatprep.subr.mxu0 0.0
        %1113 = vmatpush2.xpose.msra.mxu0 0.0
        %1114 = vmatprep.subr.mxu0 0.0
        %1115 = vmatpush2.xpose.msra.mxu0 0.0
        %1116 = vmatprep.subr.mxu0 0.0
        %1117 = vmatpush2.xpose.msra.mxu0 0.0
        %1118 = vmatprep.subr.mxu0 0.0
        %1119 = vmatpush2.xpose.msra.mxu0 0.0
        %1120 = vmatprep.subr.mxu0 0.0
        %1121 = vmatpush2.xpose.msra.mxu0 0.0
        %1122 = vmatprep.subr.mxu0 0.0
        %1123 = vmatpush2.xpose.msra.mxu0 0.0
        %1124 = vmatprep.mubr.f32.mxu0 0.0
        %1125 = vmatmul.mubr.f32.gmra.mxu0 %v1052
        %v1126 = vpop.f32.mrf.mxu0
        %v1127 = vadd.f32 0.0, %v1126
        %v1128 = vpop.f32.mrf.mxu0
        %1129 = vdwg.mxu0
        %v1131 = vsel %vm524, %v966, 0
        %v1134 = vsel %vm524, %v660, 0
        %v1137 = vsel %vm524, %v665, 0
        %1139 = vmatprep.subr.mxu0 0.0
        %1140 = vmatpush1.xpose.msra.mxu0 0.0
        %1141 = vmatprep.subr.mxu0 0.0
        %1142 = vmatpush1.xpose.msra.mxu0 0.0
        %1143 = vmatprep.subr.mxu0 0.0
        %1144 = vmatpush1.xpose.msra.mxu0 0.0
        %1145 = vmatprep.subr.mxu0 0.0
        %1146 = vmatpush1.xpose.msra.mxu0 0.0
        %1147 = vmatprep.subr.mxu0 0.0
        %1148 = vmatpush1.xpose.msra.mxu0 0.0
        %1149 = vmatprep.subr.mxu0 0.0
        %1150 = vmatpush1.xpose.msra.mxu0 0.0
        %1151 = vmatprep.subr.mxu0 0.0
        %1152 = vmatpush1.xpose.msra.mxu0 0.0
        %1153 = vmatprep.subr.mxu0 0.0
        %1154 = vmatpush1.xpose.msra.mxu0 0.0
        %1155 = vmatprep.subr.mxu0 0.0
        %1156 = vmatpush1.xpose.msra.mxu0 0.0
        %1157 = vmatprep.subr.mxu0 0.0
        %1158 = vmatpush1.xpose.msra.mxu0 0.0
        %1159 = vmatprep.subr.mxu0 0.0
        %1160 = vmatpush1.xpose.msra.mxu0 0.0
        %1161 = vmatprep.subr.mxu0 0.0
        %1162 = vmatpush1.xpose.msra.mxu0 0.0
        %1163 = vmatprep.subr.mxu0 0.0
        %1164 = vmatpush1.xpose.msra.mxu0 0.0
        %1165 = vmatprep.subr.mxu0 0.0
        %1166 = vmatpush1.xpose.msra.mxu0 0.0
        %1167 = vmatprep.subr.mxu0 0.0
        %1168 = vmatpush1.xpose.msra.mxu0 %v1137
        %1169 = vmatprep.subr.mxu0 0.0
        %1170 = vmatpush1.xpose.msra.mxu0 %v1134
        %1171 = vmatprep.subr.mxu0 0.0
        %1172 = vmatpush2.xpose.msra.mxu0 0.0
        %1173 = vmatprep.subr.mxu0 0.0
        %1174 = vmatpush2.xpose.msra.mxu0 0.0
        %1175 = vmatprep.subr.mxu0 0.0
        %1176 = vmatpush2.xpose.msra.mxu0 0.0
        %1177 = vmatprep.subr.mxu0 0.0
        %1178 = vmatpush2.xpose.msra.mxu0 0.0
        %1179 = vmatprep.subr.mxu0 0.0
        %1180 = vmatpush2.xpose.msra.mxu0 0.0
        %1181 = vmatprep.subr.mxu0 0.0
        %1182 = vmatpush2.xpose.msra.mxu0 0.0
        %1183 = vmatprep.subr.mxu0 0.0
        %1184 = vmatpush2.xpose.msra.mxu0 0.0
        %1185 = vmatprep.subr.mxu0 0.0
        %1186 = vmatpush2.xpose.msra.mxu0 0.0
        %1187 = vmatprep.subr.mxu0 0.0
        %1188 = vmatpush2.xpose.msra.mxu0 0.0
        %1189 = vmatprep.subr.mxu0 0.0
        %1190 = vmatpush2.xpose.msra.mxu0 0.0
        %1191 = vmatprep.subr.mxu0 0.0
        %1192 = vmatpush2.xpose.msra.mxu0 0.0
        %1193 = vmatprep.subr.mxu0 0.0
        %1194 = vmatpush2.xpose.msra.mxu0 0.0
        %1195 = vmatprep.subr.mxu0 0.0
        %1196 = vmatpush2.xpose.msra.mxu0 0.0
        %1197 = vmatprep.subr.mxu0 0.0
        %1198 = vmatpush2.xpose.msra.mxu0 0.0
        %1199 = vmatprep.subr.mxu0 0.0
        %1200 = vmatpush2.xpose.msra.mxu0 0.0
        %1201 = vmatprep.subr.mxu0 0.0
        %1202 = vmatpush2.xpose.msra.mxu0 0.0
        %1203 = vmatprep.mubr.f32.mxu0 0.0
        %1204 = vmatmul.mubr.f32.gmra.mxu0 %v1131
        %v1205 = vpop.f32.mrf.mxu0
        %v1206 = vadd.f32 0.0, %v1205
        %v1207 = vpop.f32.mrf.mxu0
        %1208 = vdwg.mxu0
        %v1210 = vsel %vm524, %v967, 0
        %v1213 = vsel %vm524, %v670, 0
        %v1216 = vsel %vm524, %v675, 0
        %1218 = vmatprep.subr.mxu0 0.0
        %1219 = vmatpush1.xpose.msra.mxu0 0.0
        %1220 = vmatprep.subr.mxu0 0.0
        %1221 = vmatpush1.xpose.msra.mxu0 0.0
        %1222 = vmatprep.subr.mxu0 0.0
        %1223 = vmatpush1.xpose.msra.mxu0 0.0
        %1224 = vmatprep.subr.mxu0 0.0
        %1225 = vmatpush1.xpose.msra.mxu0 0.0
        %1226 = vmatprep.subr.mxu0 0.0
        %1227 = vmatpush1.xpose.msra.mxu0 0.0
        %1228 = vmatprep.subr.mxu0 0.0
        %1229 = vmatpush1.xpose.msra.mxu0 0.0
        %1230 = vmatprep.subr.mxu0 0.0
        %1231 = vmatpush1.xpose.msra.mxu0 0.0
        %1232 = vmatprep.subr.mxu0 0.0
        %1233 = vmatpush1.xpose.msra.mxu0 0.0
        %1234 = vmatprep.subr.mxu0 0.0
        %1235 = vmatpush1.xpose.msra.mxu0 0.0
        %1236 = vmatprep.subr.mxu0 0.0
        %1237 = vmatpush1.xpose.msra.mxu0 0.0
        %1238 = vmatprep.subr.mxu0 0.0
        %1239 = vmatpush1.xpose.msra.mxu0 0.0
        %1240 = vmatprep.subr.mxu0 0.0
        %1241 = vmatpush1.xpose.msra.mxu0 0.0
        %1242 = vmatprep.subr.mxu0 0.0
        %1243 = vmatpush1.xpose.msra.mxu0 0.0
        %1244 = vmatprep.subr.mxu0 0.0
        %1245 = vmatpush1.xpose.msra.mxu0 0.0
        %1246 = vmatprep.subr.mxu0 0.0
        %1247 = vmatpush1.xpose.msra.mxu0 %v1216
        %1248 = vmatprep.subr.mxu0 0.0
        %1249 = vmatpush1.xpose.msra.mxu0 %v1213
        %1250 = vmatprep.subr.mxu0 0.0
        %1251 = vmatpush2.xpose.msra.mxu0 0.0
        %1252 = vmatprep.subr.mxu0 0.0
        %1253 = vmatpush2.xpose.msra.mxu0 0.0
        %1254 = vmatprep.subr.mxu0 0.0
        %1255 = vmatpush2.xpose.msra.mxu0 0.0
        %1256 = vmatprep.subr.mxu0 0.0
        %1257 = vmatpush2.xpose.msra.mxu0 0.0
        %1258 = vmatprep.subr.mxu0 0.0
        %1259 = vmatpush2.xpose.msra.mxu0 0.0
        %1260 = vmatprep.subr.mxu0 0.0
        %1261 = vmatpush2.xpose.msra.mxu0 0.0
        %1262 = vmatprep.subr.mxu0 0.0
        %1263 = vmatpush2.xpose.msra.mxu0 0.0
        %1264 = vmatprep.subr.mxu0 0.0
        %1265 = vmatpush2.xpose.msra.mxu0 0.0
        %1266 = vmatprep.subr.mxu0 0.0
        %1267 = vmatpush2.xpose.msra.mxu0 0.0
        %1268 = vmatprep.subr.mxu0 0.0
        %1269 = vmatpush2.xpose.msra.mxu0 0.0
        %1270 = vmatprep.subr.mxu0 0.0
        %1271 = vmatpush2.xpose.msra.mxu0 0.0
        %1272 = vmatprep.subr.mxu0 0.0
        %1273 = vmatpush2.xpose.msra.mxu0 0.0
        %1274 = vmatprep.subr.mxu0 0.0
        %1275 = vmatpush2.xpose.msra.mxu0 0.0
        %1276 = vmatprep.subr.mxu0 0.0
        %1277 = vmatpush2.xpose.msra.mxu0 0.0
        %1278 = vmatprep.subr.mxu0 0.0
        %1279 = vmatpush2.xpose.msra.mxu0 0.0
        %1280 = vmatprep.subr.mxu0 0.0
        %1281 = vmatpush2.xpose.msra.mxu0 0.0
        %1282 = vmatprep.mubr.f32.mxu0 0.0
        %1283 = vmatmul.mubr.f32.gmra.mxu0 %v1210
        %v1284 = vpop.f32.mrf.mxu0
        %v1285 = vadd.f32 0.0, %v1284
        %v1286 = vpop.f32.mrf.mxu0
        %1287 = vdwg.mxu0
        %v1289 = vsel %vm524, %v968, 0
        %v1292 = vsel %vm524, %v680, 0
        %v1295 = vsel %vm524, %v685, 0
        %1297 = vmatprep.subr.mxu0 0.0
        %1298 = vmatpush1.xpose.msra.mxu0 0.0
        %1299 = vmatprep.subr.mxu0 0.0
        %1300 = vmatpush1.xpose.msra.mxu0 0.0
        %1301 = vmatprep.subr.mxu0 0.0
        %1302 = vmatpush1.xpose.msra.mxu0 0.0
        %1303 = vmatprep.subr.mxu0 0.0
        %1304 = vmatpush1.xpose.msra.mxu0 0.0
        %1305 = vmatprep.subr.mxu0 0.0
        %1306 = vmatpush1.xpose.msra.mxu0 0.0
        %1307 = vmatprep.subr.mxu0 0.0
        %1308 = vmatpush1.xpose.msra.mxu0 0.0
        %1309 = vmatprep.subr.mxu0 0.0
        %1310 = vmatpush1.xpose.msra.mxu0 0.0
        %1311 = vmatprep.subr.mxu0 0.0
        %1312 = vmatpush1.xpose.msra.mxu0 0.0
        %1313 = vmatprep.subr.mxu0 0.0
        %1314 = vmatpush1.xpose.msra.mxu0 0.0
        %1315 = vmatprep.subr.mxu0 0.0
        %1316 = vmatpush1.xpose.msra.mxu0 0.0
        %1317 = vmatprep.subr.mxu0 0.0
        %1318 = vmatpush1.xpose.msra.mxu0 0.0
        %1319 = vmatprep.subr.mxu0 0.0
        %1320 = vmatpush1.xpose.msra.mxu0 0.0
        %1321 = vmatprep.subr.mxu0 0.0
        %1322 = vmatpush1.xpose.msra.mxu0 0.0
        %1323 = vmatprep.subr.mxu0 0.0
        %1324 = vmatpush1.xpose.msra.mxu0 0.0
        %1325 = vmatprep.subr.mxu0 0.0
        %1326 = vmatpush1.xpose.msra.mxu0 %v1295
        %1327 = vmatprep.subr.mxu0 0.0
        %1328 = vmatpush1.xpose.msra.mxu0 %v1292
        %1329 = vmatprep.subr.mxu0 0.0
        %1330 = vmatpush2.xpose.msra.mxu0 0.0
        %1331 = vmatprep.subr.mxu0 0.0
        %1332 = vmatpush2.xpose.msra.mxu0 0.0
        %1333 = vmatprep.subr.mxu0 0.0
        %1334 = vmatpush2.xpose.msra.mxu0 0.0
        %1335 = vmatprep.subr.mxu0 0.0
        %1336 = vmatpush2.xpose.msra.mxu0 0.0
        %1337 = vmatprep.subr.mxu0 0.0
        %1338 = vmatpush2.xpose.msra.mxu0 0.0
        %1339 = vmatprep.subr.mxu0 0.0
        %1340 = vmatpush2.xpose.msra.mxu0 0.0
        %1341 = vmatprep.subr.mxu0 0.0
        %1342 = vmatpush2.xpose.msra.mxu0 0.0
        %1343 = vmatprep.subr.mxu0 0.0
        %1344 = vmatpush2.xpose.msra.mxu0 0.0
        %1345 = vmatprep.subr.mxu0 0.0
        %1346 = vmatpush2.xpose.msra.mxu0 0.0
        %1347 = vmatprep.subr.mxu0 0.0
        %1348 = vmatpush2.xpose.msra.mxu0 0.0
        %1349 = vmatprep.subr.mxu0 0.0
        %1350 = vmatpush2.xpose.msra.mxu0 0.0
        %1351 = vmatprep.subr.mxu0 0.0
        %1352 = vmatpush2.xpose.msra.mxu0 0.0
        %1353 = vmatprep.subr.mxu0 0.0
        %1354 = vmatpush2.xpose.msra.mxu0 0.0
        %1355 = vmatprep.subr.mxu0 0.0
        %1356 = vmatpush2.xpose.msra.mxu0 0.0
        %1357 = vmatprep.subr.mxu0 0.0
        %1358 = vmatpush2.xpose.msra.mxu0 0.0
        %1359 = vmatprep.subr.mxu0 0.0
        %1360 = vmatpush2.xpose.msra.mxu0 0.0
        %1361 = vmatprep.mubr.f32.mxu0 0.0
        %1362 = vmatmul.mubr.f32.gmra.mxu0 %v1289
        %v1363 = vpop.f32.mrf.mxu0
        %v1364 = vadd.f32 0.0, %v1363
        %v1365 = vpop.f32.mrf.mxu0
        %1366 = vdwg.mxu0
        %v1368 = vsel %vm524, %v969, 0
        %v1371 = vsel %vm524, %v690, 0
        %v1374 = vsel %vm524, %v695, 0
        %1376 = vmatprep.subr.mxu0 0.0
        %1377 = vmatpush1.xpose.msra.mxu0 0.0
        %1378 = vmatprep.subr.mxu0 0.0
        %1379 = vmatpush1.xpose.msra.mxu0 0.0
        %1380 = vmatprep.subr.mxu0 0.0
        %1381 = vmatpush1.xpose.msra.mxu0 0.0
        %1382 = vmatprep.subr.mxu0 0.0
        %1383 = vmatpush1.xpose.msra.mxu0 0.0
        %1384 = vmatprep.subr.mxu0 0.0
        %1385 = vmatpush1.xpose.msra.mxu0 0.0
        %1386 = vmatprep.subr.mxu0 0.0
        %1387 = vmatpush1.xpose.msra.mxu0 0.0
        %1388 = vmatprep.subr.mxu0 0.0
        %1389 = vmatpush1.xpose.msra.mxu0 0.0
        %1390 = vmatprep.subr.mxu0 0.0
        %1391 = vmatpush1.xpose.msra.mxu0 0.0
        %1392 = vmatprep.subr.mxu0 0.0
        %1393 = vmatpush1.xpose.msra.mxu0 0.0
        %1394 = vmatprep.subr.mxu0 0.0
        %1395 = vmatpush1.xpose.msra.mxu0 0.0
        %1396 = vmatprep.subr.mxu0 0.0
        %1397 = vmatpush1.xpose.msra.mxu0 0.0
        %1398 = vmatprep.subr.mxu0 0.0
        %1399 = vmatpush1.xpose.msra.mxu0 0.0
        %1400 = vmatprep.subr.mxu0 0.0
        %1401 = vmatpush1.xpose.msra.mxu0 0.0
        %1402 = vmatprep.subr.mxu0 0.0
        %1403 = vmatpush1.xpose.msra.mxu0 0.0
        %1404 = vmatprep.subr.mxu0 0.0
        %1405 = vmatpush1.xpose.msra.mxu0 %v1374
        %1406 = vmatprep.subr.mxu0 0.0
        %1407 = vmatpush1.xpose.msra.mxu0 %v1371
        %1408 = vmatprep.subr.mxu0 0.0
        %1409 = vmatpush2.xpose.msra.mxu0 0.0
        %1410 = vmatprep.subr.mxu0 0.0
        %1411 = vmatpush2.xpose.msra.mxu0 0.0
        %1412 = vmatprep.subr.mxu0 0.0
        %1413 = vmatpush2.xpose.msra.mxu0 0.0
        %1414 = vmatprep.subr.mxu0 0.0
        %1415 = vmatpush2.xpose.msra.mxu0 0.0
        %1416 = vmatprep.subr.mxu0 0.0
        %1417 = vmatpush2.xpose.msra.mxu0 0.0
        %1418 = vmatprep.subr.mxu0 0.0
        %1419 = vmatpush2.xpose.msra.mxu0 0.0
        %1420 = vmatprep.subr.mxu0 0.0
        %1421 = vmatpush2.xpose.msra.mxu0 0.0
        %1422 = vmatprep.subr.mxu0 0.0
        %1423 = vmatpush2.xpose.msra.mxu0 0.0
        %1424 = vmatprep.subr.mxu0 0.0
        %1425 = vmatpush2.xpose.msra.mxu0 0.0
        %1426 = vmatprep.subr.mxu0 0.0
        %1427 = vmatpush2.xpose.msra.mxu0 0.0
        %1428 = vmatprep.subr.mxu0 0.0
        %1429 = vmatpush2.xpose.msra.mxu0 0.0
        %1430 = vmatprep.subr.mxu0 0.0
        %1431 = vmatpush2.xpose.msra.mxu0 0.0
        %1432 = vmatprep.subr.mxu0 0.0
        %1433 = vmatpush2.xpose.msra.mxu0 0.0
        %1434 = vmatprep.subr.mxu0 0.0
        %1435 = vmatpush2.xpose.msra.mxu0 0.0
        %1436 = vmatprep.subr.mxu0 0.0
        %1437 = vmatpush2.xpose.msra.mxu0 0.0
        %1438 = vmatprep.subr.mxu0 0.0
        %1439 = vmatpush2.xpose.msra.mxu0 0.0
        %1440 = vmatprep.mubr.f32.mxu0 0.0
        %1441 = vmatmul.mubr.f32.gmra.mxu0 %v1368
        %v1442 = vpop.f32.mrf.mxu0
        %v1443 = vadd.f32 0.0, %v1442
        %v1444 = vpop.f32.mrf.mxu0
        %1445 = vdwg.mxu0
        %v1447 = vsel %vm524, %v970, 0
        %v1450 = vsel %vm524, %v700, 0
        %v1453 = vsel %vm524, %v705, 0
        %1455 = vmatprep.subr.mxu0 0.0
        %1456 = vmatpush1.xpose.msra.mxu0 0.0
        %1457 = vmatprep.subr.mxu0 0.0
        %1458 = vmatpush1.xpose.msra.mxu0 0.0
        %1459 = vmatprep.subr.mxu0 0.0
        %1460 = vmatpush1.xpose.msra.mxu0 0.0
        %1461 = vmatprep.subr.mxu0 0.0
        %1462 = vmatpush1.xpose.msra.mxu0 0.0
        %1463 = vmatprep.subr.mxu0 0.0
        %1464 = vmatpush1.xpose.msra.mxu0 0.0
        %1465 = vmatprep.subr.mxu0 0.0
        %1466 = vmatpush1.xpose.msra.mxu0 0.0
        %1467 = vmatprep.subr.mxu0 0.0
        %1468 = vmatpush1.xpose.msra.mxu0 0.0
        %1469 = vmatprep.subr.mxu0 0.0
        %1470 = vmatpush1.xpose.msra.mxu0 0.0
        %1471 = vmatprep.subr.mxu0 0.0
        %1472 = vmatpush1.xpose.msra.mxu0 0.0
        %1473 = vmatprep.subr.mxu0 0.0
        %1474 = vmatpush1.xpose.msra.mxu0 0.0
        %1475 = vmatprep.subr.mxu0 0.0
        %1476 = vmatpush1.xpose.msra.mxu0 0.0
        %1477 = vmatprep.subr.mxu0 0.0
        %1478 = vmatpush1.xpose.msra.mxu0 0.0
        %1479 = vmatprep.subr.mxu0 0.0
        %1480 = vmatpush1.xpose.msra.mxu0 0.0
        %1481 = vmatprep.subr.mxu0 0.0
        %1482 = vmatpush1.xpose.msra.mxu0 0.0
        %1483 = vmatprep.subr.mxu0 0.0
        %1484 = vmatpush1.xpose.msra.mxu0 %v1453
        %1485 = vmatprep.subr.mxu0 0.0
        %1486 = vmatpush1.xpose.msra.mxu0 %v1450
        %1487 = vmatprep.subr.mxu0 0.0
        %1488 = vmatpush2.xpose.msra.mxu0 0.0
        %1489 = vmatprep.subr.mxu0 0.0
        %1490 = vmatpush2.xpose.msra.mxu0 0.0
        %1491 = vmatprep.subr.mxu0 0.0
        %1492 = vmatpush2.xpose.msra.mxu0 0.0
        %1493 = vmatprep.subr.mxu0 0.0
        %1494 = vmatpush2.xpose.msra.mxu0 0.0
        %1495 = vmatprep.subr.mxu0 0.0
        %1496 = vmatpush2.xpose.msra.mxu0 0.0
        %1497 = vmatprep.subr.mxu0 0.0
        %1498 = vmatpush2.xpose.msra.mxu0 0.0
        %1499 = vmatprep.subr.mxu0 0.0
        %1500 = vmatpush2.xpose.msra.mxu0 0.0
        %1501 = vmatprep.subr.mxu0 0.0
        %1502 = vmatpush2.xpose.msra.mxu0 0.0
        %1503 = vmatprep.subr.mxu0 0.0
        %1504 = vmatpush2.xpose.msra.mxu0 0.0
        %1505 = vmatprep.subr.mxu0 0.0
        %1506 = vmatpush2.xpose.msra.mxu0 0.0
        %1507 = vmatprep.subr.mxu0 0.0
        %1508 = vmatpush2.xpose.msra.mxu0 0.0
        %1509 = vmatprep.subr.mxu0 0.0
        %1510 = vmatpush2.xpose.msra.mxu0 0.0
        %1511 = vmatprep.subr.mxu0 0.0
        %1512 = vmatpush2.xpose.msra.mxu0 0.0
        %1513 = vmatprep.subr.mxu0 0.0
        %1514 = vmatpush2.xpose.msra.mxu0 0.0
        %1515 = vmatprep.subr.mxu0 0.0
        %1516 = vmatpush2.xpose.msra.mxu0 0.0
        %1517 = vmatprep.subr.mxu0 0.0
        %1518 = vmatpush2.xpose.msra.mxu0 0.0
        %1519 = vmatprep.mubr.f32.mxu0 0.0
        %1520 = vmatmul.mubr.f32.gmra.mxu0 %v1447
        %v1521 = vpop.f32.mrf.mxu0
        %v1522 = vadd.f32 0.0, %v1521
        %v1523 = vpop.f32.mrf.mxu0
        %1524 = vdwg.mxu0
        %v1526 = vsel %vm524, %v971, 0
        %v1529 = vsel %vm524, %v710, 0
        %v1532 = vsel %vm524, %v715, 0
        %1534 = vmatprep.subr.mxu0 0.0
        %1535 = vmatpush1.xpose.msra.mxu0 0.0
        %1536 = vmatprep.subr.mxu0 0.0
        %1537 = vmatpush1.xpose.msra.mxu0 0.0
        %1538 = vmatprep.subr.mxu0 0.0
        %1539 = vmatpush1.xpose.msra.mxu0 0.0
        %1540 = vmatprep.subr.mxu0 0.0
        %1541 = vmatpush1.xpose.msra.mxu0 0.0
        %1542 = vmatprep.subr.mxu0 0.0
        %1543 = vmatpush1.xpose.msra.mxu0 0.0
        %1544 = vmatprep.subr.mxu0 0.0
        %1545 = vmatpush1.xpose.msra.mxu0 0.0
        %1546 = vmatprep.subr.mxu0 0.0
        %1547 = vmatpush1.xpose.msra.mxu0 0.0
        %1548 = vmatprep.subr.mxu0 0.0
        %1549 = vmatpush1.xpose.msra.mxu0 0.0
        %1550 = vmatprep.subr.mxu0 0.0
        %1551 = vmatpush1.xpose.msra.mxu0 0.0
        %1552 = vmatprep.subr.mxu0 0.0
        %1553 = vmatpush1.xpose.msra.mxu0 0.0
        %1554 = vmatprep.subr.mxu0 0.0
        %1555 = vmatpush1.xpose.msra.mxu0 0.0
        %1556 = vmatprep.subr.mxu0 0.0
        %1557 = vmatpush1.xpose.msra.mxu0 0.0
        %1558 = vmatprep.subr.mxu0 0.0
        %1559 = vmatpush1.xpose.msra.mxu0 0.0
        %1560 = vmatprep.subr.mxu0 0.0
        %1561 = vmatpush1.xpose.msra.mxu0 0.0
        %1562 = vmatprep.subr.mxu0 0.0
        %1563 = vmatpush1.xpose.msra.mxu0 %v1532
        %1564 = vmatprep.subr.mxu0 0.0
        %1565 = vmatpush1.xpose.msra.mxu0 %v1529
        %1566 = vmatprep.subr.mxu0 0.0
        %1567 = vmatpush2.xpose.msra.mxu0 0.0
        %1568 = vmatprep.subr.mxu0 0.0
        %1569 = vmatpush2.xpose.msra.mxu0 0.0
        %1570 = vmatprep.subr.mxu0 0.0
        %1571 = vmatpush2.xpose.msra.mxu0 0.0
        %1572 = vmatprep.subr.mxu0 0.0
        %1573 = vmatpush2.xpose.msra.mxu0 0.0
        %1574 = vmatprep.subr.mxu0 0.0
        %1575 = vmatpush2.xpose.msra.mxu0 0.0
        %1576 = vmatprep.subr.mxu0 0.0
        %1577 = vmatpush2.xpose.msra.mxu0 0.0
        %1578 = vmatprep.subr.mxu0 0.0
        %1579 = vmatpush2.xpose.msra.mxu0 0.0
        %1580 = vmatprep.subr.mxu0 0.0
        %1581 = vmatpush2.xpose.msra.mxu0 0.0
        %1582 = vmatprep.subr.mxu0 0.0
        %1583 = vmatpush2.xpose.msra.mxu0 0.0
        %1584 = vmatprep.subr.mxu0 0.0
        %1585 = vmatpush2.xpose.msra.mxu0 0.0
        %1586 = vmatprep.subr.mxu0 0.0
        %1587 = vmatpush2.xpose.msra.mxu0 0.0
        %1588 = vmatprep.subr.mxu0 0.0
        %1589 = vmatpush2.xpose.msra.mxu0 0.0
        %1590 = vmatprep.subr.mxu0 0.0
        %1591 = vmatpush2.xpose.msra.mxu0 0.0
        %1592 = vmatprep.subr.mxu0 0.0
        %1593 = vmatpush2.xpose.msra.mxu0 0.0
        %1594 = vmatprep.subr.mxu0 0.0
        %1595 = vmatpush2.xpose.msra.mxu0 0.0
        %1596 = vmatprep.subr.mxu0 0.0
        %1597 = vmatpush2.xpose.msra.mxu0 0.0
        %1598 = vmatprep.mubr.f32.mxu0 0.0
        %1599 = vmatmul.mubr.f32.gmra.mxu0 %v1526
        %v1600 = vpop.f32.mrf.mxu0
        %v1601 = vadd.f32 0.0, %v1600
        %v1602 = vpop.f32.mrf.mxu0
        %1603 = vdwg.mxu0
        %v1605 = vcombine.high %v870, %v870
        %v1607 = vunpack.c.l.s4 1966171168
        %v1608 = vunpack.c.0.s8 %v1607
        %v1609 = vlaneseq
        %v1610 = vshrl.u32 %v1609, 7
        %v1611 = vsub.s32 %v1608, %v1610
        %v1612 = vrot.slane %v870, %v1611
        %v1614 = vunpack.c.l.s4 1966171168
        %v1615 = vunpack.c.0.s8 %v1614
        %v1616 = vlaneseq
        %v1617 = vshrl.u32 %v1616, 7
        %v1618 = vsub.s32 %v1615, %v1617
        %v1619 = vrot.slane %v1605, %v1618
        %v1620 = vcombine.high %v1612, %v1612
        %v1621 = vcombine.high %v1619, %v1619
        %v1623 = vunpack.c.l.s4 1966171168
        %v1624 = vunpack.c.0.s8 %v1623
        %v1625 = vlaneseq
        %v1626 = vshrl.u32 %v1625, 7
        %v1627 = vsub.s32 %v1624, %v1626
        %v1628 = vrot.slane %v1612, %v1627
        %v1630 = vunpack.c.l.s4 1966171168
        %v1631 = vunpack.c.0.s8 %v1630
        %v1632 = vlaneseq
        %v1633 = vshrl.u32 %v1632, 7
        %v1634 = vsub.s32 %v1631, %v1633
        %v1635 = vrot.slane %v1619, %v1634
        %v1637 = vunpack.c.l.s4 1966171168
        %v1638 = vunpack.c.0.s8 %v1637
        %v1639 = vlaneseq
        %v1640 = vshrl.u32 %v1639, 7
        %v1641 = vsub.s32 %v1638, %v1640
        %v1642 = vrot.slane %v1620, %v1641
        %v1644 = vunpack.c.l.s4 1966171168
        %v1645 = vunpack.c.0.s8 %v1644
        %v1646 = vlaneseq
        %v1647 = vshrl.u32 %v1646, 7
        %v1648 = vsub.s32 %v1645, %v1647
        %v1649 = vrot.slane %v1621, %v1648
        %v1650 = vcombine.high %v1628, %v1628
        %v1651 = vcombine.high %v1635, %v1635
        %v1652 = vcombine.high %v1642, %v1642
        %v1653 = vcombine.high %v1649, %v1649
        %v1654 = vlaneseq
        %v1655 = vshrl.u32 %v1654, 7
        %v1656 = vsub.s32 0, %v1655
        %v1657 = vrot.slane %v1628, %v1656
        %v1658 = vlaneseq
        %v1659 = vshrl.u32 %v1658, 7
        %v1660 = vsub.s32 0, %v1659
        %v1661 = vrot.slane %v1642, %v1660
        %v1662 = vlaneseq
        %v1663 = vshrl.u32 %v1662, 7
        %v1664 = vsub.s32 0, %v1663
        %v1665 = vrot.slane %v1650, %v1664
        %v1666 = vlaneseq
        %v1667 = vshrl.u32 %v1666, 7
        %v1668 = vsub.s32 0, %v1667
        %v1669 = vrot.slane %v1652, %v1668
        %v1670 = vlaneseq
        %v1671 = vshrl.u32 %v1670, 7
        %v1672 = vsub.s32 0, %v1671
        %v1673 = vrot.slane %v1635, %v1672
        %v1674 = vlaneseq
        %v1675 = vshrl.u32 %v1674, 7
        %v1676 = vsub.s32 0, %v1675
        %v1677 = vrot.slane %v1649, %v1676
        %v1678 = vlaneseq
        %v1679 = vshrl.u32 %v1678, 7
        %v1680 = vsub.s32 0, %v1679
        %v1681 = vrot.slane %v1651, %v1680
        %v1682 = vlaneseq
        %v1683 = vshrl.u32 %v1682, 7
        %v1684 = vsub.s32 0, %v1683
        %v1685 = vrot.slane %v1653, %v1684
        %v1694 = vmul.f32 %v964, %v1657
        %v1695 = vmul.f32 %v965, %v1661
        %v1696 = vmul.f32 %v966, %v1665
        %v1697 = vmul.f32 %v967, %v1669
        %v1698 = vmul.f32 %v968, %v1673
        %v1699 = vmul.f32 %v969, %v1677
        %v1700 = vmul.f32 %v970, %v1681
        %v1701 = vmul.f32 %v971, %v1685
        %vm1702 = vcmask 257024
        %v1703 = vsel %vm1702, %v1694, 0.0
        %1704 = vadd.xlane.f32.xlu0 %v1703
        %v1705 = vpop.xlane.xlu0 %1704
        %v1706 = vsel %vm1702, %v1695, 0.0
        %1707 = vadd.xlane.f32.xlu0 %v1706
        %v1708 = vpop.xlane.xlu0 %1707
        %v1709 = vsel %vm1702, %v1696, 0.0
        %1710 = vadd.xlane.f32.xlu0 %v1709
        %v1711 = vpop.xlane.xlu0 %1710
        %v1712 = vsel %vm1702, %v1697, 0.0
        %1713 = vadd.xlane.f32.xlu0 %v1712
        %v1714 = vpop.xlane.xlu0 %1713
        %v1715 = vsel %vm1702, %v1698, 0.0
        %1716 = vadd.xlane.f32.xlu0 %v1715
        %v1717 = vpop.xlane.xlu0 %1716
        %v1718 = vsel %vm1702, %v1699, 0.0
        %1719 = vadd.xlane.f32.xlu0 %v1718
        %v1720 = vpop.xlane.xlu0 %1719
        %v1721 = vsel %vm1702, %v1700, 0.0
        %1722 = vadd.xlane.f32.xlu0 %v1721
        %v1723 = vpop.xlane.xlu0 %1722
        %v1724 = vsel %vm1702, %v1701, 0.0
        %1725 = vadd.xlane.f32.xlu0 %v1724
        %v1726 = vpop.xlane.xlu0 %1725
        %vm1727 = vcmask 125952
        %v1728 = vsel %vm1727, %v1048, -inf
        %1729 = vmax.xlane.f32.xlu0 %v1728
        %v1730 = vpop.xlane.xlu0 %1729
        %v1731 = vsel %vm1727, %v1127, -inf
        %1732 = vmax.xlane.f32.xlu0 %v1731
        %v1733 = vpop.xlane.xlu0 %1732
        %v1734 = vsel %vm1727, %v1206, -inf
        %1735 = vmax.xlane.f32.xlu0 %v1734
        %v1736 = vpop.xlane.xlu0 %1735
        %v1737 = vsel %vm1727, %v1285, -inf
        %1738 = vmax.xlane.f32.xlu0 %v1737
        %v1739 = vpop.xlane.xlu0 %1738
        %v1740 = vsel %vm1727, %v1364, -inf
        %1741 = vmax.xlane.f32.xlu0 %v1740
        %v1742 = vpop.xlane.xlu0 %1741
        %v1743 = vsel %vm1727, %v1443, -inf
        %1744 = vmax.xlane.f32.xlu0 %v1743
        %v1745 = vpop.xlane.xlu0 %1744
        %v1746 = vsel %vm1727, %v1522, -inf
        %1747 = vmax.xlane.f32.xlu0 %v1746
        %v1748 = vpop.xlane.xlu0 %1747
        %v1749 = vsel %vm1727, %v1601, -inf
        %1750 = vmax.xlane.f32.xlu0 %v1749
        %v1751 = vpop.xlane.xlu0 %1750
        %v1752 = vmax.f32 %v1730, %v1705
        %v1753 = vmax.f32 %v1733, %v1708
        %v1754 = vmax.f32 %v1736, %v1711
        %v1755 = vmax.f32 %v1739, %v1714
        %v1756 = vmax.f32 %v1742, %v1717
        %v1757 = vmax.f32 %v1745, %v1720
        %v1758 = vmax.f32 %v1748, %v1723
        %v1759 = vmax.f32 %v1751, %v1726
        %v1760 = vsub.f32 %v1048, %v1752
        %v1761 = vsub.f32 %v1127, %v1753
        %v1762 = vsub.f32 %v1206, %v1754
        %v1763 = vsub.f32 %v1285, %v1755
        %v1764 = vsub.f32 %v1364, %v1756
        %v1765 = vsub.f32 %v1443, %v1757
        %v1766 = vsub.f32 %v1522, %v1758
        %v1767 = vsub.f32 %v1601, %v1759
        %v1768 = vmul.f32 %v1760, 1.442695
        %v1769 = vpow.pop %v1768
        %v1770 = vmul.f32 %v1761, 1.442695
        %v1771 = vpow.pop %v1770
        %v1772 = vmul.f32 %v1762, 1.442695
        %v1773 = vpow.pop %v1772
        %v1774 = vmul.f32 %v1763, 1.442695
        %v1775 = vpow.pop %v1774
        %v1776 = vmul.f32 %v1764, 1.442695
        %v1777 = vpow.pop %v1776
        %v1778 = vmul.f32 %v1765, 1.442695
        %v1779 = vpow.pop %v1778
        %v1780 = vmul.f32 %v1766, 1.442695
        %v1781 = vpow.pop %v1780
        %v1782 = vmul.f32 %v1767, 1.442695
        %v1783 = vpow.pop %v1782
        %v1784 = vsub.f32 %v1705, %v1752
        %v1785 = vsub.f32 %v1708, %v1753
        %v1786 = vsub.f32 %v1711, %v1754
        %v1787 = vsub.f32 %v1714, %v1755
        %v1788 = vsub.f32 %v1717, %v1756
        %v1789 = vsub.f32 %v1720, %v1757
        %v1790 = vsub.f32 %v1723, %v1758
        %v1791 = vsub.f32 %v1726, %v1759
        %v1792 = vmul.f32 %v1784, 1.442695
        %v1793 = vpow.pop %v1792
        %v1794 = vmul.f32 %v1785, 1.442695
        %v1795 = vpow.pop %v1794
        %v1796 = vmul.f32 %v1786, 1.442695
        %v1797 = vpow.pop %v1796
        %v1798 = vmul.f32 %v1787, 1.442695
        %v1799 = vpow.pop %v1798
        %v1800 = vmul.f32 %v1788, 1.442695
        %v1801 = vpow.pop %v1800
        %v1802 = vmul.f32 %v1789, 1.442695
        %v1803 = vpow.pop %v1802
        %v1804 = vmul.f32 %v1790, 1.442695
        %v1805 = vpow.pop %v1804
        %v1806 = vmul.f32 %v1791, 1.442695
        %v1807 = vpow.pop %v1806
        %v1808 = vsel %vm1727, %v1769, 0.0
        %1809 = vadd.xlane.f32.xlu0 %v1808
        %v1810 = vpop.xlane.xlu0 %1809
        %v1811 = vsel %vm1727, %v1771, 0.0
        %1812 = vadd.xlane.f32.xlu0 %v1811
        %v1813 = vpop.xlane.xlu0 %1812
        %v1814 = vsel %vm1727, %v1773, 0.0
        %1815 = vadd.xlane.f32.xlu0 %v1814
        %v1816 = vpop.xlane.xlu0 %1815
        %v1817 = vsel %vm1727, %v1775, 0.0
        %1818 = vadd.xlane.f32.xlu0 %v1817
        %v1819 = vpop.xlane.xlu0 %1818
        %v1820 = vsel %vm1727, %v1777, 0.0
        %1821 = vadd.xlane.f32.xlu0 %v1820
        %v1822 = vpop.xlane.xlu0 %1821
        %v1823 = vsel %vm1727, %v1779, 0.0
        %1824 = vadd.xlane.f32.xlu0 %v1823
        %v1825 = vpop.xlane.xlu0 %1824
        %v1826 = vsel %vm1727, %v1781, 0.0
        %1827 = vadd.xlane.f32.xlu0 %v1826
        %v1828 = vpop.xlane.xlu0 %1827
        %v1829 = vsel %vm1727, %v1783, 0.0
        %1830 = vadd.xlane.f32.xlu0 %v1829
        %v1831 = vpop.xlane.xlu0 %1830
        %v1832 = vadd.f32 %v1810, %v1793
        %v1833 = vadd.f32 %v1813, %v1795
        %v1834 = vadd.f32 %v1816, %v1797
        %v1835 = vadd.f32 %v1819, %v1799
        %v1836 = vadd.f32 %v1822, %v1801
        %v1837 = vadd.f32 %v1825, %v1803
        %v1838 = vadd.f32 %v1828, %v1805
        %v1839 = vadd.f32 %v1831, %v1807
        %v1840 = vrcp.pop %v1832
        %v1841 = vmul.f32 1.0, %v1840
        %v1842 = vrcp.pop %v1833
        %v1843 = vmul.f32 1.0, %v1842
        %v1844 = vrcp.pop %v1834
        %v1845 = vmul.f32 1.0, %v1844
        %v1846 = vrcp.pop %v1835
        %v1847 = vmul.f32 1.0, %v1846
        %v1848 = vrcp.pop %v1836
        %v1849 = vmul.f32 1.0, %v1848
        %v1850 = vrcp.pop %v1837
        %v1851 = vmul.f32 1.0, %v1850
        %v1852 = vrcp.pop %v1838
        %v1853 = vmul.f32 1.0, %v1852
        %v1854 = vrcp.pop %v1839
        %v1855 = vmul.f32 1.0, %v1854
        %v1856 = vmul.f32 %v1769, %v1841
        %v1857 = vmul.f32 %v1771, %v1843
        %v1858 = vmul.f32 %v1773, %v1845
        %v1859 = vmul.f32 %v1775, %v1847
        %v1860 = vmul.f32 %v1777, %v1849
        %v1861 = vmul.f32 %v1779, %v1851
        %v1862 = vmul.f32 %v1781, %v1853
        %v1863 = vmul.f32 %v1783, %v1855
        %v1864 = vmul.f32 %v1793, %v1841
        %v1865 = vmul.f32 %v1795, %v1843
        %v1866 = vmul.f32 %v1797, %v1845
        %v1867 = vmul.f32 %v1799, %v1847
        %v1868 = vmul.f32 %v1801, %v1849
        %v1869 = vmul.f32 %v1803, %v1851
        %v1870 = vmul.f32 %v1805, %v1853
        %v1871 = vmul.f32 %v1807, %v1855
        %v1872 = vmul.f32 %v1864, %v1657
        %v1873 = vmul.f32 %v1865, %v1661
        %v1874 = vmul.f32 %v1866, %v1665
        %v1875 = vmul.f32 %v1867, %v1669
        %v1876 = vmul.f32 %v1868, %v1673
        %v1877 = vmul.f32 %v1869, %v1677
        %v1878 = vmul.f32 %v1870, %v1681
        %v1879 = vmul.f32 %v1871, %v1685
        %1880 = vrot.lane.b32.xlu0 %v640, 96
        %v1881 = vpop.permute.xlu0 %1880
        %1882 = vrot.lane.b32.xlu0 %v645, 96
        %v1883 = vpop.permute.xlu0 %1882
        %1887 = vrot.lane.b32.xlu0 %v1872, 96
        %v1888 = vpop.permute.xlu0 %1887
        %vm1890 = vcmask 130048
        %v1892 = vsel %vm1890, %v1856, 0
        %1894 = vmatprep.subr.mxu0 0.0
        %1895 = vmatpush1.msra.mxu0 0.0
        %1896 = vmatprep.subr.mxu0 0.0
        %1897 = vmatpush1.msra.mxu0 0.0
        %1898 = vmatprep.subr.mxu0 0.0
        %1899 = vmatpush1.msra.mxu0 0.0
        %1900 = vmatprep.subr.mxu0 0.0
        %1901 = vmatpush1.msra.mxu0 0.0
        %1902 = vmatprep.subr.mxu0 0.0
        %1903 = vmatpush1.msra.mxu0 0.0
        %1904 = vmatprep.subr.mxu0 0.0
        %1905 = vmatpush1.msra.mxu0 0.0
        %1906 = vmatprep.subr.mxu0 0.0
        %1907 = vmatpush1.msra.mxu0 0.0
        %1908 = vmatprep.subr.mxu0 0.0
        %1909 = vmatpush1.msra.mxu0 0.0
        %1910 = vmatprep.subr.mxu0 0.0
        %1911 = vmatpush1.msra.mxu0 0.0
        %1912 = vmatprep.subr.mxu0 0.0
        %1913 = vmatpush1.msra.mxu0 0.0
        %1914 = vmatprep.subr.mxu0 0.0
        %1915 = vmatpush1.msra.mxu0 0.0
        %1916 = vmatprep.subr.mxu0 0.0
        %1917 = vmatpush1.msra.mxu0 0.0
        %1918 = vmatprep.subr.mxu0 0.0
        %1919 = vmatpush1.msra.mxu0 0.0
        %1920 = vmatprep.subr.mxu0 0.0
        %1921 = vmatpush1.msra.mxu0 0.0
        %1922 = vmatprep.subr.mxu0 0.0
        %1923 = vmatpush1.msra.mxu0 %v1883
        %1924 = vmatprep.subr.mxu0 0.0
        %1925 = vmatpush1.msra.mxu0 %v1881
        %1926 = vmatprep.subr.mxu0 0.0
        %1927 = vmatpush2.msra.mxu0 0.0
        %1928 = vmatprep.subr.mxu0 0.0
        %1929 = vmatpush2.msra.mxu0 0.0
        %1930 = vmatprep.subr.mxu0 0.0
        %1931 = vmatpush2.msra.mxu0 0.0
        %1932 = vmatprep.subr.mxu0 0.0
        %1933 = vmatpush2.msra.mxu0 0.0
        %1934 = vmatprep.subr.mxu0 0.0
        %1935 = vmatpush2.msra.mxu0 0.0
        %1936 = vmatprep.subr.mxu0 0.0
        %1937 = vmatpush2.msra.mxu0 0.0
        %1938 = vmatprep.subr.mxu0 0.0
        %1939 = vmatpush2.msra.mxu0 0.0
        %1940 = vmatprep.subr.mxu0 0.0
        %1941 = vmatpush2.msra.mxu0 0.0
        %1942 = vmatprep.subr.mxu0 0.0
        %1943 = vmatpush2.msra.mxu0 0.0
        %1944 = vmatprep.subr.mxu0 0.0
        %1945 = vmatpush2.msra.mxu0 0.0
        %1946 = vmatprep.subr.mxu0 0.0
        %1947 = vmatpush2.msra.mxu0 0.0
        %1948 = vmatprep.subr.mxu0 0.0
        %1949 = vmatpush2.msra.mxu0 0.0
        %1950 = vmatprep.subr.mxu0 0.0
        %1951 = vmatpush2.msra.mxu0 0.0
        %1952 = vmatprep.subr.mxu0 0.0
        %1953 = vmatpush2.msra.mxu0 0.0
        %1954 = vmatprep.subr.mxu0 0.0
        %1955 = vmatpush2.msra.mxu0 0.0
        %1956 = vmatprep.subr.mxu0 0.0
        %1957 = vmatpush2.msra.mxu0 0.0
        %1958 = vmatprep.mubr.f32.mxu0 0.0
        %1959 = vmatmul.mubr.f32.gmra.mxu0 %v1892
        %v1960 = vpop.f32.mrf.mxu0
        %v1961 = vadd.f32 %v1888, %v1960
        %v1962 = vpop.f32.mrf.mxu0
        %1963 = vdwg.mxu0
        %1964 = vrot.lane.b32.xlu0 %v650, 96
        %v1965 = vpop.permute.xlu0 %1964
        %1966 = vrot.lane.b32.xlu0 %v655, 96
        %v1967 = vpop.permute.xlu0 %1966
        %1971 = vrot.lane.b32.xlu0 %v1873, 96
        %v1972 = vpop.permute.xlu0 %1971
        %v1975 = vsel %vm1890, %v1857, 0
        %1977 = vmatprep.subr.mxu0 0.0
        %1978 = vmatpush1.msra.mxu0 0.0
        %1979 = vmatprep.subr.mxu0 0.0
        %1980 = vmatpush1.msra.mxu0 0.0
        %1981 = vmatprep.subr.mxu0 0.0
        %1982 = vmatpush1.msra.mxu0 0.0
        %1983 = vmatprep.subr.mxu0 0.0
        %1984 = vmatpush1.msra.mxu0 0.0
        %1985 = vmatprep.subr.mxu0 0.0
        %1986 = vmatpush1.msra.mxu0 0.0
        %1987 = vmatprep.subr.mxu0 0.0
        %1988 = vmatpush1.msra.mxu0 0.0
        %1989 = vmatprep.subr.mxu0 0.0
        %1990 = vmatpush1.msra.mxu0 0.0
        %1991 = vmatprep.subr.mxu0 0.0
        %1992 = vmatpush1.msra.mxu0 0.0
        %1993 = vmatprep.subr.mxu0 0.0
        %1994 = vmatpush1.msra.mxu0 0.0
        %1995 = vmatprep.subr.mxu0 0.0
        %1996 = vmatpush1.msra.mxu0 0.0
        %1997 = vmatprep.subr.mxu0 0.0
        %1998 = vmatpush1.msra.mxu0 0.0
        %1999 = vmatprep.subr.mxu0 0.0
        %2000 = vmatpush1.msra.mxu0 0.0
        %2001 = vmatprep.subr.mxu0 0.0
        %2002 = vmatpush1.msra.mxu0 0.0
        %2003 = vmatprep.subr.mxu0 0.0
        %2004 = vmatpush1.msra.mxu0 0.0
        %2005 = vmatprep.subr.mxu0 0.0
        %2006 = vmatpush1.msra.mxu0 %v1967
        %2007 = vmatprep.subr.mxu0 0.0
        %2008 = vmatpush1.msra.mxu0 %v1965
        %2009 = vmatprep.subr.mxu0 0.0
        %2010 = vmatpush2.msra.mxu0 0.0
        %2011 = vmatprep.subr.mxu0 0.0
        %2012 = vmatpush2.msra.mxu0 0.0
        %2013 = vmatprep.subr.mxu0 0.0
        %2014 = vmatpush2.msra.mxu0 0.0
        %2015 = vmatprep.subr.mxu0 0.0
        %2016 = vmatpush2.msra.mxu0 0.0
        %2017 = vmatprep.subr.mxu0 0.0
        %2018 = vmatpush2.msra.mxu0 0.0
        %2019 = vmatprep.subr.mxu0 0.0
        %2020 = vmatpush2.msra.mxu0 0.0
        %2021 = vmatprep.subr.mxu0 0.0
        %2022 = vmatpush2.msra.mxu0 0.0
        %2023 = vmatprep.subr.mxu0 0.0
        %2024 = vmatpush2.msra.mxu0 0.0
        %2025 = vmatprep.subr.mxu0 0.0
        %2026 = vmatpush2.msra.mxu0 0.0
        %2027 = vmatprep.subr.mxu0 0.0
        %2028 = vmatpush2.msra.mxu0 0.0
        %2029 = vmatprep.subr.mxu0 0.0
        %2030 = vmatpush2.msra.mxu0 0.0
        %2031 = vmatprep.subr.mxu0 0.0
        %2032 = vmatpush2.msra.mxu0 0.0
        %2033 = vmatprep.subr.mxu0 0.0
        %2034 = vmatpush2.msra.mxu0 0.0
        %2035 = vmatprep.subr.mxu0 0.0
        %2036 = vmatpush2.msra.mxu0 0.0
        %2037 = vmatprep.subr.mxu0 0.0
        %2038 = vmatpush2.msra.mxu0 0.0
        %2039 = vmatprep.subr.mxu0 0.0
        %2040 = vmatpush2.msra.mxu0 0.0
        %2041 = vmatprep.mubr.f32.mxu0 0.0
        %2042 = vmatmul.mubr.f32.gmra.mxu0 %v1975
        %v2043 = vpop.f32.mrf.mxu0
        %v2044 = vadd.f32 %v1972, %v2043
        %v2045 = vpop.f32.mrf.mxu0
        %2046 = vdwg.mxu0
        %2047 = vrot.lane.b32.xlu0 %v660, 96
        %v2048 = vpop.permute.xlu0 %2047
        %2049 = vrot.lane.b32.xlu0 %v665, 96
        %v2050 = vpop.permute.xlu0 %2049
        %2054 = vrot.lane.b32.xlu0 %v1874, 96
        %v2055 = vpop.permute.xlu0 %2054
        %v2058 = vsel %vm1890, %v1858, 0
        %2060 = vmatprep.subr.mxu0 0.0
        %2061 = vmatpush1.msra.mxu0 0.0
        %2062 = vmatprep.subr.mxu0 0.0
        %2063 = vmatpush1.msra.mxu0 0.0
        %2064 = vmatprep.subr.mxu0 0.0
        %2065 = vmatpush1.msra.mxu0 0.0
        %2066 = vmatprep.subr.mxu0 0.0
        %2067 = vmatpush1.msra.mxu0 0.0
        %2068 = vmatprep.subr.mxu0 0.0
        %2069 = vmatpush1.msra.mxu0 0.0
        %2070 = vmatprep.subr.mxu0 0.0
        %2071 = vmatpush1.msra.mxu0 0.0
        %2072 = vmatprep.subr.mxu0 0.0
        %2073 = vmatpush1.msra.mxu0 0.0
        %2074 = vmatprep.subr.mxu0 0.0
        %2075 = vmatpush1.msra.mxu0 0.0
        %2076 = vmatprep.subr.mxu0 0.0
        %2077 = vmatpush1.msra.mxu0 0.0
        %2078 = vmatprep.subr.mxu0 0.0
        %2079 = vmatpush1.msra.mxu0 0.0
        %2080 = vmatprep.subr.mxu0 0.0
        %2081 = vmatpush1.msra.mxu0 0.0
        %2082 = vmatprep.subr.mxu0 0.0
        %2083 = vmatpush1.msra.mxu0 0.0
        %2084 = vmatprep.subr.mxu0 0.0
        %2085 = vmatpush1.msra.mxu0 0.0
        %2086 = vmatprep.subr.mxu0 0.0
        %2087 = vmatpush1.msra.mxu0 0.0
        %2088 = vmatprep.subr.mxu0 0.0
        %2089 = vmatpush1.msra.mxu0 %v2050
        %2090 = vmatprep.subr.mxu0 0.0
        %2091 = vmatpush1.msra.mxu0 %v2048
        %2092 = vmatprep.subr.mxu0 0.0
        %2093 = vmatpush2.msra.mxu0 0.0
        %2094 = vmatprep.subr.mxu0 0.0
        %2095 = vmatpush2.msra.mxu0 0.0
        %2096 = vmatprep.subr.mxu0 0.0
        %2097 = vmatpush2.msra.mxu0 0.0
        %2098 = vmatprep.subr.mxu0 0.0
        %2099 = vmatpush2.msra.mxu0 0.0
        %2100 = vmatprep.subr.mxu0 0.0
        %2101 = vmatpush2.msra.mxu0 0.0
        %2102 = vmatprep.subr.mxu0 0.0
        %2103 = vmatpush2.msra.mxu0 0.0
        %2104 = vmatprep.subr.mxu0 0.0
        %2105 = vmatpush2.msra.mxu0 0.0
        %2106 = vmatprep.subr.mxu0 0.0
        %2107 = vmatpush2.msra.mxu0 0.0
        %2108 = vmatprep.subr.mxu0 0.0
        %2109 = vmatpush2.msra.mxu0 0.0
        %2110 = vmatprep.subr.mxu0 0.0
        %2111 = vmatpush2.msra.mxu0 0.0
        %2112 = vmatprep.subr.mxu0 0.0
        %2113 = vmatpush2.msra.mxu0 0.0
        %2114 = vmatprep.subr.mxu0 0.0
        %2115 = vmatpush2.msra.mxu0 0.0
        %2116 = vmatprep.subr.mxu0 0.0
        %2117 = vmatpush2.msra.mxu0 0.0
        %2118 = vmatprep.subr.mxu0 0.0
        %2119 = vmatpush2.msra.mxu0 0.0
        %2120 = vmatprep.subr.mxu0 0.0
        %2121 = vmatpush2.msra.mxu0 0.0
        %2122 = vmatprep.subr.mxu0 0.0
        %2123 = vmatpush2.msra.mxu0 0.0
        %2124 = vmatprep.mubr.f32.mxu0 0.0
        %2125 = vmatmul.mubr.f32.gmra.mxu0 %v2058
        %v2126 = vpop.f32.mrf.mxu0
        %v2127 = vadd.f32 %v2055, %v2126
        %v2128 = vpop.f32.mrf.mxu0
        %2129 = vdwg.mxu0
        %2130 = vrot.lane.b32.xlu0 %v670, 96
        %v2131 = vpop.permute.xlu0 %2130
        %2132 = vrot.lane.b32.xlu0 %v675, 96
        %v2133 = vpop.permute.xlu0 %2132
        %2137 = vrot.lane.b32.xlu0 %v1875, 96
        %v2138 = vpop.permute.xlu0 %2137
        %v2141 = vsel %vm1890, %v1859, 0
        %2143 = vmatprep.subr.mxu0 0.0
        %2144 = vmatpush1.msra.mxu0 0.0
        %2145 = vmatprep.subr.mxu0 0.0
        %2146 = vmatpush1.msra.mxu0 0.0
        %2147 = vmatprep.subr.mxu0 0.0
        %2148 = vmatpush1.msra.mxu0 0.0
        %2149 = vmatprep.subr.mxu0 0.0
        %2150 = vmatpush1.msra.mxu0 0.0
        %2151 = vmatprep.subr.mxu0 0.0
        %2152 = vmatpush1.msra.mxu0 0.0
        %2153 = vmatprep.subr.mxu0 0.0
        %2154 = vmatpush1.msra.mxu0 0.0
        %2155 = vmatprep.subr.mxu0 0.0
        %2156 = vmatpush1.msra.mxu0 0.0
        %2157 = vmatprep.subr.mxu0 0.0
        %2158 = vmatpush1.msra.mxu0 0.0
        %2159 = vmatprep.subr.mxu0 0.0
        %2160 = vmatpush1.msra.mxu0 0.0
        %2161 = vmatprep.subr.mxu0 0.0
        %2162 = vmatpush1.msra.mxu0 0.0
        %2163 = vmatprep.subr.mxu0 0.0
        %2164 = vmatpush1.msra.mxu0 0.0
        %2165 = vmatprep.subr.mxu0 0.0
        %2166 = vmatpush1.msra.mxu0 0.0
        %2167 = vmatprep.subr.mxu0 0.0
        %2168 = vmatpush1.msra.mxu0 0.0
        %2169 = vmatprep.subr.mxu0 0.0
        %2170 = vmatpush1.msra.mxu0 0.0
        %2171 = vmatprep.subr.mxu0 0.0
        %2172 = vmatpush1.msra.mxu0 %v2133
        %2173 = vmatprep.subr.mxu0 0.0
        %2174 = vmatpush1.msra.mxu0 %v2131
        %2175 = vmatprep.subr.mxu0 0.0
        %2176 = vmatpush2.msra.mxu0 0.0
        %2177 = vmatprep.subr.mxu0 0.0
        %2178 = vmatpush2.msra.mxu0 0.0
        %2179 = vmatprep.subr.mxu0 0.0
        %2180 = vmatpush2.msra.mxu0 0.0
        %2181 = vmatprep.subr.mxu0 0.0
        %2182 = vmatpush2.msra.mxu0 0.0
        %2183 = vmatprep.subr.mxu0 0.0
        %2184 = vmatpush2.msra.mxu0 0.0
        %2185 = vmatprep.subr.mxu0 0.0
        %2186 = vmatpush2.msra.mxu0 0.0
        %2187 = vmatprep.subr.mxu0 0.0
        %2188 = vmatpush2.msra.mxu0 0.0
        %2189 = vmatprep.subr.mxu0 0.0
        %2190 = vmatpush2.msra.mxu0 0.0
        %2191 = vmatprep.subr.mxu0 0.0
        %2192 = vmatpush2.msra.mxu0 0.0
        %2193 = vmatprep.subr.mxu0 0.0
        %2194 = vmatpush2.msra.mxu0 0.0
        %2195 = vmatprep.subr.mxu0 0.0
        %2196 = vmatpush2.msra.mxu0 0.0
        %2197 = vmatprep.subr.mxu0 0.0
        %2198 = vmatpush2.msra.mxu0 0.0
        %2199 = vmatprep.subr.mxu0 0.0
        %2200 = vmatpush2.msra.mxu0 0.0
        %2201 = vmatprep.subr.mxu0 0.0
        %2202 = vmatpush2.msra.mxu0 0.0
        %2203 = vmatprep.subr.mxu0 0.0
        %2204 = vmatpush2.msra.mxu0 0.0
        %2205 = vmatprep.subr.mxu0 0.0
        %2206 = vmatpush2.msra.mxu0 0.0
        %2207 = vmatprep.mubr.f32.mxu0 0.0
        %2208 = vmatmul.mubr.f32.gmra.mxu0 %v2141
        %v2209 = vpop.f32.mrf.mxu0
        %v2210 = vadd.f32 %v2138, %v2209
        %v2211 = vpop.f32.mrf.mxu0
        %2212 = vdwg.mxu0
        %2213 = vrot.lane.b32.xlu0 %v680, 96
        %v2214 = vpop.permute.xlu0 %2213
        %2215 = vrot.lane.b32.xlu0 %v685, 96
        %v2216 = vpop.permute.xlu0 %2215
        %2220 = vrot.lane.b32.xlu0 %v1876, 96
        %v2221 = vpop.permute.xlu0 %2220
        %v2224 = vsel %vm1890, %v1860, 0
        %2226 = vmatprep.subr.mxu0 0.0
        %2227 = vmatpush1.msra.mxu0 0.0
        %2228 = vmatprep.subr.mxu0 0.0
        %2229 = vmatpush1.msra.mxu0 0.0
        %2230 = vmatprep.subr.mxu0 0.0
        %2231 = vmatpush1.msra.mxu0 0.0
        %2232 = vmatprep.subr.mxu0 0.0
        %2233 = vmatpush1.msra.mxu0 0.0
        %2234 = vmatprep.subr.mxu0 0.0
        %2235 = vmatpush1.msra.mxu0 0.0
        %2236 = vmatprep.subr.mxu0 0.0
        %2237 = vmatpush1.msra.mxu0 0.0
        %2238 = vmatprep.subr.mxu0 0.0
        %2239 = vmatpush1.msra.mxu0 0.0
        %2240 = vmatprep.subr.mxu0 0.0
        %2241 = vmatpush1.msra.mxu0 0.0
        %2242 = vmatprep.subr.mxu0 0.0
        %2243 = vmatpush1.msra.mxu0 0.0
        %2244 = vmatprep.subr.mxu0 0.0
        %2245 = vmatpush1.msra.mxu0 0.0
        %2246 = vmatprep.subr.mxu0 0.0
        %2247 = vmatpush1.msra.mxu0 0.0
        %2248 = vmatprep.subr.mxu0 0.0
        %2249 = vmatpush1.msra.mxu0 0.0
        %2250 = vmatprep.subr.mxu0 0.0
        %2251 = vmatpush1.msra.mxu0 0.0
        %2252 = vmatprep.subr.mxu0 0.0
        %2253 = vmatpush1.msra.mxu0 0.0
        %2254 = vmatprep.subr.mxu0 0.0
        %2255 = vmatpush1.msra.mxu0 %v2216
        %2256 = vmatprep.subr.mxu0 0.0
        %2257 = vmatpush1.msra.mxu0 %v2214
        %2258 = vmatprep.subr.mxu0 0.0
        %2259 = vmatpush2.msra.mxu0 0.0
        %2260 = vmatprep.subr.mxu0 0.0
        %2261 = vmatpush2.msra.mxu0 0.0
        %2262 = vmatprep.subr.mxu0 0.0
        %2263 = vmatpush2.msra.mxu0 0.0
        %2264 = vmatprep.subr.mxu0 0.0
        %2265 = vmatpush2.msra.mxu0 0.0
        %2266 = vmatprep.subr.mxu0 0.0
        %2267 = vmatpush2.msra.mxu0 0.0
        %2268 = vmatprep.subr.mxu0 0.0
        %2269 = vmatpush2.msra.mxu0 0.0
        %2270 = vmatprep.subr.mxu0 0.0
        %2271 = vmatpush2.msra.mxu0 0.0
        %2272 = vmatprep.subr.mxu0 0.0
        %2273 = vmatpush2.msra.mxu0 0.0
        %2274 = vmatprep.subr.mxu0 0.0
        %2275 = vmatpush2.msra.mxu0 0.0
        %2276 = vmatprep.subr.mxu0 0.0
        %2277 = vmatpush2.msra.mxu0 0.0
        %2278 = vmatprep.subr.mxu0 0.0
        %2279 = vmatpush2.msra.mxu0 0.0
        %2280 = vmatprep.subr.mxu0 0.0
        %2281 = vmatpush2.msra.mxu0 0.0
        %2282 = vmatprep.subr.mxu0 0.0
        %2283 = vmatpush2.msra.mxu0 0.0
        %2284 = vmatprep.subr.mxu0 0.0
        %2285 = vmatpush2.msra.mxu0 0.0
        %2286 = vmatprep.subr.mxu0 0.0
        %2287 = vmatpush2.msra.mxu0 0.0
        %2288 = vmatprep.subr.mxu0 0.0
        %2289 = vmatpush2.msra.mxu0 0.0
        %2290 = vmatprep.mubr.f32.mxu0 0.0
        %2291 = vmatmul.mubr.f32.gmra.mxu0 %v2224
        %v2292 = vpop.f32.mrf.mxu0
        %v2293 = vadd.f32 %v2221, %v2292
        %v2294 = vpop.f32.mrf.mxu0
        %2295 = vdwg.mxu0
        %2296 = vrot.lane.b32.xlu0 %v690, 96
        %v2297 = vpop.permute.xlu0 %2296
        %2298 = vrot.lane.b32.xlu0 %v695, 96
        %v2299 = vpop.permute.xlu0 %2298
        %2303 = vrot.lane.b32.xlu0 %v1877, 96
        %v2304 = vpop.permute.xlu0 %2303
        %v2307 = vsel %vm1890, %v1861, 0
        %2309 = vmatprep.subr.mxu0 0.0
        %2310 = vmatpush1.msra.mxu0 0.0
        %2311 = vmatprep.subr.mxu0 0.0
        %2312 = vmatpush1.msra.mxu0 0.0
        %2313 = vmatprep.subr.mxu0 0.0
        %2314 = vmatpush1.msra.mxu0 0.0
        %2315 = vmatprep.subr.mxu0 0.0
        %2316 = vmatpush1.msra.mxu0 0.0
        %2317 = vmatprep.subr.mxu0 0.0
        %2318 = vmatpush1.msra.mxu0 0.0
        %2319 = vmatprep.subr.mxu0 0.0
        %2320 = vmatpush1.msra.mxu0 0.0
        %2321 = vmatprep.subr.mxu0 0.0
        %2322 = vmatpush1.msra.mxu0 0.0
        %2323 = vmatprep.subr.mxu0 0.0
        %2324 = vmatpush1.msra.mxu0 0.0
        %2325 = vmatprep.subr.mxu0 0.0
        %2326 = vmatpush1.msra.mxu0 0.0
        %2327 = vmatprep.subr.mxu0 0.0
        %2328 = vmatpush1.msra.mxu0 0.0
        %2329 = vmatprep.subr.mxu0 0.0
        %2330 = vmatpush1.msra.mxu0 0.0
        %2331 = vmatprep.subr.mxu0 0.0
        %2332 = vmatpush1.msra.mxu0 0.0
        %2333 = vmatprep.subr.mxu0 0.0
        %2334 = vmatpush1.msra.mxu0 0.0
        %2335 = vmatprep.subr.mxu0 0.0
        %2336 = vmatpush1.msra.mxu0 0.0
        %2337 = vmatprep.subr.mxu0 0.0
        %2338 = vmatpush1.msra.mxu0 %v2299
        %2339 = vmatprep.subr.mxu0 0.0
        %2340 = vmatpush1.msra.mxu0 %v2297
        %2341 = vmatprep.subr.mxu0 0.0
        %2342 = vmatpush2.msra.mxu0 0.0
        %2343 = vmatprep.subr.mxu0 0.0
        %2344 = vmatpush2.msra.mxu0 0.0
        %2345 = vmatprep.subr.mxu0 0.0
        %2346 = vmatpush2.msra.mxu0 0.0
        %2347 = vmatprep.subr.mxu0 0.0
        %2348 = vmatpush2.msra.mxu0 0.0
        %2349 = vmatprep.subr.mxu0 0.0
        %2350 = vmatpush2.msra.mxu0 0.0
        %2351 = vmatprep.subr.mxu0 0.0
        %2352 = vmatpush2.msra.mxu0 0.0
        %2353 = vmatprep.subr.mxu0 0.0
        %2354 = vmatpush2.msra.mxu0 0.0
        %2355 = vmatprep.subr.mxu0 0.0
        %2356 = vmatpush2.msra.mxu0 0.0
        %2357 = vmatprep.subr.mxu0 0.0
        %2358 = vmatpush2.msra.mxu0 0.0
        %2359 = vmatprep.subr.mxu0 0.0
        %2360 = vmatpush2.msra.mxu0 0.0
        %2361 = vmatprep.subr.mxu0 0.0
        %2362 = vmatpush2.msra.mxu0 0.0
        %2363 = vmatprep.subr.mxu0 0.0
        %2364 = vmatpush2.msra.mxu0 0.0
        %2365 = vmatprep.subr.mxu0 0.0
        %2366 = vmatpush2.msra.mxu0 0.0
        %2367 = vmatprep.subr.mxu0 0.0
        %2368 = vmatpush2.msra.mxu0 0.0
        %2369 = vmatprep.subr.mxu0 0.0
        %2370 = vmatpush2.msra.mxu0 0.0
        %2371 = vmatprep.subr.mxu0 0.0
        %2372 = vmatpush2.msra.mxu0 0.0
        %2373 = vmatprep.mubr.f32.mxu0 0.0
        %2374 = vmatmul.mubr.f32.gmra.mxu0 %v2307
        %v2375 = vpop.f32.mrf.mxu0
        %v2376 = vadd.f32 %v2304, %v2375
        %v2377 = vpop.f32.mrf.mxu0
        %2378 = vdwg.mxu0
        %2379 = vrot.lane.b32.xlu0 %v700, 96
        %v2380 = vpop.permute.xlu0 %2379
        %2381 = vrot.lane.b32.xlu0 %v705, 96
        %v2382 = vpop.permute.xlu0 %2381
        %2386 = vrot.lane.b32.xlu0 %v1878, 96
        %v2387 = vpop.permute.xlu0 %2386
        %v2390 = vsel %vm1890, %v1862, 0
        %2392 = vmatprep.subr.mxu0 0.0
        %2393 = vmatpush1.msra.mxu0 0.0
        %2394 = vmatprep.subr.mxu0 0.0
        %2395 = vmatpush1.msra.mxu0 0.0
        %2396 = vmatprep.subr.mxu0 0.0
        %2397 = vmatpush1.msra.mxu0 0.0
        %2398 = vmatprep.subr.mxu0 0.0
        %2399 = vmatpush1.msra.mxu0 0.0
        %2400 = vmatprep.subr.mxu0 0.0
        %2401 = vmatpush1.msra.mxu0 0.0
        %2402 = vmatprep.subr.mxu0 0.0
        %2403 = vmatpush1.msra.mxu0 0.0
        %2404 = vmatprep.subr.mxu0 0.0
        %2405 = vmatpush1.msra.mxu0 0.0
        %2406 = vmatprep.subr.mxu0 0.0
        %2407 = vmatpush1.msra.mxu0 0.0
        %2408 = vmatprep.subr.mxu0 0.0
        %2409 = vmatpush1.msra.mxu0 0.0
        %2410 = vmatprep.subr.mxu0 0.0
        %2411 = vmatpush1.msra.mxu0 0.0
        %2412 = vmatprep.subr.mxu0 0.0
        %2413 = vmatpush1.msra.mxu0 0.0
        %2414 = vmatprep.subr.mxu0 0.0
        %2415 = vmatpush1.msra.mxu0 0.0
        %2416 = vmatprep.subr.mxu0 0.0
        %2417 = vmatpush1.msra.mxu0 0.0
        %2418 = vmatprep.subr.mxu0 0.0
        %2419 = vmatpush1.msra.mxu0 0.0
        %2420 = vmatprep.subr.mxu0 0.0
        %2421 = vmatpush1.msra.mxu0 %v2382
        %2422 = vmatprep.subr.mxu0 0.0
        %2423 = vmatpush1.msra.mxu0 %v2380
        %2424 = vmatprep.subr.mxu0 0.0
        %2425 = vmatpush2.msra.mxu0 0.0
        %2426 = vmatprep.subr.mxu0 0.0
        %2427 = vmatpush2.msra.mxu0 0.0
        %2428 = vmatprep.subr.mxu0 0.0
        %2429 = vmatpush2.msra.mxu0 0.0
        %2430 = vmatprep.subr.mxu0 0.0
        %2431 = vmatpush2.msra.mxu0 0.0
        %2432 = vmatprep.subr.mxu0 0.0
        %2433 = vmatpush2.msra.mxu0 0.0
        %2434 = vmatprep.subr.mxu0 0.0
        %2435 = vmatpush2.msra.mxu0 0.0
        %2436 = vmatprep.subr.mxu0 0.0
        %2437 = vmatpush2.msra.mxu0 0.0
        %2438 = vmatprep.subr.mxu0 0.0
        %2439 = vmatpush2.msra.mxu0 0.0
        %2440 = vmatprep.subr.mxu0 0.0
        %2441 = vmatpush2.msra.mxu0 0.0
        %2442 = vmatprep.subr.mxu0 0.0
        %2443 = vmatpush2.msra.mxu0 0.0
        %2444 = vmatprep.subr.mxu0 0.0
        %2445 = vmatpush2.msra.mxu0 0.0
        %2446 = vmatprep.subr.mxu0 0.0
        %2447 = vmatpush2.msra.mxu0 0.0
        %2448 = vmatprep.subr.mxu0 0.0
        %2449 = vmatpush2.msra.mxu0 0.0
        %2450 = vmatprep.subr.mxu0 0.0
        %2451 = vmatpush2.msra.mxu0 0.0
        %2452 = vmatprep.subr.mxu0 0.0
        %2453 = vmatpush2.msra.mxu0 0.0
        %2454 = vmatprep.subr.mxu0 0.0
        %2455 = vmatpush2.msra.mxu0 0.0
        %2456 = vmatprep.mubr.f32.mxu0 0.0
        %2457 = vmatmul.mubr.f32.gmra.mxu0 %v2390
        %v2458 = vpop.f32.mrf.mxu0
        %v2459 = vadd.f32 %v2387, %v2458
        %v2460 = vpop.f32.mrf.mxu0
        %2461 = vdwg.mxu0
        %2462 = vrot.lane.b32.xlu0 %v710, 96
        %v2463 = vpop.permute.xlu0 %2462
        %2464 = vrot.lane.b32.xlu0 %v715, 96
        %v2465 = vpop.permute.xlu0 %2464
        %2469 = vrot.lane.b32.xlu0 %v1879, 96
        %v2470 = vpop.permute.xlu0 %2469
        %v2473 = vsel %vm1890, %v1863, 0
        %2475 = vmatprep.subr.mxu0 0.0
        %2476 = vmatpush1.msra.mxu0 0.0
        %2477 = vmatprep.subr.mxu0 0.0
        %2478 = vmatpush1.msra.mxu0 0.0
        %2479 = vmatprep.subr.mxu0 0.0
        %2480 = vmatpush1.msra.mxu0 0.0
        %2481 = vmatprep.subr.mxu0 0.0
        %2482 = vmatpush1.msra.mxu0 0.0
        %2483 = vmatprep.subr.mxu0 0.0
        %2484 = vmatpush1.msra.mxu0 0.0
        %2485 = vmatprep.subr.mxu0 0.0
        %2486 = vmatpush1.msra.mxu0 0.0
        %2487 = vmatprep.subr.mxu0 0.0
        %2488 = vmatpush1.msra.mxu0 0.0
        %2489 = vmatprep.subr.mxu0 0.0
        %2490 = vmatpush1.msra.mxu0 0.0
        %2491 = vmatprep.subr.mxu0 0.0
        %2492 = vmatpush1.msra.mxu0 0.0
        %2493 = vmatprep.subr.mxu0 0.0
        %2494 = vmatpush1.msra.mxu0 0.0
        %2495 = vmatprep.subr.mxu0 0.0
        %2496 = vmatpush1.msra.mxu0 0.0
        %2497 = vmatprep.subr.mxu0 0.0
        %2498 = vmatpush1.msra.mxu0 0.0
        %2499 = vmatprep.subr.mxu0 0.0
        %2500 = vmatpush1.msra.mxu0 0.0
        %2501 = vmatprep.subr.mxu0 0.0
        %2502 = vmatpush1.msra.mxu0 0.0
        %2503 = vmatprep.subr.mxu0 0.0
        %2504 = vmatpush1.msra.mxu0 %v2465
        %2505 = vmatprep.subr.mxu0 0.0
        %2506 = vmatpush1.msra.mxu0 %v2463
        %2507 = vmatprep.subr.mxu0 0.0
        %2508 = vmatpush2.msra.mxu0 0.0
        %2509 = vmatprep.subr.mxu0 0.0
        %2510 = vmatpush2.msra.mxu0 0.0
        %2511 = vmatprep.subr.mxu0 0.0
        %2512 = vmatpush2.msra.mxu0 0.0
        %2513 = vmatprep.subr.mxu0 0.0
        %2514 = vmatpush2.msra.mxu0 0.0
        %2515 = vmatprep.subr.mxu0 0.0
        %2516 = vmatpush2.msra.mxu0 0.0
        %2517 = vmatprep.subr.mxu0 0.0
        %2518 = vmatpush2.msra.mxu0 0.0
        %2519 = vmatprep.subr.mxu0 0.0
        %2520 = vmatpush2.msra.mxu0 0.0
        %2521 = vmatprep.subr.mxu0 0.0
        %2522 = vmatpush2.msra.mxu0 0.0
        %2523 = vmatprep.subr.mxu0 0.0
        %2524 = vmatpush2.msra.mxu0 0.0
        %2525 = vmatprep.subr.mxu0 0.0
        %2526 = vmatpush2.msra.mxu0 0.0
        %2527 = vmatprep.subr.mxu0 0.0
        %2528 = vmatpush2.msra.mxu0 0.0
        %2529 = vmatprep.subr.mxu0 0.0
        %2530 = vmatpush2.msra.mxu0 0.0
        %2531 = vmatprep.subr.mxu0 0.0
        %2532 = vmatpush2.msra.mxu0 0.0
        %2533 = vmatprep.subr.mxu0 0.0
        %2534 = vmatpush2.msra.mxu0 0.0
        %2535 = vmatprep.subr.mxu0 0.0
        %2536 = vmatpush2.msra.mxu0 0.0
        %2537 = vmatprep.subr.mxu0 0.0
        %2538 = vmatpush2.msra.mxu0 0.0
        %2539 = vmatprep.mubr.f32.mxu0 0.0
        %2540 = vmatmul.mubr.f32.gmra.mxu0 %v2473
        %v2541 = vpop.f32.mrf.mxu0
        %v2542 = vadd.f32 %v2470, %v2541
        %v2543 = vpop.f32.mrf.mxu0
        %2544 = vdwg.mxu0
        %v2545 = vmul.f32 %v1961, %v873
        %v2546 = vmul.f32 %v2044, %v873
        %v2547 = vmul.f32 %v2127, %v873
        %v2548 = vmul.f32 %v2210, %v873
        %v2549 = vmul.f32 %v2293, %v873
        %v2550 = vmul.f32 %v2376, %v873
        %v2551 = vmul.f32 %v2459, %v873
        %v2552 = vmul.f32 %v2542, %v873
        %v2553 = vsel %vm1702, %v2545, 0.0
        %v2554 = vrot.slane %v2553, 4
        %v2555 = vadd.f32 %v2553, %v2554
        %v2556 = vrot.slane %v2555, 2
        %v2557 = vadd.f32 %v2555, %v2556
        %v2558 = vrot.slane %v2557, 1
        %v2559 = vadd.f32 %v2557, %v2558
        %v2560 = vsel %vm1702, %v2546, 0.0
        %v2561 = vrot.slane %v2560, 4
        %v2562 = vadd.f32 %v2560, %v2561
        %v2563 = vrot.slane %v2562, 2
        %v2564 = vadd.f32 %v2562, %v2563
        %v2565 = vrot.slane %v2564, 1
        %v2566 = vadd.f32 %v2564, %v2565
        %v2567 = vsel %vm1702, %v2547, 0.0
        %v2568 = vrot.slane %v2567, 4
        %v2569 = vadd.f32 %v2567, %v2568
        %v2570 = vrot.slane %v2569, 2
        %v2571 = vadd.f32 %v2569, %v2570
        %v2572 = vrot.slane %v2571, 1
        %v2573 = vadd.f32 %v2571, %v2572
        %v2574 = vsel %vm1702, %v2548, 0.0
        %v2575 = vrot.slane %v2574, 4
        %v2576 = vadd.f32 %v2574, %v2575
        %v2577 = vrot.slane %v2576, 2
        %v2578 = vadd.f32 %v2576, %v2577
        %v2579 = vrot.slane %v2578, 1
        %v2580 = vadd.f32 %v2578, %v2579
        %v2581 = vsel %vm1702, %v2549, 0.0
        %v2582 = vrot.slane %v2581, 4
        %v2583 = vadd.f32 %v2581, %v2582
        %v2584 = vrot.slane %v2583, 2
        %v2585 = vadd.f32 %v2583, %v2584
        %v2586 = vrot.slane %v2585, 1
        %v2587 = vadd.f32 %v2585, %v2586
        %v2588 = vsel %vm1702, %v2550, 0.0
        %v2589 = vrot.slane %v2588, 4
        %v2590 = vadd.f32 %v2588, %v2589
        %v2591 = vrot.slane %v2590, 2
        %v2592 = vadd.f32 %v2590, %v2591
        %v2593 = vrot.slane %v2592, 1
        %v2594 = vadd.f32 %v2592, %v2593
        %v2595 = vsel %vm1702, %v2551, 0.0
        %v2596 = vrot.slane %v2595, 4
        %v2597 = vadd.f32 %v2595, %v2596
        %v2598 = vrot.slane %v2597, 2
        %v2599 = vadd.f32 %v2597, %v2598
        %v2600 = vrot.slane %v2599, 1
        %v2601 = vadd.f32 %v2599, %v2600
        %v2602 = vsel %vm1702, %v2552, 0.0
        %v2603 = vrot.slane %v2602, 4
        %v2604 = vadd.f32 %v2602, %v2603
        %v2605 = vrot.slane %v2604, 2
        %v2606 = vadd.f32 %v2604, %v2605
        %v2607 = vrot.slane %v2606, 1
        %v2608 = vadd.f32 %v2606, %v2607
        %v2609 = vld [vmem:[%s9] sm:$0xff]
        %v2610 = vld [vmem:[%s9 + $0x8] sm:$0xff]
        %v2611 = vld [vmem:[%s9 + $0x10] sm:$0xff]
        %v2612 = vld [vmem:[%s9 + $0x18] sm:$0xff]
        %v2613 = vld [vmem:[%s10] sm:$0x1]
        %v2615 = vlaneseq
        %v2616 = vshrl.u32 %v2615, 7
        %v2617 = vsub.s32 0, %v2616
        %v2618 = vrot.slane %v2613, %v2617
        %vm2628 = vcmask 1041409
        %v2629 = vsel %vm2628, %v2566, %v2559
        %vm2630 = vcmask 1042434
        %v2631 = vsel %vm2630, %v2573, %v2629
        %vm2632 = vcmask 1043459
        %v2633 = vsel %vm2632, %v2580, %v2631
        %vm2634 = vcmask 1044484
        %v2635 = vsel %vm2634, %v2587, %v2633
        %vm2636 = vcmask 1045509
        %v2637 = vsel %vm2636, %v2594, %v2635
        %vm2638 = vcmask 1046534
        %v2639 = vsel %vm2638, %v2601, %v2637
        %vm2640 = vcmask 1047559
        %v2641 = vsel %vm2640, %v2608, %v2639
        %v2642 = vsel %vm524, %v2641, 0
        %2644 = vmatprep.subr.mxu0 0.0
        %2645 = vmatpush1.msra.mxu0 0.0
        %2646 = vmatprep.subr.mxu0 0.0
        %2647 = vmatpush1.msra.mxu0 0.0
        %2648 = vmatprep.subr.mxu0 0.0
        %2649 = vmatpush1.msra.mxu0 0.0
        %2650 = vmatprep.subr.mxu0 0.0
        %2651 = vmatpush1.msra.mxu0 0.0
        %2652 = vmatprep.subr.mxu0 0.0
        %2653 = vmatpush1.msra.mxu0 0.0
        %2654 = vmatprep.subr.mxu0 0.0
        %2655 = vmatpush1.msra.mxu0 0.0
        %2656 = vmatprep.subr.mxu0 0.0
        %2657 = vmatpush1.msra.mxu0 0.0
        %2658 = vmatprep.subr.mxu0 0.0
        %2659 = vmatpush1.msra.mxu0 0.0
        %2660 = vmatprep.subr.mxu0 0.0
        %2661 = vmatpush1.msra.mxu0 0.0
        %2662 = vmatprep.subr.mxu0 0.0
        %2663 = vmatpush1.msra.mxu0 0.0
        %2664 = vmatprep.subr.mxu0 0.0
        %2665 = vmatpush1.msra.mxu0 0.0
        %2666 = vmatprep.subr.mxu0 0.0
        %2667 = vmatpush1.msra.mxu0 0.0
        %2668 = vmatprep.subr.mxu0 0.0
        %2669 = vmatpush1.msra.mxu0 %v2612
        %2670 = vmatprep.subr.mxu0 0.0
        %2671 = vmatpush1.msra.mxu0 %v2611
        %2672 = vmatprep.subr.mxu0 0.0
        %2673 = vmatpush1.msra.mxu0 %v2610
        %2674 = vmatprep.subr.mxu0 0.0
        %2675 = vmatpush1.msra.mxu0 %v2609
        %2676 = vmatprep.subr.mxu0 0.0
        %2677 = vmatpush2.msra.mxu0 0.0
        %2678 = vmatprep.subr.mxu0 0.0
        %2679 = vmatpush2.msra.mxu0 0.0
        %2680 = vmatprep.subr.mxu0 0.0
        %2681 = vmatpush2.msra.mxu0 0.0
        %2682 = vmatprep.subr.mxu0 0.0
        %2683 = vmatpush2.msra.mxu0 0.0
        %2684 = vmatprep.subr.mxu0 0.0
        %2685 = vmatpush2.msra.mxu0 0.0
        %2686 = vmatprep.subr.mxu0 0.0
        %2687 = vmatpush2.msra.mxu0 0.0
        %2688 = vmatprep.subr.mxu0 0.0
        %2689 = vmatpush2.msra.mxu0 0.0
        %2690 = vmatprep.subr.mxu0 0.0
        %2691 = vmatpush2.msra.mxu0 0.0
        %2692 = vmatprep.subr.mxu0 0.0
        %2693 = vmatpush2.msra.mxu0 0.0
        %2694 = vmatprep.subr.mxu0 0.0
        %2695 = vmatpush2.msra.mxu0 0.0
        %2696 = vmatprep.subr.mxu0 0.0
        %2697 = vmatpush2.msra.mxu0 0.0
        %2698 = vmatprep.subr.mxu0 0.0
        %2699 = vmatpush2.msra.mxu0 0.0
        %2700 = vmatprep.subr.mxu0 0.0
        %2701 = vmatpush2.msra.mxu0 0.0
        %2702 = vmatprep.subr.mxu0 0.0
        %2703 = vmatpush2.msra.mxu0 0.0
        %2704 = vmatprep.subr.mxu0 0.0
        %2705 = vmatpush2.msra.mxu0 0.0
        %2706 = vmatprep.subr.mxu0 0.0
        %2707 = vmatpush2.msra.mxu0 0.0
        %2708 = vmatprep.mubr.f32.mxu0 0.0
        %2709 = vmatmul.mubr.f32.gmra.mxu0 %v2642
        %v2710 = vpop.f32.mrf.mxu0
        %v2711 = vadd.f32 %v2618, %v2710
        %v2712 = vpop.f32.mrf.mxu0
        %2713 = vdwg.mxu0
        %2714 = vst.msk [vmem:[%s380] sm:$0xff] %vm1890, %v2711
        %s2715 = sand.u32 %s269, 1
        %s2716 = scalar_lea.sflag [#allocation3], %s2715
        %s2717 = sand.u32 %s269, 1
        %s2718 = smul.addr %s2717, 8
        %s2719 = scalar_lea.vmem [#allocation2], %s2718
        // Predicated region
        $region65: #{tpu_custom_call.1} parent=63 // pred_check
          %p2720 = pneg %p279
        $region66: #{tpu_custom_call.1} parent=63 // pred_check_branch
          %2722 = sbr.rel (%p2720) target = $region68
        $region67: #{tpu_custom_call.1} parent=63 // pred_region
          %s2724 = ssub.s32 128, 128
          %2725 = vsyncadd %s2716, %s2724
          %s2726 = smul.addr %s25, 128
          %s2727 = scalar_lea.hbm %s11, %s2726
          %s2729 = sshll.u32 %s2719, 4
          %s2730 = int_to_ptr.vmem [resolvable:$true] %s2729
          %2732 = dma.vmem_to_hbm [thread:$0]  %s2730, 128, %s2727, %s2716
        $region68: #{tpu_custom_call.1} parent=63 // pred_fallthru
          _
      $region64: #{tpu_custom_call.1} parent=5 // pred_fallthru
        _
      %p2733 = scmp.le.s32.totalorder 2, %s20
      // Predicated region
      $region69: #{tpu_custom_call.1} parent=5 // pred_check
        %p2734 = pneg %p2733
      $region70: #{tpu_custom_call.1} parent=5 // pred_check_branch
        %2736 = sbr.rel (%p2734) target = $region72
      $region71: #{tpu_custom_call.1} parent=5 // pred_region
        %s2737 = ssub.s32 %s20, 2
        // Predicated region
        $region73: #{tpu_custom_call.1} parent=71 // pred_check
          %p2738 = pneg %p285
        $region74: #{tpu_custom_call.1} parent=71 // pred_check_branch
          %2740 = sbr.rel (%p2738) target = $region76
        $region75: #{tpu_custom_call.1} parent=71 // pred_region
          %s2741 = sand.u32 %s270, 1
          %s2742 = scalar_lea.sflag [#allocation3], %s2741
          %s2743 = sand.u32 %s270, 1
          %s2744 = smul.addr %s2743, 8
          %s2745 = scalar_lea.vmem [#allocation2], %s2744
          %2746 = dma.done %s2742, 128
        $region76: #{tpu_custom_call.1} parent=71 // pred_fallthru
          _
      $region72: #{tpu_custom_call.1} parent=5 // pred_fallthru
        _
    $region6: #{tpu_custom_call.1} parent=1 // loop_footer
      %s24 = sadd.s32 1, %s20
    $region7: #{tpu_custom_call.1} parent=1 // loop_footer_branch
      %19 = sbr.rel target = $region3
    $region8: #{tpu_custom_call.1} parent=1 // loop_exit
      _
    %2747 = vsyncpa [#allocation3], 1
    %s2748 = scalar_lea.sflag [#allocation3], 1
    %2749 = vsyncpa %s2748, 1

// kernel: tpu_custom_call.1
$region0: #{tpu_custom_call.1}
  #allocation0 [shape = 'u32[]', space=smem, size = 0x4, offset = 0x4, fixed_abs, tag = 'smem constant byte address 0x4 - core index']
  #allocation1 [shape = 'u32[144,128]{1,0:T(1,128)}', space=vmem, size = 0x12000, scoped, tag = 'internal scratch']
  %s0 = inlined_call_operand.vmem [shape: f32[256,32], index: 0, kind: input, shape index: {}]
  %s1 = inlined_call_operand.vmem [shape: f32[128,32], index: 1, kind: input, shape index: {}]
  %s2 = inlined_call_operand.vmem [shape: f32[1,32], index: 2, kind: input, shape index: {}]
  %s3 = inlined_call_operand.vmem [shape: f32[8,128], index: 3, kind: input, shape index: {}]
  %s4 = inlined_call_operand.vmem [shape: f32[4,32], index: 4, kind: input, shape index: {}]
  %s5 = inlined_call_operand.vmem [shape: f32[32,32], index: 5, kind: input, shape index: {}]
  %s6 = inlined_call_operand.vmem [shape: f32[1,32], index: 6, kind: input, shape index: {}]
  %s7 = inlined_call_operand.vmem [shape: f32[32,64], index: 7, kind: input, shape index: {}]
  %s8 = inlined_call_operand.vmem [shape: f32[1,64], index: 8, kind: input, shape index: {}]
  %s9 = inlined_call_operand.vmem [shape: f32[32,16], index: 9, kind: input, shape index: {}]
  %s10 = inlined_call_operand.vmem [shape: f32[1,16], index: 10, kind: input, shape index: {}]
  %s11 = inlined_call_operand.hbm [shape: f32[16,16], index: 11, kind: output, shape index: {}]
  %s12 = sld [smem:[#allocation0]]
  $region77: #{tpu_custom_call.1} parent=0
    _
  %s14 = ssub.s32 1, %s12
  %s15 = scalar_select 0, %s14, %s12
  $region1: #{tpu_custom_call.1} parent=0
    #allocation2 [shape = 'u8[8192]{0}', space=vmem, size = 0x2000, scoped, tag = 'output window, operand 0']
    #allocation3 [shape = 's32[2]{0}', space=sflag, size = 0x8, scoped, tag = 'scoped memory for tpu_custom_call.1']
    %16 = vsyncpa [#allocation3], 0
    %s17 = scalar_lea.sflag [#allocation3], 1
    %18 = vsyncpa %s17, 0
    loop: start=0, step=1, limit=4
    $region2: #{tpu_custom_call.1} parent=1 // loop_pre_header
      _
    $region3: #{tpu_custom_call.1} parent=1 // loop_header
      %s20 = sphi 0, %s24
      %p21 = scmp.ge.s32.totalorder %s20, 4
      %s30 = sphi 0, %s32
      %s33 = sphi 0, %s30
      %s34 = sphi 0, %s33
      %s50 = sphi 0, %s34
      %s54 = sphi 0, %s54
      %s56 = sphi 0, %s54
      %s57 = sphi 0, %s56
      %s71 = sphi 0, %s57
      %s75 = sphi 0, %s75
      %s77 = sphi 0, %s75
      %s78 = sphi 0, %s77
      %s92 = sphi 0, %s78
      %s96 = sphi 0, %s96
      %s98 = sphi 0, %s96
      %s99 = sphi 0, %s98
      %s113 = sphi 0, %s99
      %s117 = sphi 0, %s117
      %s119 = sphi 0, %s117
      %s120 = sphi 0, %s119
      %s134 = sphi 0, %s120
      %s138 = sphi 0, %s138
      %s140 = sphi 0, %s138
      %s141 = sphi 0, %s140
      %s155 = sphi 0, %s141
      %s159 = sphi 0, %s159
      %s161 = sphi 0, %s159
      %s162 = sphi 0, %s161
      %s176 = sphi 0, %s162
      %s180 = sphi 0, %s180
      %s182 = sphi 0, %s180
      %s183 = sphi 0, %s182
      %s197 = sphi 0, %s183
      %s201 = sphi 0, %s201
      %s203 = sphi 0, %s201
      %s204 = sphi 0, %s203
      %s218 = sphi 0, %s204
      %s222 = sphi 0, %s222
      %s224 = sphi 0, %s222
      %s225 = sphi 0, %s224
      %s239 = sphi 0, %s225
      %s243 = sphi 0, %s243
      %s245 = sphi 0, %s243
      %s246 = sphi 0, %s245
      %s260 = sphi 0, %s246
      %s266 = sphi 0, %s268
      %s269 = sphi 0, %s266
      %s270 = sphi 0, %s269
      %s286 = sphi 0, %s270
    $region4: #{tpu_custom_call.1} parent=1 // loop_header_branch
      %23 = sbr.rel (%p21) target = $region8
    $region5: #{tpu_custom_call.1} parent=1 // loop_body
      %s25 = ssub.s32 %s20, 1
      %s26 = ssub.s32 %s20, 2
      %s27 = sadd.s32 %s20, 1
      %s28 = ssub.s32 %s20, %s27
      %p29 = scmp.eq.s32.totalorder %s28, 0
      %s31 = sadd.s32 %s30, 1
      %s32 = scalar_select %p29, %s30, %s31
      %p35 = pneg %p29
      %p36 = scmp.eq.s32.totalorder %s20, 1
      %p37 = por %p35, %p36
      %p38 = scmp.ne.s32.totalorder %s30, %s33
      %p39 = scmp.eq.s32.totalorder %s20, 0
      %p40 = por %p38, %p39
      %p41 = scmp.ne.s32.totalorder %s30, %s33
      %p42 = scmp.eq.s32.totalorder %s25, 1
      %p43 = por %p41, %p42
      %p44 = scmp.ne.s32.totalorder %s33, %s34
      %p45 = scmp.eq.s32.totalorder %s25, 0
      %p46 = por %p44, %p45
      %p47 = scmp.ne.s32.totalorder %s33, %s34
      %p48 = scmp.eq.s32.totalorder %s26, 1
      %p49 = por %p47, %p48
      %p51 = scmp.ne.s32.totalorder %s34, %s50
      %p52 = scmp.eq.s32.totalorder %s26, 0
      %p53 = por %p51, %p52
      %s55 = sadd.s32 %s54, 1
      %p58 = scmp.eq.s32.totalorder %s20, 1
      %p59 = scmp.ne.s32.totalorder %s54, %s56
      %p60 = scmp.eq.s32.totalorder %s20, 0
      %p61 = por %p59, %p60
      %p62 = scmp.ne.s32.totalorder %s54, %s56
      %p63 = scmp.eq.s32.totalorder %s25, 1
      %p64 = por %p62, %p63
      %p65 = scmp.ne.s32.totalorder %s56, %s57
      %p66 = scmp.eq.s32.totalorder %s25, 0
      %p67 = por %p65, %p66
      %p68 = scmp.ne.s32.totalorder %s56, %s57
      %p69 = scmp.eq.s32.totalorder %s26, 1
      %p70 = por %p68, %p69
      %p72 = scmp.ne.s32.totalorder %s57, %s71
      %p73 = scmp.eq.s32.totalorder %s26, 0
      %p74 = por %p72, %p73
      %s76 = sadd.s32 %s75, 1
      %p79 = scmp.eq.s32.totalorder %s20, 1
      %p80 = scmp.ne.s32.totalorder %s75, %s77
      %p81 = scmp.eq.s32.totalorder %s20, 0
      %p82 = por %p80, %p81
      %p83 = scmp.ne.s32.totalorder %s75, %s77
      %p84 = scmp.eq.s32.totalorder %s25, 1
      %p85 = por %p83, %p84
      %p86 = scmp.ne.s32.totalorder %s77, %s78
      %p87 = scmp.eq.s32.totalorder %s25, 0
      %p88 = por %p86, %p87
      %p89 = scmp.ne.s32.totalorder %s77, %s78
      %p90 = scmp.eq.s32.totalorder %s26, 1
      %p91 = por %p89, %p90
      %p93 = scmp.ne.s32.totalorder %s78, %s92
      %p94 = scmp.eq.s32.totalorder %s26, 0
      %p95 = por %p93, %p94
      %s97 = sadd.s32 %s96, 1
      %p100 = scmp.eq.s32.totalorder %s20, 1
      %p101 = scmp.ne.s32.totalorder %s96, %s98
      %p102 = scmp.eq.s32.totalorder %s20, 0
      %p103 = por %p101, %p102
      %p104 = scmp.ne.s32.totalorder %s96, %s98
      %p105 = scmp.eq.s32.totalorder %s25, 1
      %p106 = por %p104, %p105
      %p107 = scmp.ne.s32.totalorder %s98, %s99
      %p108 = scmp.eq.s32.totalorder %s25, 0
      %p109 = por %p107, %p108
      %p110 = scmp.ne.s32.totalorder %s98, %s99
      %p111 = scmp.eq.s32.totalorder %s26, 1
      %p112 = por %p110, %p111
      %p114 = scmp.ne.s32.totalorder %s99, %s113
      %p115 = scmp.eq.s32.totalorder %s26, 0
      %p116 = por %p114, %p115
      %s118 = sadd.s32 %s117, 1
      %p121 = scmp.eq.s32.totalorder %s20, 1
      %p122 = scmp.ne.s32.totalorder %s117, %s119
      %p123 = scmp.eq.s32.totalorder %s20, 0
      %p124 = por %p122, %p123
      %p125 = scmp.ne.s32.totalorder %s117, %s119
      %p126 = scmp.eq.s32.totalorder %s25, 1
      %p127 = por %p125, %p126
      %p128 = scmp.ne.s32.totalorder %s119, %s120
      %p129 = scmp.eq.s32.totalorder %s25, 0
      %p130 = por %p128, %p129
      %p131 = scmp.ne.s32.totalorder %s119, %s120
      %p132 = scmp.eq.s32.totalorder %s26, 1
      %p133 = por %p131, %p132
      %p135 = scmp.ne.s32.totalorder %s120, %s134
      %p136 = scmp.eq.s32.totalorder %s26, 0
      %p137 = por %p135, %p136
      %s139 = sadd.s32 %s138, 1
      %p142 = scmp.eq.s32.totalorder %s20, 1
      %p143 = scmp.ne.s32.totalorder %s138, %s140
      %p144 = scmp.eq.s32.totalorder %s20, 0
      %p145 = por %p143, %p144
      %p146 = scmp.ne.s32.totalorder %s138, %s140
      %p147 = scmp.eq.s32.totalorder %s25, 1
      %p148 = por %p146, %p147
      %p149 = scmp.ne.s32.totalorder %s140, %s141
      %p150 = scmp.eq.s32.totalorder %s25, 0
      %p151 = por %p149, %p150
      %p152 = scmp.ne.s32.totalorder %s140, %s141
      %p153 = scmp.eq.s32.totalorder %s26, 1
      %p154 = por %p152, %p153
      %p156 = scmp.ne.s32.totalorder %s141, %s155
      %p157 = scmp.eq.s32.totalorder %s26, 0
      %p158 = por %p156, %p157
      %s160 = sadd.s32 %s159, 1
      %p163 = scmp.eq.s32.totalorder %s20, 1
      %p164 = scmp.ne.s32.totalorder %s159, %s161
      %p165 = scmp.eq.s32.totalorder %s20, 0
      %p166 = por %p164, %p165
      %p167 = scmp.ne.s32.totalorder %s159, %s161
      %p168 = scmp.eq.s32.totalorder %s25, 1
      %p169 = por %p167, %p168
      %p170 = scmp.ne.s32.totalorder %s161, %s162
      %p171 = scmp.eq.s32.totalorder %s25, 0
      %p172 = por %p170, %p171
      %p173 = scmp.ne.s32.totalorder %s161, %s162
      %p174 = scmp.eq.s32.totalorder %s26, 1
      %p175 = por %p173, %p174
      %p177 = scmp.ne.s32.totalorder %s162, %s176
      %p178 = scmp.eq.s32.totalorder %s26, 0
      %p179 = por %p177, %p178
      %s181 = sadd.s32 %s180, 1
      %p184 = scmp.eq.s32.totalorder %s20, 1
      %p185 = scmp.ne.s32.totalorder %s180, %s182
      %p186 = scmp.eq.s32.totalorder %s20, 0
      %p187 = por %p185, %p186
      %p188 = scmp.ne.s32.totalorder %s180, %s182
      %p189 = scmp.eq.s32.totalorder %s25, 1
      %p190 = por %p188, %p189
      %p191 = scmp.ne.s32.totalorder %s182, %s183
      %p192 = scmp.eq.s32.totalorder %s25, 0
      %p193 = por %p191, %p192
      %p194 = scmp.ne.s32.totalorder %s182, %s183
      %p195 = scmp.eq.s32.totalorder %s26, 1
      %p196 = por %p194, %p195
      %p198 = scmp.ne.s32.totalorder %s183, %s197
      %p199 = scmp.eq.s32.totalorder %s26, 0
      %p200 = por %p198, %p199
      %s202 = sadd.s32 %s201, 1
      %p205 = scmp.eq.s32.totalorder %s20, 1
      %p206 = scmp.ne.s32.totalorder %s201, %s203
      %p207 = scmp.eq.s32.totalorder %s20, 0
      %p208 = por %p206, %p207
      %p209 = scmp.ne.s32.totalorder %s201, %s203
      %p210 = scmp.eq.s32.totalorder %s25, 1
      %p211 = por %p209, %p210
      %p212 = scmp.ne.s32.totalorder %s203, %s204
      %p213 = scmp.eq.s32.totalorder %s25, 0
      %p214 = por %p212, %p213
      %p215 = scmp.ne.s32.totalorder %s203, %s204
      %p216 = scmp.eq.s32.totalorder %s26, 1
      %p217 = por %p215, %p216
      %p219 = scmp.ne.s32.totalorder %s204, %s218
      %p220 = scmp.eq.s32.totalorder %s26, 0
      %p221 = por %p219, %p220
      %s223 = sadd.s32 %s222, 1
      %p226 = scmp.eq.s32.totalorder %s20, 1
      %p227 = scmp.ne.s32.totalorder %s222, %s224
      %p228 = scmp.eq.s32.totalorder %s20, 0
      %p229 = por %p227, %p228
      %p230 = scmp.ne.s32.totalorder %s222, %s224
      %p231 = scmp.eq.s32.totalorder %s25, 1
      %p232 = por %p230, %p231
      %p233 = scmp.ne.s32.totalorder %s224, %s225
      %p234 = scmp.eq.s32.totalorder %s25, 0
      %p235 = por %p233, %p234
      %p236 = scmp.ne.s32.totalorder %s224, %s225
      %p237 = scmp.eq.s32.totalorder %s26, 1
      %p238 = por %p236, %p237
      %p240 = scmp.ne.s32.totalorder %s225, %s239
      %p241 = scmp.eq.s32.totalorder %s26, 0
      %p242 = por %p240, %p241
      %s244 = sadd.s32 %s243, 1
      %p247 = scmp.eq.s32.totalorder %s20, 1
      %p248 = scmp.ne.s32.totalorder %s243, %s245
      %p249 = scmp.eq.s32.totalorder %s20, 0
      %p250 = por %p248, %p249
      %p251 = scmp.ne.s32.totalorder %s243, %s245
      %p252 = scmp.eq.s32.totalorder %s25, 1
      %p253 = por %p251, %p252
      %p254 = scmp.ne.s32.totalorder %s245, %s246
      %p255 = scmp.eq.s32.totalorder %s25, 0
      %p256 = por %p254, %p255
      %p257 = scmp.ne.s32.totalorder %s245, %s246
      %p258 = scmp.eq.s32.totalorder %s26, 1
      %p259 = por %p257, %p258
      %p261 = scmp.ne.s32.totalorder %s246, %s260
      %p262 = scmp.eq.s32.totalorder %s26, 0
      %p263 = por %p261, %p262
      %s264 = ssub.s32 %s20, %s27
      %p265 = scmp.eq.s32.totalorder %s264, 0
      %s267 = sadd.s32 %s266, 1
      %s268 = scalar_select %p265, %s266, %s267
      %p271 = pneg %p265
      %p272 = scmp.eq.s32.totalorder %s20, 1
      %p273 = por %p271, %p272
      %p274 = scmp.ne.s32.totalorder %s266, %s269
      %p275 = scmp.eq.s32.totalorder %s20, 0
      %p276 = por %p274, %p275
      %p277 = scmp.ne.s32.totalorder %s266, %s269
      %p278 = scmp.eq.s32.totalorder %s25, 1
      %p279 = por %p277, %p278
      %p280 = scmp.ne.s32.totalorder %s269, %s270
      %p281 = scmp.eq.s32.totalorder %s25, 0
      %p282 = por %p280, %p281
      %p283 = scmp.ne.s32.totalorder %s269, %s270
      %p284 = scmp.eq.s32.totalorder %s26, 1
      %p285 = por %p283, %p284
      %p287 = scmp.ne.s32.totalorder %s270, %s286
      %p288 = scmp.eq.s32.totalorder %s26, 0
      %p289 = por %p287, %p288
      %p290 = scmp.le.s32.totalorder 1, %s20
      %p291 = scmp.lt.s32.totalorder %s20, 3
      %p292 = pnand %p290, %p291
      %p293 = pneg %p292
      // Predicated region
      $region9: #{tpu_custom_call.1} parent=5 // pred_check
        _
      $region10: #{tpu_custom_call.1} parent=5 // pred_check_branch
        %295 = sbr.rel (%p292) target = $region12
      $region11: #{tpu_custom_call.1} parent=5 // pred_region
        %s296 = ssub.s32 %s20, 1
        // Predicated region
        $region13: #{tpu_custom_call.1} parent=11 // pred_check
          %p297 = pneg %p67
        $region14: #{tpu_custom_call.1} parent=11 // pred_check_branch
          %299 = sbr.rel (%p297) target = $region16
        $region15: #{tpu_custom_call.1} parent=11 // pred_region
          _
        $region16: #{tpu_custom_call.1} parent=11 // pred_fallthru
          _
        // Predicated region
        $region17: #{tpu_custom_call.1} parent=11 // pred_check
          %p300 = pneg %p88
        $region18: #{tpu_custom_call.1} parent=11 // pred_check_branch
          %302 = sbr.rel (%p300) target = $region20
        $region19: #{tpu_custom_call.1} parent=11 // pred_region
          _
        $region20: #{tpu_custom_call.1} parent=11 // pred_fallthru
          _
        // Predicated region
        $region21: #{tpu_custom_call.1} parent=11 // pred_check
          %p303 = pneg %p109
        $region22: #{tpu_custom_call.1} parent=11 // pred_check_branch
          %305 = sbr.rel (%p303) target = $region24
        $region23: #{tpu_custom_call.1} parent=11 // pred_region
          _
        $region24: #{tpu_custom_call.1} parent=11 // pred_fallthru
          _
        // Predicated region
        $region25: #{tpu_custom_call.1} parent=11 // pred_check
          %p306 = pneg %p130
        $region26: #{tpu_custom_call.1} parent=11 // pred_check_branch
          %308 = sbr.rel (%p306) target = $region28
        $region27: #{tpu_custom_call.1} parent=11 // pred_region
          _
        $region28: #{tpu_custom_call.1} parent=11 // pred_fallthru
          _
        // Predicated region
        $region29: #{tpu_custom_call.1} parent=11 // pred_check
          %p309 = pneg %p151
        $region30: #{tpu_custom_call.1} parent=11 // pred_check_branch
          %311 = sbr.rel (%p309) target = $region32
        $region31: #{tpu_custom_call.1} parent=11 // pred_region
          _
        $region32: #{tpu_custom_call.1} parent=11 // pred_fallthru
          _
        // Predicated region
        $region33: #{tpu_custom_call.1} parent=11 // pred_check
          %p312 = pneg %p172
        $region34: #{tpu_custom_call.1} parent=11 // pred_check_branch
          %314 = sbr.rel (%p312) target = $region36
        $region35: #{tpu_custom_call.1} parent=11 // pred_region
          _
        $region36: #{tpu_custom_call.1} parent=11 // pred_fallthru
          _
        // Predicated region
        $region37: #{tpu_custom_call.1} parent=11 // pred_check
          %p315 = pneg %p193
        $region38: #{tpu_custom_call.1} parent=11 // pred_check_branch
          %317 = sbr.rel (%p315) target = $region40
        $region39: #{tpu_custom_call.1} parent=11 // pred_region
          _
        $region40: #{tpu_custom_call.1} parent=11 // pred_fallthru
          _
        // Predicated region
        $region41: #{tpu_custom_call.1} parent=11 // pred_check
          %p318 = pneg %p214
        $region42: #{tpu_custom_call.1} parent=11 // pred_check_branch
          %320 = sbr.rel (%p318) target = $region44
        $region43: #{tpu_custom_call.1} parent=11 // pred_region
          _
        $region44: #{tpu_custom_call.1} parent=11 // pred_fallthru
          _
        // Predicated region
        $region45: #{tpu_custom_call.1} parent=11 // pred_check
          %p321 = pneg %p235
        $region46: #{tpu_custom_call.1} parent=11 // pred_check_branch
          %323 = sbr.rel (%p321) target = $region48
        $region47: #{tpu_custom_call.1} parent=11 // pred_region
          _
        $region48: #{tpu_custom_call.1} parent=11 // pred_fallthru
          _
        // Predicated region
        $region49: #{tpu_custom_call.1} parent=11 // pred_check
          %p324 = pneg %p256
        $region50: #{tpu_custom_call.1} parent=11 // pred_check_branch
          %326 = sbr.rel (%p324) target = $region52
        $region51: #{tpu_custom_call.1} parent=11 // pred_region
          _
        $region52: #{tpu_custom_call.1} parent=11 // pred_fallthru
          _
      $region12: #{tpu_custom_call.1} parent=5 // pred_fallthru
        _
      %p327 = scmp.lt.s32.totalorder %s20, 2
      // Predicated region
      $region53: #{tpu_custom_call.1} parent=5 // pred_check
        %p328 = pneg %p327
      $region54: #{tpu_custom_call.1} parent=5 // pred_check_branch
        %330 = sbr.rel (%p328) target = $region56
      $region55: #{tpu_custom_call.1} parent=5 // pred_region
        // Predicated region
        $region57: #{tpu_custom_call.1} parent=55 // pred_check
          %p331 = pneg %p40
        $region58: #{tpu_custom_call.1} parent=55 // pred_check_branch
          %333 = sbr.rel (%p331) target = $region60
        $region59: #{tpu_custom_call.1} parent=55 // pred_region
          %s334 = smul.u32 16, %s20
          %p335 = scmp.lt.s32.totalorder %s334, 31
          %s336 = scalar_select %p335, %s334, 31
          %s337 = smul.addr %s336, 8
          %s338 = scalar_lea.vmem %s0, %s337
          %s339 = smul.u32 16, %s20
        $region60: #{tpu_custom_call.1} parent=55 // pred_fallthru
          _
      $region56: #{tpu_custom_call.1} parent=5 // pred_fallthru
        _
      %p340 = scmp.le.s32.totalorder 1, %s20
      %p341 = scmp.lt.s32.totalorder %s20, 3
      %p342 = pnand %p340, %p341
      %p343 = pneg %p342
      // Predicated region
      $region61: #{tpu_custom_call.1} parent=5 // pred_check
        _
      $region62: #{tpu_custom_call.1} parent=5 // pred_check_branch
        %345 = sbr.rel (%p342) target = $region64
      $region63: #{tpu_custom_call.1} parent=5 // pred_region
        %s346 = ssub.s32 %s20, 1
        %s347 = smul.u32 16, %s25
        %p348 = scmp.lt.s32.totalorder %s347, 31
        %s349 = scalar_select %p348, %s347, 31
        %s350 = smul.addr %s349, 8
        %s351 = scalar_lea.vmem %s0, %s350
        %p352 = pneg %p46
        %p353 = pneg %p43
        %p354 = pneg %p67
        %p355 = pneg %p64
        %p356 = pneg %p88
        %p357 = pneg %p85
        %p358 = pneg %p109
        %p359 = pneg %p106
        %p360 = pneg %p130
        %p361 = pneg %p127
        %p362 = pneg %p151
        %p363 = pneg %p148
        %p364 = pneg %p172
        %p365 = pneg %p169
        %p366 = pneg %p193
        %p367 = pneg %p190
        %p368 = pneg %p214
        %p369 = pneg %p211
        %p370 = pneg %p235
        %p371 = pneg %p232
        %p372 = pneg %p256
        %p373 = pneg %p253
        %p374 = pneg %p282
        %p375 = pneg %p279
        %s376 = sand.u32 %s269, 1
        %s377 = scalar_lea.sflag [#allocation3], %s376
        %s378 = sand.u32 %s269, 1
        %s379 = smul.addr %s378, 8
        %s380 = scalar_lea.vmem [#allocation2], %s379
        %s381 = smul.u32 16, %s25
        %p382 = scmp.lt.s32.totalorder %s381, 31
        %s383 = scalar_select %p382, %s381, 31
        %s384 = smul.addr %s383, 8
        %s385 = scalar_lea.vmem %s0, %s384
        %s386 = smul.u32 16, %s25
        %v387 = vld [vmem:[%s385] sm:$0xff]
        %v388 = vld [vmem:[%s385 + $0x8] sm:$0xff]
        %v389 = vld [vmem:[%s385 + $0x10] sm:$0xff]
        %v390 = vld [vmem:[%s385 + $0x18] sm:$0xff]
        %v391 = vld [vmem:[%s385 + $0x20] sm:$0xff]
        %v392 = vld [vmem:[%s385 + $0x28] sm:$0xff]
        %v393 = vld [vmem:[%s385 + $0x30] sm:$0xff]
        %v394 = vld [vmem:[%s385 + $0x38] sm:$0xff]
        %v395 = vld [vmem:[%s385 + $0x40] sm:$0xff]
        %v396 = vld [vmem:[%s385 + $0x48] sm:$0xff]
        %v397 = vld [vmem:[%s385 + $0x50] sm:$0xff]
        %v398 = vld [vmem:[%s385 + $0x58] sm:$0xff]
        %v399 = vld [vmem:[%s385 + $0x60] sm:$0xff]
        %v400 = vld [vmem:[%s385 + $0x68] sm:$0xff]
        %v401 = vld [vmem:[%s385 + $0x70] sm:$0xff]
        %v402 = vld [vmem:[%s385 + $0x78] sm:$0xff]
        %v403 = vld [vmem:[%s1] sm:$0xff]
        %v404 = vld [vmem:[%s1 + $0x8] sm:$0xff]
        %v405 = vld [vmem:[%s1 + $0x10] sm:$0xff]
        %v406 = vld [vmem:[%s1 + $0x18] sm:$0xff]
        %v407 = vld [vmem:[%s1 + $0x20] sm:$0xff]
        %v408 = vld [vmem:[%s1 + $0x28] sm:$0xff]
        %v409 = vld [vmem:[%s1 + $0x30] sm:$0xff]
        %v410 = vld [vmem:[%s1 + $0x38] sm:$0xff]
        %v411 = vld [vmem:[%s1 + $0x40] sm:$0xff]
        %v412 = vld [vmem:[%s1 + $0x48] sm:$0xff]
        %v413 = vld [vmem:[%s1 + $0x50] sm:$0xff]
        %v414 = vld [vmem:[%s1 + $0x58] sm:$0xff]
        %v415 = vld [vmem:[%s1 + $0x60] sm:$0xff]
        %v416 = vld [vmem:[%s1 + $0x68] sm:$0xff]
        %v417 = vld [vmem:[%s1 + $0x70] sm:$0xff]
        %v418 = vld [vmem:[%s1 + $0x78] sm:$0xff]
        %v419 = vadd.f32 %v387, %v403
        %v420 = vadd.f32 %v388, %v404
        %v421 = vadd.f32 %v389, %v405
        %v422 = vadd.f32 %v390, %v406
        %v423 = vadd.f32 %v391, %v407
        %v424 = vadd.f32 %v392, %v408
        %v425 = vadd.f32 %v393, %v409
        %v426 = vadd.f32 %v394, %v410
        %v427 = vadd.f32 %v395, %v411
        %v428 = vadd.f32 %v396, %v412
        %v429 = vadd.f32 %v397, %v413
        %v430 = vadd.f32 %v398, %v414
        %v431 = vadd.f32 %v399, %v415
        %v432 = vadd.f32 %v400, %v416
        %v433 = vadd.f32 %v401, %v417
        %v434 = vadd.f32 %v402, %v418
        %v435 = vld [vmem:[%s3] sm:$0xff]
        %v436 = vld [vmem:[%s2] sm:$0x1]
        %v438 = vlaneseq
        %v439 = vshrl.u32 %v438, 7
        %v440 = vsub.s32 0, %v439
        %v441 = vrot.slane %v436, %v440
        %443 = vmatprep.subr.mxu0 0.0
        %444 = vmatpush1.msra.mxu0 %v402
        %445 = vmatprep.subr.mxu0 0.0
        %446 = vmatpush1.msra.mxu0 %v401
        %447 = vmatprep.subr.mxu0 0.0
        %448 = vmatpush1.msra.mxu0 %v400
        %449 = vmatprep.subr.mxu0 0.0
        %450 = vmatpush1.msra.mxu0 %v399
        %451 = vmatprep.subr.mxu0 0.0
        %452 = vmatpush1.msra.mxu0 %v398
        %453 = vmatprep.subr.mxu0 0.0
        %454 = vmatpush1.msra.mxu0 %v397
        %455 = vmatprep.subr.mxu0 0.0
        %456 = vmatpush1.msra.mxu0 %v396
        %457 = vmatprep.subr.mxu0 0.0
        %458 = vmatpush1.msra.mxu0 %v395
        %459 = vmatprep.subr.mxu0 0.0
        %460 = vmatpush1.msra.mxu0 %v394
        %461 = vmatprep.subr.mxu0 0.0
        %462 = vmatpush1.msra.mxu0 %v393
        %463 = vmatprep.subr.mxu0 0.0
        %464 = vmatpush1.msra.mxu0 %v392
        %465 = vmatprep.subr.mxu0 0.0
        %466 = vmatpush1.msra.mxu0 %v391
        %467 = vmatprep.subr.mxu0 0.0
        %468 = vmatpush1.msra.mxu0 %v390
        %469 = vmatprep.subr.mxu0 0.0
        %470 = vmatpush1.msra.mxu0 %v389
        %471 = vmatprep.subr.mxu0 0.0
        %472 = vmatpush1.msra.mxu0 %v388
        %473 = vmatprep.subr.mxu0 0.0
        %474 = vmatpush1.msra.mxu0 %v387
        %475 = vmatprep.subr.mxu0 0.0
        %476 = vmatpush2.msra.mxu0 0.0
        %477 = vmatprep.subr.mxu0 0.0
        %478 = vmatpush2.msra.mxu0 0.0
        %479 = vmatprep.subr.mxu0 0.0
        %480 = vmatpush2.msra.mxu0 0.0
        %481 = vmatprep.subr.mxu0 0.0
        %482 = vmatpush2.msra.mxu0 0.0
        %483 = vmatprep.subr.mxu0 0.0
        %484 = vmatpush2.msra.mxu0 0.0
        %485 = vmatprep.subr.mxu0 0.0
        %486 = vmatpush2.msra.mxu0 0.0
        %487 = vmatprep.subr.mxu0 0.0
        %488 = vmatpush2.msra.mxu0 0.0
        %489 = vmatprep.subr.mxu0 0.0
        %490 = vmatpush2.msra.mxu0 0.0
        %491 = vmatprep.subr.mxu0 0.0
        %492 = vmatpush2.msra.mxu0 0.0
        %493 = vmatprep.subr.mxu0 0.0
        %494 = vmatpush2.msra.mxu0 0.0
        %495 = vmatprep.subr.mxu0 0.0
        %496 = vmatpush2.msra.mxu0 0.0
        %497 = vmatprep.subr.mxu0 0.0
        %498 = vmatpush2.msra.mxu0 0.0
        %499 = vmatprep.subr.mxu0 0.0
        %500 = vmatpush2.msra.mxu0 0.0
        %501 = vmatprep.subr.mxu0 0.0
        %502 = vmatpush2.msra.mxu0 0.0
        %503 = vmatprep.subr.mxu0 0.0
        %504 = vmatpush2.msra.mxu0 0.0
        %505 = vmatprep.subr.mxu0 0.0
        %506 = vmatpush2.msra.mxu0 0.0
        %507 = vmatprep.mubr.f32.mxu0 0.0
        %508 = vmatmul.mubr.f32.gmra.mxu0 %v435
        %v509 = vpop.f32.mrf.mxu0
        %v510 = vadd.f32 %v441, %v509
        %v511 = vpop.f32.mrf.mxu0
        %512 = vdwg.mxu0
        %v513 = vld [vmem:[%s7] sm:$0xff]
        %v514 = vld [vmem:[%s7 + $0x8] sm:$0xff]
        %v515 = vld [vmem:[%s7 + $0x10] sm:$0xff]
        %v516 = vld [vmem:[%s7 + $0x18] sm:$0xff]
        %v517 = vld [vmem:[%s8] sm:$0x1]
        %v519 = vlaneseq
        %v520 = vshrl.u32 %v519, 7
        %v521 = vsub.s32 0, %v520
        %v522 = vrot.slane %v517, %v521
        %vm524 = vcmask 261120
        %v526 = vsel %vm524, %v419, 0
        %v529 = vsel %vm524, %v420, 0
        %v532 = vsel %vm524, %v421, 0
        %v535 = vsel %vm524, %v422, 0
        %v538 = vsel %vm524, %v423, 0
        %v541 = vsel %vm524, %v424, 0
        %v544 = vsel %vm524, %v425, 0
        %v547 = vsel %vm524, %v426, 0
        %v550 = vsel %vm524, %v427, 0
        %v553 = vsel %vm524, %v428, 0
        %v556 = vsel %vm524, %v429, 0
        %v559 = vsel %vm524, %v430, 0
        %v562 = vsel %vm524, %v431, 0
        %v565 = vsel %vm524, %v432, 0
        %v568 = vsel %vm524, %v433, 0
        %v571 = vsel %vm524, %v434, 0
        %573 = vmatprep.subr.mxu0 0.0
        %574 = vmatpush1.msra.mxu0 0.0
        %575 = vmatprep.subr.mxu0 0.0
        %576 = vmatpush1.msra.mxu0 0.0
        %577 = vmatprep.subr.mxu0 0.0
        %578 = vmatpush1.msra.mxu0 0.0
        %579 = vmatprep.subr.mxu0 0.0
        %580 = vmatpush1.msra.mxu0 0.0
        %581 = vmatprep.subr.mxu0 0.0
        %582 = vmatpush1.msra.mxu0 0.0
        %583 = vmatprep.subr.mxu0 0.0
        %584 = vmatpush1.msra.mxu0 0.0
        %585 = vmatprep.subr.mxu0 0.0
        %586 = vmatpush1.msra.mxu0 0.0
        %587 = vmatprep.subr.mxu0 0.0
        %588 = vmatpush1.msra.mxu0 0.0
        %589 = vmatprep.subr.mxu0 0.0
        %590 = vmatpush1.msra.mxu0 0.0
        %591 = vmatprep.subr.mxu0 0.0
        %592 = vmatpush1.msra.mxu0 0.0
        %593 = vmatprep.subr.mxu0 0.0
        %594 = vmatpush1.msra.mxu0 0.0
        %595 = vmatprep.subr.mxu0 0.0
        %596 = vmatpush1.msra.mxu0 0.0
        %597 = vmatprep.subr.mxu0 0.0
        %598 = vmatpush1.msra.mxu0 %v516
        %599 = vmatprep.subr.mxu0 0.0
        %600 = vmatpush1.msra.mxu0 %v515
        %601 = vmatprep.subr.mxu0 0.0
        %602 = vmatpush1.msra.mxu0 %v514
        %603 = vmatprep.subr.mxu0 0.0
        %604 = vmatpush1.msra.mxu0 %v513
        %605 = vmatprep.subr.mxu0 0.0
        %606 = vmatpush2.msra.mxu0 0.0
        %607 = vmatprep.subr.mxu0 0.0
        %608 = vmatpush2.msra.mxu0 0.0
        %609 = vmatprep.subr.mxu0 0.0
        %610 = vmatpush2.msra.mxu0 0.0
        %611 = vmatprep.subr.mxu0 0.0
        %612 = vmatpush2.msra.mxu0 0.0
        %613 = vmatprep.subr.mxu0 0.0
        %614 = vmatpush2.msra.mxu0 0.0
        %615 = vmatprep.subr.mxu0 0.0
        %616 = vmatpush2.msra.mxu0 0.0
        %617 = vmatprep.subr.mxu0 0.0
        %618 = vmatpush2.msra.mxu0 0.0
        %619 = vmatprep.subr.mxu0 0.0
        %620 = vmatpush2.msra.mxu0 0.0
        %621 = vmatprep.subr.mxu0 0.0
        %622 = vmatpush2.msra.mxu0 0.0
        %623 = vmatprep.subr.mxu0 0.0
        %624 = vmatpush2.msra.mxu0 0.0
        %625 = vmatprep.subr.mxu0 0.0
        %626 = vmatpush2.msra.mxu0 0.0
        %627 = vmatprep.subr.mxu0 0.0
        %628 = vmatpush2.msra.mxu0 0.0
        %629 = vmatprep.subr.mxu0 0.0
        %630 = vmatpush2.msra.mxu0 0.0
        %631 = vmatprep.subr.mxu0 0.0
        %632 = vmatpush2.msra.mxu0 0.0
        %633 = vmatprep.subr.mxu0 0.0
        %634 = vmatpush2.msra.mxu0 0.0
        %635 = vmatprep.subr.mxu0 0.0
        %636 = vmatpush2.msra.mxu0 0.0
        %637 = vmatprep.mubr.f32.mxu0 0.0
        %638 = vmatmul.mubr.f32.gmra.mxu0 %v526
        %v639 = vpop.f32.mrf.mxu0
        %v640 = vadd.f32 %v522, %v639
        %v641 = vpop.f32.mrf.mxu0
        %642 = vmatprep.mubr.f32.mxu0 0.0
        %643 = vmatmul.mubr.f32.gmra.mxu0 %v529
        %v644 = vpop.f32.mrf.mxu0
        %v645 = vadd.f32 %v522, %v644
        %v646 = vpop.f32.mrf.mxu0
        %647 = vmatprep.mubr.f32.mxu0 0.0
        %648 = vmatmul.mubr.f32.gmra.mxu0 %v532
        %v649 = vpop.f32.mrf.mxu0
        %v650 = vadd.f32 %v522, %v649
        %v651 = vpop.f32.mrf.mxu0
        %652 = vmatprep.mubr.f32.mxu0 0.0
        %653 = vmatmul.mubr.f32.gmra.mxu0 %v535
        %v654 = vpop.f32.mrf.mxu0
        %v655 = vadd.f32 %v522, %v654
        %v656 = vpop.f32.mrf.mxu0
        %657 = vmatprep.mubr.f32.mxu0 0.0
        %658 = vmatmul.mubr.f32.gmra.mxu0 %v538
        %v659 = vpop.f32.mrf.mxu0
        %v660 = vadd.f32 %v522, %v659
        %v661 = vpop.f32.mrf.mxu0
        %662 = vmatprep.mubr.f32.mxu0 0.0
        %663 = vmatmul.mubr.f32.gmra.mxu0 %v541
        %v664 = vpop.f32.mrf.mxu0
        %v665 = vadd.f32 %v522, %v664
        %v666 = vpop.f32.mrf.mxu0
        %667 = vmatprep.mubr.f32.mxu0 0.0
        %668 = vmatmul.mubr.f32.gmra.mxu0 %v544
        %v669 = vpop.f32.mrf.mxu0
        %v670 = vadd.f32 %v522, %v669
        %v671 = vpop.f32.mrf.mxu0
        %672 = vmatprep.mubr.f32.mxu0 0.0
        %673 = vmatmul.mubr.f32.gmra.mxu0 %v547
        %v674 = vpop.f32.mrf.mxu0
        %v675 = vadd.f32 %v522, %v674
        %v676 = vpop.f32.mrf.mxu0
        %677 = vmatprep.mubr.f32.mxu0 0.0
        %678 = vmatmul.mubr.f32.gmra.mxu0 %v550
        %v679 = vpop.f32.mrf.mxu0
        %v680 = vadd.f32 %v522, %v679
        %v681 = vpop.f32.mrf.mxu0
        %682 = vmatprep.mubr.f32.mxu0 0.0
        %683 = vmatmul.mubr.f32.gmra.mxu0 %v553
        %v684 = vpop.f32.mrf.mxu0
        %v685 = vadd.f32 %v522, %v684
        %v686 = vpop.f32.mrf.mxu0
        %687 = vmatprep.mubr.f32.mxu0 0.0
        %688 = vmatmul.mubr.f32.gmra.mxu0 %v556
        %v689 = vpop.f32.mrf.mxu0
        %v690 = vadd.f32 %v522, %v689
        %v691 = vpop.f32.mrf.mxu0
        %692 = vmatprep.mubr.f32.mxu0 0.0
        %693 = vmatmul.mubr.f32.gmra.mxu0 %v559
        %v694 = vpop.f32.mrf.mxu0
        %v695 = vadd.f32 %v522, %v694
        %v696 = vpop.f32.mrf.mxu0
        %697 = vmatprep.mubr.f32.mxu0 0.0
        %698 = vmatmul.mubr.f32.gmra.mxu0 %v562
        %v699 = vpop.f32.mrf.mxu0
        %v700 = vadd.f32 %v522, %v699
        %v701 = vpop.f32.mrf.mxu0
        %702 = vmatprep.mubr.f32.mxu0 0.0
        %703 = vmatmul.mubr.f32.gmra.mxu0 %v565
        %v704 = vpop.f32.mrf.mxu0
        %v705 = vadd.f32 %v522, %v704
        %v706 = vpop.f32.mrf.mxu0
        %707 = vmatprep.mubr.f32.mxu0 0.0
        %708 = vmatmul.mubr.f32.gmra.mxu0 %v568
        %v709 = vpop.f32.mrf.mxu0
        %v710 = vadd.f32 %v522, %v709
        %v711 = vpop.f32.mrf.mxu0
        %712 = vmatprep.mubr.f32.mxu0 0.0
        %713 = vmatmul.mubr.f32.gmra.mxu0 %v571
        %v714 = vpop.f32.mrf.mxu0
        %v715 = vadd.f32 %v522, %v714
        %v716 = vpop.f32.mrf.mxu0
        %717 = vdwg.mxu0
        %v718 = vld [vmem:[%s5] sm:$0xff]
        %v719 = vld [vmem:[%s5 + $0x8] sm:$0xff]
        %v720 = vld [vmem:[%s5 + $0x10] sm:$0xff]
        %v721 = vld [vmem:[%s5 + $0x18] sm:$0xff]
        %v722 = vld [vmem:[%s6] sm:$0x1]
        %v724 = vlaneseq
        %v725 = vshrl.u32 %v724, 7
        %v726 = vsub.s32 0, %v725
        %v727 = vrot.slane %v722, %v726
        %v730 = vsel %vm524, %v510, 0
        %732 = vmatprep.subr.mxu0 0.0
        %733 = vmatpush1.msra.mxu0 0.0
        %734 = vmatprep.subr.mxu0 0.0
        %735 = vmatpush1.msra.mxu0 0.0
        %736 = vmatprep.subr.mxu0 0.0
        %737 = vmatpush1.msra.mxu0 0.0
        %738 = vmatprep.subr.mxu0 0.0
        %739 = vmatpush1.msra.mxu0 0.0
        %740 = vmatprep.subr.mxu0 0.0
        %741 = vmatpush1.msra.mxu0 0.0
        %742 = vmatprep.subr.mxu0 0.0
        %743 = vmatpush1.msra.mxu0 0.0
        %744 = vmatprep.subr.mxu0 0.0
        %745 = vmatpush1.msra.mxu0 0.0
        %746 = vmatprep.subr.mxu0 0.0
        %747 = vmatpush1.msra.mxu0 0.0
        %748 = vmatprep.subr.mxu0 0.0
        %749 = vmatpush1.msra.mxu0 0.0
        %750 = vmatprep.subr.mxu0 0.0
        %751 = vmatpush1.msra.mxu0 0.0
        %752 = vmatprep.subr.mxu0 0.0
        %753 = vmatpush1.msra.mxu0 0.0
        %754 = vmatprep.subr.mxu0 0.0
        %755 = vmatpush1.msra.mxu0 0.0
        %756 = vmatprep.subr.mxu0 0.0
        %757 = vmatpush1.msra.mxu0 %v721
        %758 = vmatprep.subr.mxu0 0.0
        %759 = vmatpush1.msra.mxu0 %v720
        %760 = vmatprep.subr.mxu0 0.0
        %761 = vmatpush1.msra.mxu0 %v719
        %762 = vmatprep.subr.mxu0 0.0
        %763 = vmatpush1.msra.mxu0 %v718
        %764 = vmatprep.subr.mxu0 0.0
        %765 = vmatpush2.msra.mxu0 0.0
        %766 = vmatprep.subr.mxu0 0.0
        %767 = vmatpush2.msra.mxu0 0.0
        %768 = vmatprep.subr.mxu0 0.0
        %769 = vmatpush2.msra.mxu0 0.0
        %770 = vmatprep.subr.mxu0 0.0
        %771 = vmatpush2.msra.mxu0 0.0
        %772 = vmatprep.subr.mxu0 0.0
        %773 = vmatpush2.msra.mxu0 0.0
        %774 = vmatprep.subr.mxu0 0.0
        %775 = vmatpush2.msra.mxu0 0.0
        %776 = vmatprep.subr.mxu0 0.0
        %777 = vmatpush2.msra.mxu0 0.0
        %778 = vmatprep.subr.mxu0 0.0
        %779 = vmatpush2.msra.mxu0 0.0
        %780 = vmatprep.subr.mxu0 0.0
        %781 = vmatpush2.msra.mxu0 0.0
        %782 = vmatprep.subr.mxu0 0.0
        %783 = vmatpush2.msra.mxu0 0.0
        %784 = vmatprep.subr.mxu0 0.0
        %785 = vmatpush2.msra.mxu0 0.0
        %786 = vmatprep.subr.mxu0 0.0
        %787 = vmatpush2.msra.mxu0 0.0
        %788 = vmatprep.subr.mxu0 0.0
        %789 = vmatpush2.msra.mxu0 0.0
        %790 = vmatprep.subr.mxu0 0.0
        %791 = vmatpush2.msra.mxu0 0.0
        %792 = vmatprep.subr.mxu0 0.0
        %793 = vmatpush2.msra.mxu0 0.0
        %794 = vmatprep.subr.mxu0 0.0
        %795 = vmatpush2.msra.mxu0 0.0
        %796 = vmatprep.mubr.f32.mxu0 0.0
        %797 = vmatmul.mubr.f32.gmra.mxu0 %v730
        %v798 = vpop.f32.mrf.mxu0
        %v799 = vadd.f32 %v727, %v798
        %v800 = vpop.f32.mrf.mxu0
        %801 = vdwg.mxu0
        %v802 = vmul.f32 %v799, 0.35355338
        %803 = vmatprep.subr.mxu0 0.0
        %804 = vmatpush1.msra.mxu0 0.0
        %805 = vmatprep.subr.mxu0 0.0
        %806 = vmatpush1.msra.mxu0 0.0
        %807 = vmatprep.subr.mxu0 0.0
        %808 = vmatpush1.msra.mxu0 0.0
        %809 = vmatprep.subr.mxu0 0.0
        %810 = vmatpush1.msra.mxu0 0.0
        %811 = vmatprep.subr.mxu0 0.0
        %812 = vmatpush1.msra.mxu0 0.0
        %813 = vmatprep.subr.mxu0 0.0
        %814 = vmatpush1.msra.mxu0 0.0
        %815 = vmatprep.subr.mxu0 0.0
        %816 = vmatpush1.msra.mxu0 0.0
        %817 = vmatprep.subr.mxu0 0.0
        %818 = vmatpush1.msra.mxu0 0.0
        %819 = vmatprep.subr.mxu0 0.0
        %820 = vmatpush1.msra.mxu0 0.0
        %821 = vmatprep.subr.mxu0 0.0
        %822 = vmatpush1.msra.mxu0 0.0
        %823 = vmatprep.subr.mxu0 0.0
        %824 = vmatpush1.msra.mxu0 0.0
        %825 = vmatprep.subr.mxu0 0.0
        %826 = vmatpush1.msra.mxu0 0.0
        %827 = vmatprep.subr.mxu0 0.0
        %828 = vmatpush1.msra.mxu0 %v516
        %829 = vmatprep.subr.mxu0 0.0
        %830 = vmatpush1.msra.mxu0 %v515
        %831 = vmatprep.subr.mxu0 0.0
        %832 = vmatpush1.msra.mxu0 %v514
        %833 = vmatprep.subr.mxu0 0.0
        %834 = vmatpush1.msra.mxu0 %v513
        %835 = vmatprep.subr.mxu0 0.0
        %836 = vmatpush2.msra.mxu0 0.0
        %837 = vmatprep.subr.mxu0 0.0
        %838 = vmatpush2.msra.mxu0 0.0
        %839 = vmatprep.subr.mxu0 0.0
        %840 = vmatpush2.msra.mxu0 0.0
        %841 = vmatprep.subr.mxu0 0.0
        %842 = vmatpush2.msra.mxu0 0.0
        %843 = vmatprep.subr.mxu0 0.0
        %844 = vmatpush2.msra.mxu0 0.0
        %845 = vmatprep.subr.mxu0 0.0
        %846 = vmatpush2.msra.mxu0 0.0
        %847 = vmatprep.subr.mxu0 0.0
        %848 = vmatpush2.msra.mxu0 0.0
        %849 = vmatprep.subr.mxu0 0.0
        %850 = vmatpush2.msra.mxu0 0.0
        %851 = vmatprep.subr.mxu0 0.0
        %852 = vmatpush2.msra.mxu0 0.0
        %853 = vmatprep.subr.mxu0 0.0
        %854 = vmatpush2.msra.mxu0 0.0
        %855 = vmatprep.subr.mxu0 0.0
        %856 = vmatpush2.msra.mxu0 0.0
        %857 = vmatprep.subr.mxu0 0.0
        %858 = vmatpush2.msra.mxu0 0.0
        %859 = vmatprep.subr.mxu0 0.0
        %860 = vmatpush2.msra.mxu0 0.0
        %861 = vmatprep.subr.mxu0 0.0
        %862 = vmatpush2.msra.mxu0 0.0
        %863 = vmatprep.subr.mxu0 0.0
        %864 = vmatpush2.msra.mxu0 0.0
        %865 = vmatprep.subr.mxu0 0.0
        %866 = vmatpush2.msra.mxu0 0.0
        %867 = vmatprep.mubr.f32.mxu0 0.0
        %868 = vmatmul.mubr.f32.gmra.mxu0 %v730
        %v869 = vpop.f32.mrf.mxu0
        %v870 = vadd.f32 %v522, %v869
        %v871 = vpop.f32.mrf.mxu0
        %872 = vdwg.mxu0
        %v873 = vld [vmem:[%s4] sm:$0xf]
        %v875 = vcombine.high %v802, %v802
        %v877 = vunpack.c.l.s4 1966171168
        %v878 = vunpack.c.0.s8 %v877
        %v879 = vlaneseq
        %v880 = vshrl.u32 %v879, 7
        %v881 = vsub.s32 %v878, %v880
        %v882 = vrot.slane %v802, %v881
        %v884 = vunpack.c.l.s4 1966171168
        %v885 = vunpack.c.0.s8 %v884
        %v886 = vlaneseq
        %v887 = vshrl.u32 %v886, 7
        %v888 = vsub.s32 %v885, %v887
        %v889 = vrot.slane %v875, %v888
        %v890 = vcombine.high %v882, %v882
        %v891 = vcombine.high %v889, %v889
        %v893 = vunpack.c.l.s4 1966171168
        %v894 = vunpack.c.0.s8 %v893
        %v895 = vlaneseq
        %v896 = vshrl.u32 %v895, 7
        %v897 = vsub.s32 %v894, %v896
        %v898 = vrot.slane %v882, %v897
        %v900 = vunpack.c.l.s4 1966171168
        %v901 = vunpack.c.0.s8 %v900
        %v902 = vlaneseq
        %v903 = vshrl.u32 %v902, 7
        %v904 = vsub.s32 %v901, %v903
        %v905 = vrot.slane %v889, %v904
        %v907 = vunpack.c.l.s4 1966171168
        %v908 = vunpack.c.0.s8 %v907
        %v909 = vlaneseq
        %v910 = vshrl.u32 %v909, 7
        %v911 = vsub.s32 %v908, %v910
        %v912 = vrot.slane %v890, %v911
        %v914 = vunpack.c.l.s4 1966171168
        %v915 = vunpack.c.0.s8 %v914
        %v916 = vlaneseq
        %v917 = vshrl.u32 %v916, 7
        %v918 = vsub.s32 %v915, %v917
        %v919 = vrot.slane %v891, %v918
        %v920 = vcombine.high %v898, %v898
        %v921 = vcombine.high %v905, %v905
        %v922 = vcombine.high %v912, %v912
        %v923 = vcombine.high %v919, %v919
        %v924 = vlaneseq
        %v925 = vshrl.u32 %v924, 7
        %v926 = vsub.s32 0, %v925
        %v927 = vrot.slane %v898, %v926
        %v928 = vlaneseq
        %v929 = vshrl.u32 %v928, 7
        %v930 = vsub.s32 0, %v929
        %v931 = vrot.slane %v912, %v930
        %v932 = vlaneseq
        %v933 = vshrl.u32 %v932, 7
        %v934 = vsub.s32 0, %v933
        %v935 = vrot.slane %v920, %v934
        %v936 = vlaneseq
        %v937 = vshrl.u32 %v936, 7
        %v938 = vsub.s32 0, %v937
        %v939 = vrot.slane %v922, %v938
        %v940 = vlaneseq
        %v941 = vshrl.u32 %v940, 7
        %v942 = vsub.s32 0, %v941
        %v943 = vrot.slane %v905, %v942
        %v944 = vlaneseq
        %v945 = vshrl.u32 %v944, 7
        %v946 = vsub.s32 0, %v945
        %v947 = vrot.slane %v919, %v946
        %v948 = vlaneseq
        %v949 = vshrl.u32 %v948, 7
        %v950 = vsub.s32 0, %v949
        %v951 = vrot.slane %v921, %v950
        %v952 = vlaneseq
        %v953 = vshrl.u32 %v952, 7
        %v954 = vsub.s32 0, %v953
        %v955 = vrot.slane %v923, %v954
        %v964 = vmul.f32 %v927, %v873
        %v965 = vmul.f32 %v931, %v873
        %v966 = vmul.f32 %v935, %v873
        %v967 = vmul.f32 %v939, %v873
        %v968 = vmul.f32 %v943, %v873
        %v969 = vmul.f32 %v947, %v873
        %v970 = vmul.f32 %v951, %v873
        %v971 = vmul.f32 %v955, %v873
        %v973 = vsel %vm524, %v964, 0
        %v976 = vsel %vm524, %v640, 0
        %v979 = vsel %vm524, %v645, 0
        %981 = vmatprep.subr.mxu0 0.0
        %982 = vmatpush1.xpose.msra.mxu0 0.0
        %983 = vmatprep.subr.mxu0 0.0
        %984 = vmatpush1.xpose.msra.mxu0 0.0
        %985 = vmatprep.subr.mxu0 0.0
        %986 = vmatpush1.xpose.msra.mxu0 0.0
        %987 = vmatprep.subr.mxu0 0.0
        %988 = vmatpush1.xpose.msra.mxu0 0.0
        %989 = vmatprep.subr.mxu0 0.0
        %990 = vmatpush1.xpose.msra.mxu0 0.0
        %991 = vmatprep.subr.mxu0 0.0
        %992 = vmatpush1.xpose.msra.mxu0 0.0
        %993 = vmatprep.subr.mxu0 0.0
        %994 = vmatpush1.xpose.msra.mxu0 0.0
        %995 = vmatprep.subr.mxu0 0.0
        %996 = vmatpush1.xpose.msra.mxu0 0.0
        %997 = vmatprep.subr.mxu0 0.0
        %998 = vmatpush1.xpose.msra.mxu0 0.0
        %999 = vmatprep.subr.mxu0 0.0
        %1000 = vmatpush1.xpose.msra.mxu0 0.0
        %1001 = vmatprep.subr.mxu0 0.0
        %1002 = vmatpush1.xpose.msra.mxu0 0.0
        %1003 = vmatprep.subr.mxu0 0.0
        %1004 = vmatpush1.xpose.msra.mxu0 0.0
        %1005 = vmatprep.subr.mxu0 0.0
        %1006 = vmatpush1.xpose.msra.mxu0 0.0
        %1007 = vmatprep.subr.mxu0 0.0
        %1008 = vmatpush1.xpose.msra.mxu0 0.0
        %1009 = vmatprep.subr.mxu0 0.0
        %1010 = vmatpush1.xpose.msra.mxu0 %v979
        %1011 = vmatprep.subr.mxu0 0.0
        %1012 = vmatpush1.xpose.msra.mxu0 %v976
        %1013 = vmatprep.subr.mxu0 0.0
        %1014 = vmatpush2.xpose.msra.mxu0 0.0
        %1015 = vmatprep.subr.mxu0 0.0
        %1016 = vmatpush2.xpose.msra.mxu0 0.0
        %1017 = vmatprep.subr.mxu0 0.0
        %1018 = vmatpush2.xpose.msra.mxu0 0.0
        %1019 = vmatprep.subr.mxu0 0.0
        %1020 = vmatpush2.xpose.msra.mxu0 0.0
        %1021 = vmatprep.subr.mxu0 0.0
        %1022 = vmatpush2.xpose.msra.mxu0 0.0
        %1023 = vmatprep.subr.mxu0 0.0
        %1024 = vmatpush2.xpose.msra.mxu0 0.0
        %1025 = vmatprep.subr.mxu0 0.0
        %1026 = vmatpush2.xpose.msra.mxu0 0.0
        %1027 = vmatprep.subr.mxu0 0.0
        %1028 = vmatpush2.xpose.msra.mxu0 0.0
        %1029 = vmatprep.subr.mxu0 0.0
        %1030 = vmatpush2.xpose.msra.mxu0 0.0
        %1031 = vmatprep.subr.mxu0 0.0
        %1032 = vmatpush2.xpose.msra.mxu0 0.0
        %1033 = vmatprep.subr.mxu0 0.0
        %1034 = vmatpush2.xpose.msra.mxu0 0.0
        %1035 = vmatprep.subr.mxu0 0.0
        %1036 = vmatpush2.xpose.msra.mxu0 0.0
        %1037 = vmatprep.subr.mxu0 0.0
        %1038 = vmatpush2.xpose.msra.mxu0 0.0
        %1039 = vmatprep.subr.mxu0 0.0
        %1040 = vmatpush2.xpose.msra.mxu0 0.0
        %1041 = vmatprep.subr.mxu0 0.0
        %1042 = vmatpush2.xpose.msra.mxu0 0.0
        %1043 = vmatprep.subr.mxu0 0.0
        %1044 = vmatpush2.xpose.msra.mxu0 0.0
        %1045 = vmatprep.mubr.f32.mxu0 0.0
        %1046 = vmatmul.mubr.f32.gmra.mxu0 %v973
        %v1047 = vpop.f32.mrf.mxu0
        %v1048 = vadd.f32 0.0, %v1047
        %v1049 = vpop.f32.mrf.mxu0
        %1050 = vdwg.mxu0
        %v1052 = vsel %vm524, %v965, 0
        %v1055 = vsel %vm524, %v650, 0
        %v1058 = vsel %vm524, %v655, 0
        %1060 = vmatprep.subr.mxu0 0.0
        %1061 = vmatpush1.xpose.msra.mxu0 0.0
        %1062 = vmatprep.subr.mxu0 0.0
        %1063 = vmatpush1.xpose.msra.mxu0 0.0
        %1064 = vmatprep.subr.mxu0 0.0
        %1065 = vmatpush1.xpose.msra.mxu0 0.0
        %1066 = vmatprep.subr.mxu0 0.0
        %1067 = vmatpush1.xpose.msra.mxu0 0.0
        %1068 = vmatprep.subr.mxu0 0.0
        %1069 = vmatpush1.xpose.msra.mxu0 0.0
        %1070 = vmatprep.subr.mxu0 0.0
        %1071 = vmatpush1.xpose.msra.mxu0 0.0
        %1072 = vmatprep.subr.mxu0 0.0
        %1073 = vmatpush1.xpose.msra.mxu0 0.0
        %1074 = vmatprep.subr.mxu0 0.0
        %1075 = vmatpush1.xpose.msra.mxu0 0.0
        %1076 = vmatprep.subr.mxu0 0.0
        %1077 = vmatpush1.xpose.msra.mxu0 0.0
        %1078 = vmatprep.subr.mxu0 0.0
        %1079 = vmatpush1.xpose.msra.mxu0 0.0
        %1080 = vmatprep.subr.mxu0 0.0
        %1081 = vmatpush1.xpose.msra.mxu0 0.0
        %1082 = vmatprep.subr.mxu0 0.0
        %1083 = vmatpush1.xpose.msra.mxu0 0.0
        %1084 = vmatprep.subr.mxu0 0.0
        %1085 = vmatpush1.xpose.msra.mxu0 0.0
        %1086 = vmatprep.subr.mxu0 0.0
        %1087 = vmatpush1.xpose.msra.mxu0 0.0
        %1088 = vmatprep.subr.mxu0 0.0
        %1089 = vmatpush1.xpose.msra.mxu0 %v1058
        %1090 = vmatprep.subr.mxu0 0.0
        %1091 = vmatpush1.xpose.msra.mxu0 %v1055
        %1092 = vmatprep.subr.mxu0 0.0
        %1093 = vmatpush2.xpose.msra.mxu0 0.0
        %1094 = vmatprep.subr.mxu0 0.0
        %1095 = vmatpush2.xpose.msra.mxu0 0.0
        %1096 = vmatprep.subr.mxu0 0.0
        %1097 = vmatpush2.xpose.msra.mxu0 0.0
        %1098 = vmatprep.subr.mxu0 0.0
        %1099 = vmatpush2.xpose.msra.mxu0 0.0
        %1100 = vmatprep.subr.mxu0 0.0
        %1101 = vmatpush2.xpose.msra.mxu0 0.0
        %1102 = vmatprep.subr.mxu0 0.0
        %1103 = vmatpush2.xpose.msra.mxu0 0.0
        %1104 = vmatprep.subr.mxu0 0.0
        %1105 = vmatpush2.xpose.msra.mxu0 0.0
        %1106 = vmatprep.subr.mxu0 0.0
        %1107 = vmatpush2.xpose.msra.mxu0 0.0
        %1108 = vmatprep.subr.mxu0 0.0
        %1109 = vmatpush2.xpose.msra.mxu0 0.0
        %1110 = vmatprep.subr.mxu0 0.0
        %1111 = vmatpush2.xpose.msra.mxu0 0.0
        %1112 = vmatprep.subr.mxu0 0.0
        %1113 = vmatpush2.xpose.msra.mxu0 0.0
        %1114 = vmatprep.subr.mxu0 0.0
        %1115 = vmatpush2.xpose.msra.mxu0 0.0
        %1116 = vmatprep.subr.mxu0 0.0
        %1117 = vmatpush2.xpose.msra.mxu0 0.0
        %1118 = vmatprep.subr.mxu0 0.0
        %1119 = vmatpush2.xpose.msra.mxu0 0.0
        %1120 = vmatprep.subr.mxu0 0.0
        %1121 = vmatpush2.xpose.msra.mxu0 0.0
        %1122 = vmatprep.subr.mxu0 0.0
        %1123 = vmatpush2.xpose.msra.mxu0 0.0
        %1124 = vmatprep.mubr.f32.mxu0 0.0
        %1125 = vmatmul.mubr.f32.gmra.mxu0 %v1052
        %v1126 = vpop.f32.mrf.mxu0
        %v1127 = vadd.f32 0.0, %v1126
        %v1128 = vpop.f32.mrf.mxu0
        %1129 = vdwg.mxu0
        %v1131 = vsel %vm524, %v966, 0
        %v1134 = vsel %vm524, %v660, 0
        %v1137 = vsel %vm524, %v665, 0
        %1139 = vmatprep.subr.mxu0 0.0
        %1140 = vmatpush1.xpose.msra.mxu0 0.0
        %1141 = vmatprep.subr.mxu0 0.0
        %1142 = vmatpush1.xpose.msra.mxu0 0.0
        %1143 = vmatprep.subr.mxu0 0.0
        %1144 = vmatpush1.xpose.msra.mxu0 0.0
        %1145 = vmatprep.subr.mxu0 0.0
        %1146 = vmatpush1.xpose.msra.mxu0 0.0
        %1147 = vmatprep.subr.mxu0 0.0
        %1148 = vmatpush1.xpose.msra.mxu0 0.0
        %1149 = vmatprep.subr.mxu0 0.0
        %1150 = vmatpush1.xpose.msra.mxu0 0.0
        %1151 = vmatprep.subr.mxu0 0.0
        %1152 = vmatpush1.xpose.msra.mxu0 0.0
        %1153 = vmatprep.subr.mxu0 0.0
        %1154 = vmatpush1.xpose.msra.mxu0 0.0
        %1155 = vmatprep.subr.mxu0 0.0
        %1156 = vmatpush1.xpose.msra.mxu0 0.0
        %1157 = vmatprep.subr.mxu0 0.0
        %1158 = vmatpush1.xpose.msra.mxu0 0.0
        %1159 = vmatprep.subr.mxu0 0.0
        %1160 = vmatpush1.xpose.msra.mxu0 0.0
        %1161 = vmatprep.subr.mxu0 0.0
        %1162 = vmatpush1.xpose.msra.mxu0 0.0
        %1163 = vmatprep.subr.mxu0 0.0
        %1164 = vmatpush1.xpose.msra.mxu0 0.0
        %1165 = vmatprep.subr.mxu0 0.0
        %1166 = vmatpush1.xpose.msra.mxu0 0.0
        %1167 = vmatprep.subr.mxu0 0.0
        %1168 = vmatpush1.xpose.msra.mxu0 %v1137
        %1169 = vmatprep.subr.mxu0 0.0
        %1170 = vmatpush1.xpose.msra.mxu0 %v1134
        %1171 = vmatprep.subr.mxu0 0.0
        %1172 = vmatpush2.xpose.msra.mxu0 0.0
        %1173 = vmatprep.subr.mxu0 0.0
        %1174 = vmatpush2.xpose.msra.mxu0 0.0
        %1175 = vmatprep.subr.mxu0 0.0
        %1176 = vmatpush2.xpose.msra.mxu0 0.0
        %1177 = vmatprep.subr.mxu0 0.0
        %1178 = vmatpush2.xpose.msra.mxu0 0.0
        %1179 = vmatprep.subr.mxu0 0.0
        %1180 = vmatpush2.xpose.msra.mxu0 0.0
        %1181 = vmatprep.subr.mxu0 0.0
        %1182 = vmatpush2.xpose.msra.mxu0 0.0
        %1183 = vmatprep.subr.mxu0 0.0
        %1184 = vmatpush2.xpose.msra.mxu0 0.0
        %1185 = vmatprep.subr.mxu0 0.0
        %1186 = vmatpush2.xpose.msra.mxu0 0.0
        %1187 = vmatprep.subr.mxu0 0.0
        %1188 = vmatpush2.xpose.msra.mxu0 0.0
        %1189 = vmatprep.subr.mxu0 0.0
        %1190 = vmatpush2.xpose.msra.mxu0 0.0
        %1191 = vmatprep.subr.mxu0 0.0
        %1192 = vmatpush2.xpose.msra.mxu0 0.0
        %1193 = vmatprep.subr.mxu0 0.0
        %1194 = vmatpush2.xpose.msra.mxu0 0.0
        %1195 = vmatprep.subr.mxu0 0.0
        %1196 = vmatpush2.xpose.msra.mxu0 0.0
        %1197 = vmatprep.subr.mxu0 0.0
        %1198 = vmatpush2.xpose.msra.mxu0 0.0
        %1199 = vmatprep.subr.mxu0 0.0
        %1200 = vmatpush2.xpose.msra.mxu0 0.0
        %1201 = vmatprep.subr.mxu0 0.0
        %1202 = vmatpush2.xpose.msra.mxu0 0.0
        %1203 = vmatprep.mubr.f32.mxu0 0.0
        %1204 = vmatmul.mubr.f32.gmra.mxu0 %v1131
        %v1205 = vpop.f32.mrf.mxu0
        %v1206 = vadd.f32 0.0, %v1205
        %v1207 = vpop.f32.mrf.mxu0
        %1208 = vdwg.mxu0
        %v1210 = vsel %vm524, %v967, 0
        %v1213 = vsel %vm524, %v670, 0
        %v1216 = vsel %vm524, %v675, 0
        %1218 = vmatprep.subr.mxu0 0.0
        %1219 = vmatpush1.xpose.msra.mxu0 0.0
        %1220 = vmatprep.subr.mxu0 0.0
        %1221 = vmatpush1.xpose.msra.mxu0 0.0
        %1222 = vmatprep.subr.mxu0 0.0
        %1223 = vmatpush1.xpose.msra.mxu0 0.0
        %1224 = vmatprep.subr.mxu0 0.0
        %1225 = vmatpush1.xpose.msra.mxu0 0.0
        %1226 = vmatprep.subr.mxu0 0.0
        %1227 = vmatpush1.xpose.msra.mxu0 0.0
        %1228 = vmatprep.subr.mxu0 0.0
        %1229 = vmatpush1.xpose.msra.mxu0 0.0
        %1230 = vmatprep.subr.mxu0 0.0
        %1231 = vmatpush1.xpose.msra.mxu0 0.0
        %1232 = vmatprep.subr.mxu0 0.0
        %1233 = vmatpush1.xpose.msra.mxu0 0.0
        %1234 = vmatprep.subr.mxu0 0.0
        %1235 = vmatpush1.xpose.msra.mxu0 0.0
        %1236 = vmatprep.subr.mxu0 0.0
        %1237 = vmatpush1.xpose.msra.mxu0 0.0
        %1238 = vmatprep.subr.mxu0 0.0
        %1239 = vmatpush1.xpose.msra.mxu0 0.0
        %1240 = vmatprep.subr.mxu0 0.0
        %1241 = vmatpush1.xpose.msra.mxu0 0.0
        %1242 = vmatprep.subr.mxu0 0.0
        %1243 = vmatpush1.xpose.msra.mxu0 0.0
        %1244 = vmatprep.subr.mxu0 0.0
        %1245 = vmatpush1.xpose.msra.mxu0 0.0
        %1246 = vmatprep.subr.mxu0 0.0
        %1247 = vmatpush1.xpose.msra.mxu0 %v1216
        %1248 = vmatprep.subr.mxu0 0.0
        %1249 = vmatpush1.xpose.msra.mxu0 %v1213
        %1250 = vmatprep.subr.mxu0 0.0
        %1251 = vmatpush2.xpose.msra.mxu0 0.0
        %1252 = vmatprep.subr.mxu0 0.0
        %1253 = vmatpush2.xpose.msra.mxu0 0.0
        %1254 = vmatprep.subr.mxu0 0.0
        %1255 = vmatpush2.xpose.msra.mxu0 0.0
        %1256 = vmatprep.subr.mxu0 0.0
        %1257 = vmatpush2.xpose.msra.mxu0 0.0
        %1258 = vmatprep.subr.mxu0 0.0
        %1259 = vmatpush2.xpose.msra.mxu0 0.0
        %1260 = vmatprep.subr.mxu0 0.0
        %1261 = vmatpush2.xpose.msra.mxu0 0.0
        %1262 = vmatprep.subr.mxu0 0.0
        %1263 = vmatpush2.xpose.msra.mxu0 0.0
        %1264 = vmatprep.subr.mxu0 0.0
        %1265 = vmatpush2.xpose.msra.mxu0 0.0
        %1266 = vmatprep.subr.mxu0 0.0
        %1267 = vmatpush2.xpose.msra.mxu0 0.0
        %1268 = vmatprep.subr.mxu0 0.0
        %1269 = vmatpush2.xpose.msra.mxu0 0.0
        %1270 = vmatprep.subr.mxu0 0.0
        %1271 = vmatpush2.xpose.msra.mxu0 0.0
        %1272 = vmatprep.subr.mxu0 0.0
        %1273 = vmatpush2.xpose.msra.mxu0 0.0
        %1274 = vmatprep.subr.mxu0 0.0
        %1275 = vmatpush2.xpose.msra.mxu0 0.0
        %1276 = vmatprep.subr.mxu0 0.0
        %1277 = vmatpush2.xpose.msra.mxu0 0.0
        %1278 = vmatprep.subr.mxu0 0.0
        %1279 = vmatpush2.xpose.msra.mxu0 0.0
        %1280 = vmatprep.subr.mxu0 0.0
        %1281 = vmatpush2.xpose.msra.mxu0 0.0
        %1282 = vmatprep.mubr.f32.mxu0 0.0
        %1283 = vmatmul.mubr.f32.gmra.mxu0 %v1210
        %v1284 = vpop.f32.mrf.mxu0
        %v1285 = vadd.f32 0.0, %v1284
        %v1286 = vpop.f32.mrf.mxu0
        %1287 = vdwg.mxu0
        %v1289 = vsel %vm524, %v968, 0
        %v1292 = vsel %vm524, %v680, 0
        %v1295 = vsel %vm524, %v685, 0
        %1297 = vmatprep.subr.mxu0 0.0
        %1298 = vmatpush1.xpose.msra.mxu0 0.0
        %1299 = vmatprep.subr.mxu0 0.0
        %1300 = vmatpush1.xpose.msra.mxu0 0.0
        %1301 = vmatprep.subr.mxu0 0.0
        %1302 = vmatpush1.xpose.msra.mxu0 0.0
        %1303 = vmatprep.subr.mxu0 0.0
        %1304 = vmatpush1.xpose.msra.mxu0 0.0
        %1305 = vmatprep.subr.mxu0 0.0
        %1306 = vmatpush1.xpose.msra.mxu0 0.0
        %1307 = vmatprep.subr.mxu0 0.0
        %1308 = vmatpush1.xpose.msra.mxu0 0.0
        %1309 = vmatprep.subr.mxu0 0.0
        %1310 = vmatpush1.xpose.msra.mxu0 0.0
        %1311 = vmatprep.subr.mxu0 0.0
        %1312 = vmatpush1.xpose.msra.mxu0 0.0
        %1313 = vmatprep.subr.mxu0 0.0
        %1314 = vmatpush1.xpose.msra.mxu0 0.0
        %1315 = vmatprep.subr.mxu0 0.0
        %1316 = vmatpush1.xpose.msra.mxu0 0.0
        %1317 = vmatprep.subr.mxu0 0.0
        %1318 = vmatpush1.xpose.msra.mxu0 0.0
        %1319 = vmatprep.subr.mxu0 0.0
        %1320 = vmatpush1.xpose.msra.mxu0 0.0
        %1321 = vmatprep.subr.mxu0 0.0
        %1322 = vmatpush1.xpose.msra.mxu0 0.0
        %1323 = vmatprep.subr.mxu0 0.0
        %1324 = vmatpush1.xpose.msra.mxu0 0.0
        %1325 = vmatprep.subr.mxu0 0.0
        %1326 = vmatpush1.xpose.msra.mxu0 %v1295
        %1327 = vmatprep.subr.mxu0 0.0
        %1328 = vmatpush1.xpose.msra.mxu0 %v1292
        %1329 = vmatprep.subr.mxu0 0.0
        %1330 = vmatpush2.xpose.msra.mxu0 0.0
        %1331 = vmatprep.subr.mxu0 0.0
        %1332 = vmatpush2.xpose.msra.mxu0 0.0
        %1333 = vmatprep.subr.mxu0 0.0
        %1334 = vmatpush2.xpose.msra.mxu0 0.0
        %1335 = vmatprep.subr.mxu0 0.0
        %1336 = vmatpush2.xpose.msra.mxu0 0.0
        %1337 = vmatprep.subr.mxu0 0.0
        %1338 = vmatpush2.xpose.msra.mxu0 0.0
        %1339 = vmatprep.subr.mxu0 0.0
        %1340 = vmatpush2.xpose.msra.mxu0 0.0
        %1341 = vmatprep.subr.mxu0 0.0
        %1342 = vmatpush2.xpose.msra.mxu0 0.0
        %1343 = vmatprep.subr.mxu0 0.0
        %1344 = vmatpush2.xpose.msra.mxu0 0.0
        %1345 = vmatprep.subr.mxu0 0.0
        %1346 = vmatpush2.xpose.msra.mxu0 0.0
        %1347 = vmatprep.subr.mxu0 0.0
        %1348 = vmatpush2.xpose.msra.mxu0 0.0
        %1349 = vmatprep.subr.mxu0 0.0
        %1350 = vmatpush2.xpose.msra.mxu0 0.0
        %1351 = vmatprep.subr.mxu0 0.0
        %1352 = vmatpush2.xpose.msra.mxu0 0.0
        %1353 = vmatprep.subr.mxu0 0.0
        %1354 = vmatpush2.xpose.msra.mxu0 0.0
        %1355 = vmatprep.subr.mxu0 0.0
        %1356 = vmatpush2.xpose.msra.mxu0 0.0
        %1357 = vmatprep.subr.mxu0 0.0
        %1358 = vmatpush2.xpose.msra.mxu0 0.0
        %1359 = vmatprep.subr.mxu0 0.0
        %1360 = vmatpush2.xpose.msra.mxu0 0.0
        %1361 = vmatprep.mubr.f32.mxu0 0.0
        %1362 = vmatmul.mubr.f32.gmra.mxu0 %v1289
        %v1363 = vpop.f32.mrf.mxu0
        %v1364 = vadd.f32 0.0, %v1363
        %v1365 = vpop.f32.mrf.mxu0
        %1366 = vdwg.mxu0
        %v1368 = vsel %vm524, %v969, 0
        %v1371 = vsel %vm524, %v690, 0
        %v1374 = vsel %vm524, %v695, 0
        %1376 = vmatprep.subr.mxu0 0.0
        %1377 = vmatpush1.xpose.msra.mxu0 0.0
        %1378 = vmatprep.subr.mxu0 0.0
        %1379 = vmatpush1.xpose.msra.mxu0 0.0
        %1380 = vmatprep.subr.mxu0 0.0
        %1381 = vmatpush1.xpose.msra.mxu0 0.0
        %1382 = vmatprep.subr.mxu0 0.0
        %1383 = vmatpush1.xpose.msra.mxu0 0.0
        %1384 = vmatprep.subr.mxu0 0.0
        %1385 = vmatpush1.xpose.msra.mxu0 0.0
        %1386 = vmatprep.subr.mxu0 0.0
        %1387 = vmatpush1.xpose.msra.mxu0 0.0
        %1388 = vmatprep.subr.mxu0 0.0
        %1389 = vmatpush1.xpose.msra.mxu0 0.0
        %1390 = vmatprep.subr.mxu0 0.0
        %1391 = vmatpush1.xpose.msra.mxu0 0.0
        %1392 = vmatprep.subr.mxu0 0.0
        %1393 = vmatpush1.xpose.msra.mxu0 0.0
        %1394 = vmatprep.subr.mxu0 0.0
        %1395 = vmatpush1.xpose.msra.mxu0 0.0
        %1396 = vmatprep.subr.mxu0 0.0
        %1397 = vmatpush1.xpose.msra.mxu0 0.0
        %1398 = vmatprep.subr.mxu0 0.0
        %1399 = vmatpush1.xpose.msra.mxu0 0.0
        %1400 = vmatprep.subr.mxu0 0.0
        %1401 = vmatpush1.xpose.msra.mxu0 0.0
        %1402 = vmatprep.subr.mxu0 0.0
        %1403 = vmatpush1.xpose.msra.mxu0 0.0
        %1404 = vmatprep.subr.mxu0 0.0
        %1405 = vmatpush1.xpose.msra.mxu0 %v1374
        %1406 = vmatprep.subr.mxu0 0.0
        %1407 = vmatpush1.xpose.msra.mxu0 %v1371
        %1408 = vmatprep.subr.mxu0 0.0
        %1409 = vmatpush2.xpose.msra.mxu0 0.0
        %1410 = vmatprep.subr.mxu0 0.0
        %1411 = vmatpush2.xpose.msra.mxu0 0.0
        %1412 = vmatprep.subr.mxu0 0.0
        %1413 = vmatpush2.xpose.msra.mxu0 0.0
        %1414 = vmatprep.subr.mxu0 0.0
        %1415 = vmatpush2.xpose.msra.mxu0 0.0
        %1416 = vmatprep.subr.mxu0 0.0
        %1417 = vmatpush2.xpose.msra.mxu0 0.0
        %1418 = vmatprep.subr.mxu0 0.0
        %1419 = vmatpush2.xpose.msra.mxu0 0.0
        %1420 = vmatprep.subr.mxu0 0.0
        %1421 = vmatpush2.xpose.msra.mxu0 0.0
        %1422 = vmatprep.subr.mxu0 0.0
        %1423 = vmatpush2.xpose.msra.mxu0 0.0
        %1424 = vmatprep.subr.mxu0 0.0
        %1425 = vmatpush2.xpose.msra.mxu0 0.0
        %1426 = vmatprep.subr.mxu0 0.0
        %1427 = vmatpush2.xpose.msra.mxu0 0.0
        %1428 = vmatprep.subr.mxu0 0.0
        %1429 = vmatpush2.xpose.msra.mxu0 0.0
        %1430 = vmatprep.subr.mxu0 0.0
        %1431 = vmatpush2.xpose.msra.mxu0 0.0
        %1432 = vmatprep.subr.mxu0 0.0
        %1433 = vmatpush2.xpose.msra.mxu0 0.0
        %1434 = vmatprep.subr.mxu0 0.0
        %1435 = vmatpush2.xpose.msra.mxu0 0.0
        %1436 = vmatprep.subr.mxu0 0.0
        %1437 = vmatpush2.xpose.msra.mxu0 0.0
        %1438 = vmatprep.subr.mxu0 0.0
        %1439 = vmatpush2.xpose.msra.mxu0 0.0
        %1440 = vmatprep.mubr.f32.mxu0 0.0
        %1441 = vmatmul.mubr.f32.gmra.mxu0 %v1368
        %v1442 = vpop.f32.mrf.mxu0
        %v1443 = vadd.f32 0.0, %v1442
        %v1444 = vpop.f32.mrf.mxu0
        %1445 = vdwg.mxu0
        %v1447 = vsel %vm524, %v970, 0
        %v1450 = vsel %vm524, %v700, 0
        %v1453 = vsel %vm524, %v705, 0
        %1455 = vmatprep.subr.mxu0 0.0
        %1456 = vmatpush1.xpose.msra.mxu0 0.0
        %1457 = vmatprep.subr.mxu0 0.0
        %1458 = vmatpush1.xpose.msra.mxu0 0.0
        %1459 = vmatprep.subr.mxu0 0.0
        %1460 = vmatpush1.xpose.msra.mxu0 0.0
        %1461 = vmatprep.subr.mxu0 0.0
        %1462 = vmatpush1.xpose.msra.mxu0 0.0
        %1463 = vmatprep.subr.mxu0 0.0
        %1464 = vmatpush1.xpose.msra.mxu0 0.0
        %1465 = vmatprep.subr.mxu0 0.0
        %1466 = vmatpush1.xpose.msra.mxu0 0.0
        %1467 = vmatprep.subr.mxu0 0.0
        %1468 = vmatpush1.xpose.msra.mxu0 0.0
        %1469 = vmatprep.subr.mxu0 0.0
        %1470 = vmatpush1.xpose.msra.mxu0 0.0
        %1471 = vmatprep.subr.mxu0 0.0
        %1472 = vmatpush1.xpose.msra.mxu0 0.0
        %1473 = vmatprep.subr.mxu0 0.0
        %1474 = vmatpush1.xpose.msra.mxu0 0.0
        %1475 = vmatprep.subr.mxu0 0.0
        %1476 = vmatpush1.xpose.msra.mxu0 0.0
        %1477 = vmatprep.subr.mxu0 0.0
        %1478 = vmatpush1.xpose.msra.mxu0 0.0
        %1479 = vmatprep.subr.mxu0 0.0
        %1480 = vmatpush1.xpose.msra.mxu0 0.0
        %1481 = vmatprep.subr.mxu0 0.0
        %1482 = vmatpush1.xpose.msra.mxu0 0.0
        %1483 = vmatprep.subr.mxu0 0.0
        %1484 = vmatpush1.xpose.msra.mxu0 %v1453
        %1485 = vmatprep.subr.mxu0 0.0
        %1486 = vmatpush1.xpose.msra.mxu0 %v1450
        %1487 = vmatprep.subr.mxu0 0.0
        %1488 = vmatpush2.xpose.msra.mxu0 0.0
        %1489 = vmatprep.subr.mxu0 0.0
        %1490 = vmatpush2.xpose.msra.mxu0 0.0
        %1491 = vmatprep.subr.mxu0 0.0
        %1492 = vmatpush2.xpose.msra.mxu0 0.0
        %1493 = vmatprep.subr.mxu0 0.0
        %1494 = vmatpush2.xpose.msra.mxu0 0.0
        %1495 = vmatprep.subr.mxu0 0.0
        %1496 = vmatpush2.xpose.msra.mxu0 0.0
        %1497 = vmatprep.subr.mxu0 0.0
        %1498 = vmatpush2.xpose.msra.mxu0 0.0
        %1499 = vmatprep.subr.mxu0 0.0
        %1500 = vmatpush2.xpose.msra.mxu0 0.0
        %1501 = vmatprep.subr.mxu0 0.0
        %1502 = vmatpush2.xpose.msra.mxu0 0.0
        %1503 = vmatprep.subr.mxu0 0.0
        %1504 = vmatpush2.xpose.msra.mxu0 0.0
        %1505 = vmatprep.subr.mxu0 0.0
        %1506 = vmatpush2.xpose.msra.mxu0 0.0
        %1507 = vmatprep.subr.mxu0 0.0
        %1508 = vmatpush2.xpose.msra.mxu0 0.0
        %1509 = vmatprep.subr.mxu0 0.0
        %1510 = vmatpush2.xpose.msra.mxu0 0.0
        %1511 = vmatprep.subr.mxu0 0.0
        %1512 = vmatpush2.xpose.msra.mxu0 0.0
        %1513 = vmatprep.subr.mxu0 0.0
        %1514 = vmatpush2.xpose.msra.mxu0 0.0
        %1515 = vmatprep.subr.mxu0 0.0
        %1516 = vmatpush2.xpose.msra.mxu0 0.0
        %1517 = vmatprep.subr.mxu0 0.0
        %1518 = vmatpush2.xpose.msra.mxu0 0.0
        %1519 = vmatprep.mubr.f32.mxu0 0.0
        %1520 = vmatmul.mubr.f32.gmra.mxu0 %v1447
        %v1521 = vpop.f32.mrf.mxu0
        %v1522 = vadd.f32 0.0, %v1521
        %v1523 = vpop.f32.mrf.mxu0
        %1524 = vdwg.mxu0
        %v1526 = vsel %vm524, %v971, 0
        %v1529 = vsel %vm524, %v710, 0
        %v1532 = vsel %vm524, %v715, 0
        %1534 = vmatprep.subr.mxu0 0.0
        %1535 = vmatpush1.xpose.msra.mxu0 0.0
        %1536 = vmatprep.subr.mxu0 0.0
        %1537 = vmatpush1.xpose.msra.mxu0 0.0
        %1538 = vmatprep.subr.mxu0 0.0
        %1539 = vmatpush1.xpose.msra.mxu0 0.0
        %1540 = vmatprep.subr.mxu0 0.0
        %1541 = vmatpush1.xpose.msra.mxu0 0.0
        %1542 = vmatprep.subr.mxu0 0.0
        %1543 = vmatpush1.xpose.msra.mxu0 0.0
        %1544 = vmatprep.subr.mxu0 0.0
        %1545 = vmatpush1.xpose.msra.mxu0 0.0
        %1546 = vmatprep.subr.mxu0 0.0
        %1547 = vmatpush1.xpose.msra.mxu0 0.0
        %1548 = vmatprep.subr.mxu0 0.0
        %1549 = vmatpush1.xpose.msra.mxu0 0.0
        %1550 = vmatprep.subr.mxu0 0.0
        %1551 = vmatpush1.xpose.msra.mxu0 0.0
        %1552 = vmatprep.subr.mxu0 0.0
        %1553 = vmatpush1.xpose.msra.mxu0 0.0
        %1554 = vmatprep.subr.mxu0 0.0
        %1555 = vmatpush1.xpose.msra.mxu0 0.0
        %1556 = vmatprep.subr.mxu0 0.0
        %1557 = vmatpush1.xpose.msra.mxu0 0.0
        %1558 = vmatprep.subr.mxu0 0.0
        %1559 = vmatpush1.xpose.msra.mxu0 0.0
        %1560 = vmatprep.subr.mxu0 0.0
        %1561 = vmatpush1.xpose.msra.mxu0 0.0
        %1562 = vmatprep.subr.mxu0 0.0
        %1563 = vmatpush1.xpose.msra.mxu0 %v1532
        %1564 = vmatprep.subr.mxu0 0.0
        %1565 = vmatpush1.xpose.msra.mxu0 %v1529
        %1566 = vmatprep.subr.mxu0 0.0
        %1567 = vmatpush2.xpose.msra.mxu0 0.0
        %1568 = vmatprep.subr.mxu0 0.0
        %1569 = vmatpush2.xpose.msra.mxu0 0.0
        %1570 = vmatprep.subr.mxu0 0.0
        %1571 = vmatpush2.xpose.msra.mxu0 0.0
        %1572 = vmatprep.subr.mxu0 0.0
        %1573 = vmatpush2.xpose.msra.mxu0 0.0
        %1574 = vmatprep.subr.mxu0 0.0
        %1575 = vmatpush2.xpose.msra.mxu0 0.0
        %1576 = vmatprep.subr.mxu0 0.0
        %1577 = vmatpush2.xpose.msra.mxu0 0.0
        %1578 = vmatprep.subr.mxu0 0.0
        %1579 = vmatpush2.xpose.msra.mxu0 0.0
        %1580 = vmatprep.subr.mxu0 0.0
        %1581 = vmatpush2.xpose.msra.mxu0 0.0
        %1582 = vmatprep.subr.mxu0 0.0
        %1583 = vmatpush2.xpose.msra.mxu0 0.0
        %1584 = vmatprep.subr.mxu0 0.0
        %1585 = vmatpush2.xpose.msra.mxu0 0.0
        %1586 = vmatprep.subr.mxu0 0.0
        %1587 = vmatpush2.xpose.msra.mxu0 0.0
        %1588 = vmatprep.subr.mxu0 0.0
        %1589 = vmatpush2.xpose.msra.mxu0 0.0
        %1590 = vmatprep.subr.mxu0 0.0
        %1591 = vmatpush2.xpose.msra.mxu0 0.0
        %1592 = vmatprep.subr.mxu0 0.0
        %1593 = vmatpush2.xpose.msra.mxu0 0.0
        %1594 = vmatprep.subr.mxu0 0.0
        %1595 = vmatpush2.xpose.msra.mxu0 0.0
        %1596 = vmatprep.subr.mxu0 0.0
        %1597 = vmatpush2.xpose.msra.mxu0 0.0
        %1598 = vmatprep.mubr.f32.mxu0 0.0
        %1599 = vmatmul.mubr.f32.gmra.mxu0 %v1526
        %v1600 = vpop.f32.mrf.mxu0
        %v1601 = vadd.f32 0.0, %v1600
        %v1602 = vpop.f32.mrf.mxu0
        %1603 = vdwg.mxu0
        %v1605 = vcombine.high %v870, %v870
        %v1607 = vunpack.c.l.s4 1966171168
        %v1608 = vunpack.c.0.s8 %v1607
        %v1609 = vlaneseq
        %v1610 = vshrl.u32 %v1609, 7
        %v1611 = vsub.s32 %v1608, %v1610
        %v1612 = vrot.slane %v870, %v1611
        %v1614 = vunpack.c.l.s4 1966171168
        %v1615 = vunpack.c.0.s8 %v1614
        %v1616 = vlaneseq
        %v1617 = vshrl.u32 %v1616, 7
        %v1618 = vsub.s32 %v1615, %v1617
        %v1619 = vrot.slane %v1605, %v1618
        %v1620 = vcombine.high %v1612, %v1612
        %v1621 = vcombine.high %v1619, %v1619
        %v1623 = vunpack.c.l.s4 1966171168
        %v1624 = vunpack.c.0.s8 %v1623
        %v1625 = vlaneseq
        %v1626 = vshrl.u32 %v1625, 7
        %v1627 = vsub.s32 %v1624, %v1626
        %v1628 = vrot.slane %v1612, %v1627
        %v1630 = vunpack.c.l.s4 1966171168
        %v1631 = vunpack.c.0.s8 %v1630
        %v1632 = vlaneseq
        %v1633 = vshrl.u32 %v1632, 7
        %v1634 = vsub.s32 %v1631, %v1633
        %v1635 = vrot.slane %v1619, %v1634
        %v1637 = vunpack.c.l.s4 1966171168
        %v1638 = vunpack.c.0.s8 %v1637
        %v1639 = vlaneseq
        %v1640 = vshrl.u32 %v1639, 7
        %v1641 = vsub.s32 %v1638, %v1640
        %v1642 = vrot.slane %v1620, %v1641
        %v1644 = vunpack.c.l.s4 1966171168
        %v1645 = vunpack.c.0.s8 %v1644
        %v1646 = vlaneseq
        %v1647 = vshrl.u32 %v1646, 7
        %v1648 = vsub.s32 %v1645, %v1647
        %v1649 = vrot.slane %v1621, %v1648
        %v1650 = vcombine.high %v1628, %v1628
        %v1651 = vcombine.high %v1635, %v1635
        %v1652 = vcombine.high %v1642, %v1642
        %v1653 = vcombine.high %v1649, %v1649
        %v1654 = vlaneseq
        %v1655 = vshrl.u32 %v1654, 7
        %v1656 = vsub.s32 0, %v1655
        %v1657 = vrot.slane %v1628, %v1656
        %v1658 = vlaneseq
        %v1659 = vshrl.u32 %v1658, 7
        %v1660 = vsub.s32 0, %v1659
        %v1661 = vrot.slane %v1642, %v1660
        %v1662 = vlaneseq
        %v1663 = vshrl.u32 %v1662, 7
        %v1664 = vsub.s32 0, %v1663
        %v1665 = vrot.slane %v1650, %v1664
        %v1666 = vlaneseq
        %v1667 = vshrl.u32 %v1666, 7
        %v1668 = vsub.s32 0, %v1667
        %v1669 = vrot.slane %v1652, %v1668
        %v1670 = vlaneseq
        %v1671 = vshrl.u32 %v1670, 7
        %v1672 = vsub.s32 0, %v1671
        %v1673 = vrot.slane %v1635, %v1672
        %v1674 = vlaneseq
        %v1675 = vshrl.u32 %v1674, 7
        %v1676 = vsub.s32 0, %v1675
        %v1677 = vrot.slane %v1649, %v1676
        %v1678 = vlaneseq
        %v1679 = vshrl.u32 %v1678, 7
        %v1680 = vsub.s32 0, %v1679
        %v1681 = vrot.slane %v1651, %v1680
        %v1682 = vlaneseq
        %v1683 = vshrl.u32 %v1682, 7
        %v1684 = vsub.s32 0, %v1683
        %v1685 = vrot.slane %v1653, %v1684
        %v1694 = vmul.f32 %v964, %v1657
        %v1695 = vmul.f32 %v965, %v1661
        %v1696 = vmul.f32 %v966, %v1665
        %v1697 = vmul.f32 %v967, %v1669
        %v1698 = vmul.f32 %v968, %v1673
        %v1699 = vmul.f32 %v969, %v1677
        %v1700 = vmul.f32 %v970, %v1681
        %v1701 = vmul.f32 %v971, %v1685
        %vm1702 = vcmask 257024
        %v1703 = vsel %vm1702, %v1694, 0.0
        %1704 = vadd.xlane.f32.xlu0 %v1703
        %v1705 = vpop.xlane.xlu0 %1704
        %v1706 = vsel %vm1702, %v1695, 0.0
        %1707 = vadd.xlane.f32.xlu0 %v1706
        %v1708 = vpop.xlane.xlu0 %1707
        %v1709 = vsel %vm1702, %v1696, 0.0
        %1710 = vadd.xlane.f32.xlu0 %v1709
        %v1711 = vpop.xlane.xlu0 %1710
        %v1712 = vsel %vm1702, %v1697, 0.0
        %1713 = vadd.xlane.f32.xlu0 %v1712
        %v1714 = vpop.xlane.xlu0 %1713
        %v1715 = vsel %vm1702, %v1698, 0.0
        %1716 = vadd.xlane.f32.xlu0 %v1715
        %v1717 = vpop.xlane.xlu0 %1716
        %v1718 = vsel %vm1702, %v1699, 0.0
        %1719 = vadd.xlane.f32.xlu0 %v1718
        %v1720 = vpop.xlane.xlu0 %1719
        %v1721 = vsel %vm1702, %v1700, 0.0
        %1722 = vadd.xlane.f32.xlu0 %v1721
        %v1723 = vpop.xlane.xlu0 %1722
        %v1724 = vsel %vm1702, %v1701, 0.0
        %1725 = vadd.xlane.f32.xlu0 %v1724
        %v1726 = vpop.xlane.xlu0 %1725
        %vm1727 = vcmask 125952
        %v1728 = vsel %vm1727, %v1048, -inf
        %1729 = vmax.xlane.f32.xlu0 %v1728
        %v1730 = vpop.xlane.xlu0 %1729
        %v1731 = vsel %vm1727, %v1127, -inf
        %1732 = vmax.xlane.f32.xlu0 %v1731
        %v1733 = vpop.xlane.xlu0 %1732
        %v1734 = vsel %vm1727, %v1206, -inf
        %1735 = vmax.xlane.f32.xlu0 %v1734
        %v1736 = vpop.xlane.xlu0 %1735
        %v1737 = vsel %vm1727, %v1285, -inf
        %1738 = vmax.xlane.f32.xlu0 %v1737
        %v1739 = vpop.xlane.xlu0 %1738
        %v1740 = vsel %vm1727, %v1364, -inf
        %1741 = vmax.xlane.f32.xlu0 %v1740
        %v1742 = vpop.xlane.xlu0 %1741
        %v1743 = vsel %vm1727, %v1443, -inf
        %1744 = vmax.xlane.f32.xlu0 %v1743
        %v1745 = vpop.xlane.xlu0 %1744
        %v1746 = vsel %vm1727, %v1522, -inf
        %1747 = vmax.xlane.f32.xlu0 %v1746
        %v1748 = vpop.xlane.xlu0 %1747
        %v1749 = vsel %vm1727, %v1601, -inf
        %1750 = vmax.xlane.f32.xlu0 %v1749
        %v1751 = vpop.xlane.xlu0 %1750
        %v1752 = vmax.f32 %v1730, %v1705
        %v1753 = vmax.f32 %v1733, %v1708
        %v1754 = vmax.f32 %v1736, %v1711
        %v1755 = vmax.f32 %v1739, %v1714
        %v1756 = vmax.f32 %v1742, %v1717
        %v1757 = vmax.f32 %v1745, %v1720
        %v1758 = vmax.f32 %v1748, %v1723
        %v1759 = vmax.f32 %v1751, %v1726
        %v1760 = vsub.f32 %v1048, %v1752
        %v1761 = vsub.f32 %v1127, %v1753
        %v1762 = vsub.f32 %v1206, %v1754
        %v1763 = vsub.f32 %v1285, %v1755
        %v1764 = vsub.f32 %v1364, %v1756
        %v1765 = vsub.f32 %v1443, %v1757
        %v1766 = vsub.f32 %v1522, %v1758
        %v1767 = vsub.f32 %v1601, %v1759
        %v1768 = vmul.f32 %v1760, 1.442695
        %v1769 = vpow.pop %v1768
        %v1770 = vmul.f32 %v1761, 1.442695
        %v1771 = vpow.pop %v1770
        %v1772 = vmul.f32 %v1762, 1.442695
        %v1773 = vpow.pop %v1772
        %v1774 = vmul.f32 %v1763, 1.442695
        %v1775 = vpow.pop %v1774
        %v1776 = vmul.f32 %v1764, 1.442695
        %v1777 = vpow.pop %v1776
        %v1778 = vmul.f32 %v1765, 1.442695
        %v1779 = vpow.pop %v1778
        %v1780 = vmul.f32 %v1766, 1.442695
        %v1781 = vpow.pop %v1780
        %v1782 = vmul.f32 %v1767, 1.442695
        %v1783 = vpow.pop %v1782
        %v1784 = vsub.f32 %v1705, %v1752
        %v1785 = vsub.f32 %v1708, %v1753
        %v1786 = vsub.f32 %v1711, %v1754
        %v1787 = vsub.f32 %v1714, %v1755
        %v1788 = vsub.f32 %v1717, %v1756
        %v1789 = vsub.f32 %v1720, %v1757
        %v1790 = vsub.f32 %v1723, %v1758
        %v1791 = vsub.f32 %v1726, %v1759
        %v1792 = vmul.f32 %v1784, 1.442695
        %v1793 = vpow.pop %v1792
        %v1794 = vmul.f32 %v1785, 1.442695
        %v1795 = vpow.pop %v1794
        %v1796 = vmul.f32 %v1786, 1.442695
        %v1797 = vpow.pop %v1796
        %v1798 = vmul.f32 %v1787, 1.442695
        %v1799 = vpow.pop %v1798
        %v1800 = vmul.f32 %v1788, 1.442695
        %v1801 = vpow.pop %v1800
        %v1802 = vmul.f32 %v1789, 1.442695
        %v1803 = vpow.pop %v1802
        %v1804 = vmul.f32 %v1790, 1.442695
        %v1805 = vpow.pop %v1804
        %v1806 = vmul.f32 %v1791, 1.442695
        %v1807 = vpow.pop %v1806
        %v1808 = vsel %vm1727, %v1769, 0.0
        %1809 = vadd.xlane.f32.xlu0 %v1808
        %v1810 = vpop.xlane.xlu0 %1809
        %v1811 = vsel %vm1727, %v1771, 0.0
        %1812 = vadd.xlane.f32.xlu0 %v1811
        %v1813 = vpop.xlane.xlu0 %1812
        %v1814 = vsel %vm1727, %v1773, 0.0
        %1815 = vadd.xlane.f32.xlu0 %v1814
        %v1816 = vpop.xlane.xlu0 %1815
        %v1817 = vsel %vm1727, %v1775, 0.0
        %1818 = vadd.xlane.f32.xlu0 %v1817
        %v1819 = vpop.xlane.xlu0 %1818
        %v1820 = vsel %vm1727, %v1777, 0.0
        %1821 = vadd.xlane.f32.xlu0 %v1820
        %v1822 = vpop.xlane.xlu0 %1821
        %v1823 = vsel %vm1727, %v1779, 0.0
        %1824 = vadd.xlane.f32.xlu0 %v1823
        %v1825 = vpop.xlane.xlu0 %1824
        %v1826 = vsel %vm1727, %v1781, 0.0
        %1827 = vadd.xlane.f32.xlu0 %v1826
        %v1828 = vpop.xlane.xlu0 %1827
        %v1829 = vsel %vm1727, %v1783, 0.0
        %1830 = vadd.xlane.f32.xlu0 %v1829
        %v1831 = vpop.xlane.xlu0 %1830
        %v1832 = vadd.f32 %v1810, %v1793
        %v1833 = vadd.f32 %v1813, %v1795
        %v1834 = vadd.f32 %v1816, %v1797
        %v1835 = vadd.f32 %v1819, %v1799
        %v1836 = vadd.f32 %v1822, %v1801
        %v1837 = vadd.f32 %v1825, %v1803
        %v1838 = vadd.f32 %v1828, %v1805
        %v1839 = vadd.f32 %v1831, %v1807
        %v1840 = vrcp.pop %v1832
        %v1841 = vmul.f32 1.0, %v1840
        %v1842 = vrcp.pop %v1833
        %v1843 = vmul.f32 1.0, %v1842
        %v1844 = vrcp.pop %v1834
        %v1845 = vmul.f32 1.0, %v1844
        %v1846 = vrcp.pop %v1835
        %v1847 = vmul.f32 1.0, %v1846
        %v1848 = vrcp.pop %v1836
        %v1849 = vmul.f32 1.0, %v1848
        %v1850 = vrcp.pop %v1837
        %v1851 = vmul.f32 1.0, %v1850
        %v1852 = vrcp.pop %v1838
        %v1853 = vmul.f32 1.0, %v1852
        %v1854 = vrcp.pop %v1839
        %v1855 = vmul.f32 1.0, %v1854
        %v1856 = vmul.f32 %v1769, %v1841
        %v1857 = vmul.f32 %v1771, %v1843
        %v1858 = vmul.f32 %v1773, %v1845
        %v1859 = vmul.f32 %v1775, %v1847
        %v1860 = vmul.f32 %v1777, %v1849
        %v1861 = vmul.f32 %v1779, %v1851
        %v1862 = vmul.f32 %v1781, %v1853
        %v1863 = vmul.f32 %v1783, %v1855
        %v1864 = vmul.f32 %v1793, %v1841
        %v1865 = vmul.f32 %v1795, %v1843
        %v1866 = vmul.f32 %v1797, %v1845
        %v1867 = vmul.f32 %v1799, %v1847
        %v1868 = vmul.f32 %v1801, %v1849
        %v1869 = vmul.f32 %v1803, %v1851
        %v1870 = vmul.f32 %v1805, %v1853
        %v1871 = vmul.f32 %v1807, %v1855
        %v1872 = vmul.f32 %v1864, %v1657
        %v1873 = vmul.f32 %v1865, %v1661
        %v1874 = vmul.f32 %v1866, %v1665
        %v1875 = vmul.f32 %v1867, %v1669
        %v1876 = vmul.f32 %v1868, %v1673
        %v1877 = vmul.f32 %v1869, %v1677
        %v1878 = vmul.f32 %v1870, %v1681
        %v1879 = vmul.f32 %v1871, %v1685
        %1880 = vrot.lane.b32.xlu0 %v640, 96
        %v1881 = vpop.permute.xlu0 %1880
        %1882 = vrot.lane.b32.xlu0 %v645, 96
        %v1883 = vpop.permute.xlu0 %1882
        %1887 = vrot.lane.b32.xlu0 %v1872, 96
        %v1888 = vpop.permute.xlu0 %1887
        %vm1890 = vcmask 130048
        %v1892 = vsel %vm1890, %v1856, 0
        %1894 = vmatprep.subr.mxu0 0.0
        %1895 = vmatpush1.msra.mxu0 0.0
        %1896 = vmatprep.subr.mxu0 0.0
        %1897 = vmatpush1.msra.mxu0 0.0
        %1898 = vmatprep.subr.mxu0 0.0
        %1899 = vmatpush1.msra.mxu0 0.0
        %1900 = vmatprep.subr.mxu0 0.0
        %1901 = vmatpush1.msra.mxu0 0.0
        %1902 = vmatprep.subr.mxu0 0.0
        %1903 = vmatpush1.msra.mxu0 0.0
        %1904 = vmatprep.subr.mxu0 0.0
        %1905 = vmatpush1.msra.mxu0 0.0
        %1906 = vmatprep.subr.mxu0 0.0
        %1907 = vmatpush1.msra.mxu0 0.0
        %1908 = vmatprep.subr.mxu0 0.0
        %1909 = vmatpush1.msra.mxu0 0.0
        %1910 = vmatprep.subr.mxu0 0.0
        %1911 = vmatpush1.msra.mxu0 0.0
        %1912 = vmatprep.subr.mxu0 0.0
        %1913 = vmatpush1.msra.mxu0 0.0
        %1914 = vmatprep.subr.mxu0 0.0
        %1915 = vmatpush1.msra.mxu0 0.0
        %1916 = vmatprep.subr.mxu0 0.0
        %1917 = vmatpush1.msra.mxu0 0.0
        %1918 = vmatprep.subr.mxu0 0.0
        %1919 = vmatpush1.msra.mxu0 0.0
        %1920 = vmatprep.subr.mxu0 0.0
        %1921 = vmatpush1.msra.mxu0 0.0
        %1922 = vmatprep.subr.mxu0 0.0
        %1923 = vmatpush1.msra.mxu0 %v1883
        %1924 = vmatprep.subr.mxu0 0.0
        %1925 = vmatpush1.msra.mxu0 %v1881
        %1926 = vmatprep.subr.mxu0 0.0
        %1927 = vmatpush2.msra.mxu0 0.0
        %1928 = vmatprep.subr.mxu0 0.0
        %1929 = vmatpush2.msra.mxu0 0.0
        %1930 = vmatprep.subr.mxu0 0.0
        %1931 = vmatpush2.msra.mxu0 0.0
        %1932 = vmatprep.subr.mxu0 0.0
        %1933 = vmatpush2.msra.mxu0 0.0
        %1934 = vmatprep.subr.mxu0 0.0
        %1935 = vmatpush2.msra.mxu0 0.0
        %1936 = vmatprep.subr.mxu0 0.0
        %1937 = vmatpush2.msra.mxu0 0.0
        %1938 = vmatprep.subr.mxu0 0.0
        %1939 = vmatpush2.msra.mxu0 0.0
        %1940 = vmatprep.subr.mxu0 0.0
        %1941 = vmatpush2.msra.mxu0 0.0
        %1942 = vmatprep.subr.mxu0 0.0
        %1943 = vmatpush2.msra.mxu0 0.0
        %1944 = vmatprep.subr.mxu0 0.0
        %1945 = vmatpush2.msra.mxu0 0.0
        %1946 = vmatprep.subr.mxu0 0.0
        %1947 = vmatpush2.msra.mxu0 0.0
        %1948 = vmatprep.subr.mxu0 0.0
        %1949 = vmatpush2.msra.mxu0 0.0
        %1950 = vmatprep.subr.mxu0 0.0
        %1951 = vmatpush2.msra.mxu0 0.0
        %1952 = vmatprep.subr.mxu0 0.0
        %1953 = vmatpush2.msra.mxu0 0.0
        %1954 = vmatprep.subr.mxu0 0.0
        %1955 = vmatpush2.msra.mxu0 0.0
        %1956 = vmatprep.subr.mxu0 0.0
        %1957 = vmatpush2.msra.mxu0 0.0
        %1958 = vmatprep.mubr.f32.mxu0 0.0
        %1959 = vmatmul.mubr.f32.gmra.mxu0 %v1892
        %v1960 = vpop.f32.mrf.mxu0
        %v1961 = vadd.f32 %v1888, %v1960
        %v1962 = vpop.f32.mrf.mxu0
        %1963 = vdwg.mxu0
        %1964 = vrot.lane.b32.xlu0 %v650, 96
        %v1965 = vpop.permute.xlu0 %1964
        %1966 = vrot.lane.b32.xlu0 %v655, 96
        %v1967 = vpop.permute.xlu0 %1966
        %1971 = vrot.lane.b32.xlu0 %v1873, 96
        %v1972 = vpop.permute.xlu0 %1971
        %v1975 = vsel %vm1890, %v1857, 0
        %1977 = vmatprep.subr.mxu0 0.0
        %1978 = vmatpush1.msra.mxu0 0.0
        %1979 = vmatprep.subr.mxu0 0.0
        %1980 = vmatpush1.msra.mxu0 0.0
        %1981 = vmatprep.subr.mxu0 0.0
        %1982 = vmatpush1.msra.mxu0 0.0
        %1983 = vmatprep.subr.mxu0 0.0
        %1984 = vmatpush1.msra.mxu0 0.0
        %1985 = vmatprep.subr.mxu0 0.0
        %1986 = vmatpush1.msra.mxu0 0.0
        %1987 = vmatprep.subr.mxu0 0.0
        %1988 = vmatpush1.msra.mxu0 0.0
        %1989 = vmatprep.subr.mxu0 0.0
        %1990 = vmatpush1.msra.mxu0 0.0
        %1991 = vmatprep.subr.mxu0 0.0
        %1992 = vmatpush1.msra.mxu0 0.0
        %1993 = vmatprep.subr.mxu0 0.0
        %1994 = vmatpush1.msra.mxu0 0.0
        %1995 = vmatprep.subr.mxu0 0.0
        %1996 = vmatpush1.msra.mxu0 0.0
        %1997 = vmatprep.subr.mxu0 0.0
        %1998 = vmatpush1.msra.mxu0 0.0
        %1999 = vmatprep.subr.mxu0 0.0
        %2000 = vmatpush1.msra.mxu0 0.0
        %2001 = vmatprep.subr.mxu0 0.0
        %2002 = vmatpush1.msra.mxu0 0.0
        %2003 = vmatprep.subr.mxu0 0.0
        %2004 = vmatpush1.msra.mxu0 0.0
        %2005 = vmatprep.subr.mxu0 0.0
        %2006 = vmatpush1.msra.mxu0 %v1967
        %2007 = vmatprep.subr.mxu0 0.0
        %2008 = vmatpush1.msra.mxu0 %v1965
        %2009 = vmatprep.subr.mxu0 0.0
        %2010 = vmatpush2.msra.mxu0 0.0
        %2011 = vmatprep.subr.mxu0 0.0
        %2012 = vmatpush2.msra.mxu0 0.0
        %2013 = vmatprep.subr.mxu0 0.0
        %2014 = vmatpush2.msra.mxu0 0.0
        %2015 = vmatprep.subr.mxu0 0.0
        %2016 = vmatpush2.msra.mxu0 0.0
        %2017 = vmatprep.subr.mxu0 0.0
        %2018 = vmatpush2.msra.mxu0 0.0
        %2019 = vmatprep.subr.mxu0 0.0
        %2020 = vmatpush2.msra.mxu0 0.0
        %2021 = vmatprep.subr.mxu0 0.0
        %2022 = vmatpush2.msra.mxu0 0.0
        %2023 = vmatprep.subr.mxu0 0.0
        %2024 = vmatpush2.msra.mxu0 0.0
        %2025 = vmatprep.subr.mxu0 0.0
        %2026 = vmatpush2.msra.mxu0 0.0
        %2027 = vmatprep.subr.mxu0 0.0
        %2028 = vmatpush2.msra.mxu0 0.0
        %2029 = vmatprep.subr.mxu0 0.0
        %2030 = vmatpush2.msra.mxu0 0.0
        %2031 = vmatprep.subr.mxu0 0.0
        %2032 = vmatpush2.msra.mxu0 0.0
        %2033 = vmatprep.subr.mxu0 0.0
        %2034 = vmatpush2.msra.mxu0 0.0
        %2035 = vmatprep.subr.mxu0 0.0
        %2036 = vmatpush2.msra.mxu0 0.0
        %2037 = vmatprep.subr.mxu0 0.0
        %2038 = vmatpush2.msra.mxu0 0.0
        %2039 = vmatprep.subr.mxu0 0.0
        %2040 = vmatpush2.msra.mxu0 0.0
        %2041 = vmatprep.mubr.f32.mxu0 0.0
        %2042 = vmatmul.mubr.f32.gmra.mxu0 %v1975
        %v2043 = vpop.f32.mrf.mxu0
        %v2044 = vadd.f32 %v1972, %v2043
        %v2045 = vpop.f32.mrf.mxu0
        %2046 = vdwg.mxu0
        %2047 = vrot.lane.b32.xlu0 %v660, 96
        %v2048 = vpop.permute.xlu0 %2047
        %2049 = vrot.lane.b32.xlu0 %v665, 96
        %v2050 = vpop.permute.xlu0 %2049
        %2054 = vrot.lane.b32.xlu0 %v1874, 96
        %v2055 = vpop.permute.xlu0 %2054
        %v2058 = vsel %vm1890, %v1858, 0
        %2060 = vmatprep.subr.mxu0 0.0
        %2061 = vmatpush1.msra.mxu0 0.0
        %2062 = vmatprep.subr.mxu0 0.0
        %2063 = vmatpush1.msra.mxu0 0.0
        %2064 = vmatprep.subr.mxu0 0.0
        %2065 = vmatpush1.msra.mxu0 0.0
        %2066 = vmatprep.subr.mxu0 0.0
        %2067 = vmatpush1.msra.mxu0 0.0
        %2068 = vmatprep.subr.mxu0 0.0
        %2069 = vmatpush1.msra.mxu0 0.0
        %2070 = vmatprep.subr.mxu0 0.0
        %2071 = vmatpush1.msra.mxu0 0.0
        %2072 = vmatprep.subr.mxu0 0.0
        %2073 = vmatpush1.msra.mxu0 0.0
        %2074 = vmatprep.subr.mxu0 0.0
        %2075 = vmatpush1.msra.mxu0 0.0
        %2076 = vmatprep.subr.mxu0 0.0
        %2077 = vmatpush1.msra.mxu0 0.0
        %2078 = vmatprep.subr.mxu0 0.0
        %2079 = vmatpush1.msra.mxu0 0.0
        %2080 = vmatprep.subr.mxu0 0.0
        %2081 = vmatpush1.msra.mxu0 0.0
        %2082 = vmatprep.subr.mxu0 0.0
        %2083 = vmatpush1.msra.mxu0 0.0
        %2084 = vmatprep.subr.mxu0 0.0
        %2085 = vmatpush1.msra.mxu0 0.0
        %2086 = vmatprep.subr.mxu0 0.0
        %2087 = vmatpush1.msra.mxu0 0.0
        %2088 = vmatprep.subr.mxu0 0.0
        %2089 = vmatpush1.msra.mxu0 %v2050
        %2090 = vmatprep.subr.mxu0 0.0
        %2091 = vmatpush1.msra.mxu0 %v2048
        %2092 = vmatprep.subr.mxu0 0.0
        %2093 = vmatpush2.msra.mxu0 0.0
        %2094 = vmatprep.subr.mxu0 0.0
        %2095 = vmatpush2.msra.mxu0 0.0
        %2096 = vmatprep.subr.mxu0 0.0
        %2097 = vmatpush2.msra.mxu0 0.0
        %2098 = vmatprep.subr.mxu0 0.0
        %2099 = vmatpush2.msra.mxu0 0.0
        %2100 = vmatprep.subr.mxu0 0.0
        %2101 = vmatpush2.msra.mxu0 0.0
        %2102 = vmatprep.subr.mxu0 0.0
        %2103 = vmatpush2.msra.mxu0 0.0
        %2104 = vmatprep.subr.mxu0 0.0
        %2105 = vmatpush2.msra.mxu0 0.0
        %2106 = vmatprep.subr.mxu0 0.0
        %2107 = vmatpush2.msra.mxu0 0.0
        %2108 = vmatprep.subr.mxu0 0.0
        %2109 = vmatpush2.msra.mxu0 0.0
        %2110 = vmatprep.subr.mxu0 0.0
        %2111 = vmatpush2.msra.mxu0 0.0
        %2112 = vmatprep.subr.mxu0 0.0
        %2113 = vmatpush2.msra.mxu0 0.0
        %2114 = vmatprep.subr.mxu0 0.0
        %2115 = vmatpush2.msra.mxu0 0.0
        %2116 = vmatprep.subr.mxu0 0.0
        %2117 = vmatpush2.msra.mxu0 0.0
        %2118 = vmatprep.subr.mxu0 0.0
        %2119 = vmatpush2.msra.mxu0 0.0
        %2120 = vmatprep.subr.mxu0 0.0
        %2121 = vmatpush2.msra.mxu0 0.0
        %2122 = vmatprep.subr.mxu0 0.0
        %2123 = vmatpush2.msra.mxu0 0.0
        %2124 = vmatprep.mubr.f32.mxu0 0.0
        %2125 = vmatmul.mubr.f32.gmra.mxu0 %v2058
        %v2126 = vpop.f32.mrf.mxu0
        %v2127 = vadd.f32 %v2055, %v2126
        %v2128 = vpop.f32.mrf.mxu0
        %2129 = vdwg.mxu0
        %2130 = vrot.lane.b32.xlu0 %v670, 96
        %v2131 = vpop.permute.xlu0 %2130
        %2132 = vrot.lane.b32.xlu0 %v675, 96
        %v2133 = vpop.permute.xlu0 %2132
        %2137 = vrot.lane.b32.xlu0 %v1875, 96
        %v2138 = vpop.permute.xlu0 %2137
        %v2141 = vsel %vm1890, %v1859, 0
        %2143 = vmatprep.subr.mxu0 0.0
        %2144 = vmatpush1.msra.mxu0 0.0
        %2145 = vmatprep.subr.mxu0 0.0
        %2146 = vmatpush1.msra.mxu0 0.0
        %2147 = vmatprep.subr.mxu0 0.0
        %2148 = vmatpush1.msra.mxu0 0.0
        %2149 = vmatprep.subr.mxu0 0.0
        %2150 = vmatpush1.msra.mxu0 0.0
        %2151 = vmatprep.subr.mxu0 0.0
        %2152 = vmatpush1.msra.mxu0 0.0
        %2153 = vmatprep.subr.mxu0 0.0
        %2154 = vmatpush1.msra.mxu0 0.0
        %2155 = vmatprep.subr.mxu0 0.0
        %2156 = vmatpush1.msra.mxu0 0.0
        %2157 = vmatprep.subr.mxu0 0.0
        %2158 = vmatpush1.msra.mxu0 0.0
        %2159 = vmatprep.subr.mxu0 0.0
        %2160 = vmatpush1.msra.mxu0 0.0
        %2161 = vmatprep.subr.mxu0 0.0
        %2162 = vmatpush1.msra.mxu0 0.0
        %2163 = vmatprep.subr.mxu0 0.0
        %2164 = vmatpush1.msra.mxu0 0.0
        %2165 = vmatprep.subr.mxu0 0.0
        %2166 = vmatpush1.msra.mxu0 0.0
        %2167 = vmatprep.subr.mxu0 0.0
        %2168 = vmatpush1.msra.mxu0 0.0
        %2169 = vmatprep.subr.mxu0 0.0
        %2170 = vmatpush1.msra.mxu0 0.0
        %2171 = vmatprep.subr.mxu0 0.0
        %2172 = vmatpush1.msra.mxu0 %v2133
        %2173 = vmatprep.subr.mxu0 0.0
        %2174 = vmatpush1.msra.mxu0 %v2131
        %2175 = vmatprep.subr.mxu0 0.0
        %2176 = vmatpush2.msra.mxu0 0.0
        %2177 = vmatprep.subr.mxu0 0.0
        %2178 = vmatpush2.msra.mxu0 0.0
        %2179 = vmatprep.subr.mxu0 0.0
        %2180 = vmatpush2.msra.mxu0 0.0
        %2181 = vmatprep.subr.mxu0 0.0
        %2182 = vmatpush2.msra.mxu0 0.0
        %2183 = vmatprep.subr.mxu0 0.0
        %2184 = vmatpush2.msra.mxu0 0.0
        %2185 = vmatprep.subr.mxu0 0.0
        %2186 = vmatpush2.msra.mxu0 0.0
        %2187 = vmatprep.subr.mxu0 0.0
        %2188 = vmatpush2.msra.mxu0 0.0
        %2189 = vmatprep.subr.mxu0 0.0
        %2190 = vmatpush2.msra.mxu0 0.0
        %2191 = vmatprep.subr.mxu0 0.0
        %2192 = vmatpush2.msra.mxu0 0.0
        %2193 = vmatprep.subr.mxu0 0.0
        %2194 = vmatpush2.msra.mxu0 0.0
        %2195 = vmatprep.subr.mxu0 0.0
        %2196 = vmatpush2.msra.mxu0 0.0
        %2197 = vmatprep.subr.mxu0 0.0
        %2198 = vmatpush2.msra.mxu0 0.0
        %2199 = vmatprep.subr.mxu0 0.0
        %2200 = vmatpush2.msra.mxu0 0.0
        %2201 = vmatprep.subr.mxu0 0.0
        %2202 = vmatpush2.msra.mxu0 0.0
        %2203 = vmatprep.subr.mxu0 0.0
        %2204 = vmatpush2.msra.mxu0 0.0
        %2205 = vmatprep.subr.mxu0 0.0
        %2206 = vmatpush2.msra.mxu0 0.0
        %2207 = vmatprep.mubr.f32.mxu0 0.0
        %2208 = vmatmul.mubr.f32.gmra.mxu0 %v2141
        %v2209 = vpop.f32.mrf.mxu0
        %v2210 = vadd.f32 %v2138, %v2209
        %v2211 = vpop.f32.mrf.mxu0
        %2212 = vdwg.mxu0
        %2213 = vrot.lane.b32.xlu0 %v680, 96
        %v2214 = vpop.permute.xlu0 %2213
        %2215 = vrot.lane.b32.xlu0 %v685, 96
        %v2216 = vpop.permute.xlu0 %2215
        %2220 = vrot.lane.b32.xlu0 %v1876, 96
        %v2221 = vpop.permute.xlu0 %2220
        %v2224 = vsel %vm1890, %v1860, 0
        %2226 = vmatprep.subr.mxu0 0.0
        %2227 = vmatpush1.msra.mxu0 0.0
        %2228 = vmatprep.subr.mxu0 0.0
        %2229 = vmatpush1.msra.mxu0 0.0
        %2230 = vmatprep.subr.mxu0 0.0
        %2231 = vmatpush1.msra.mxu0 0.0
        %2232 = vmatprep.subr.mxu0 0.0
        %2233 = vmatpush1.msra.mxu0 0.0
        %2234 = vmatprep.subr.mxu0 0.0
        %2235 = vmatpush1.msra.mxu0 0.0
        %2236 = vmatprep.subr.mxu0 0.0
        %2237 = vmatpush1.msra.mxu0 0.0
        %2238 = vmatprep.subr.mxu0 0.0
        %2239 = vmatpush1.msra.mxu0 0.0
        %2240 = vmatprep.subr.mxu0 0.0
        %2241 = vmatpush1.msra.mxu0 0.0
        %2242 = vmatprep.subr.mxu0 0.0
        %2243 = vmatpush1.msra.mxu0 0.0
        %2244 = vmatprep.subr.mxu0 0.0
        %2245 = vmatpush1.msra.mxu0 0.0
        %2246 = vmatprep.subr.mxu0 0.0
        %2247 = vmatpush1.msra.mxu0 0.0
        %2248 = vmatprep.subr.mxu0 0.0
        %2249 = vmatpush1.msra.mxu0 0.0
        %2250 = vmatprep.subr.mxu0 0.0
        %2251 = vmatpush1.msra.mxu0 0.0
        %2252 = vmatprep.subr.mxu0 0.0
        %2253 = vmatpush1.msra.mxu0 0.0
        %2254 = vmatprep.subr.mxu0 0.0
        %2255 = vmatpush1.msra.mxu0 %v2216
        %2256 = vmatprep.subr.mxu0 0.0
        %2257 = vmatpush1.msra.mxu0 %v2214
        %2258 = vmatprep.subr.mxu0 0.0
        %2259 = vmatpush2.msra.mxu0 0.0
        %2260 = vmatprep.subr.mxu0 0.0
        %2261 = vmatpush2.msra.mxu0 0.0
        %2262 = vmatprep.subr.mxu0 0.0
        %2263 = vmatpush2.msra.mxu0 0.0
        %2264 = vmatprep.subr.mxu0 0.0
        %2265 = vmatpush2.msra.mxu0 0.0
        %2266 = vmatprep.subr.mxu0 0.0
        %2267 = vmatpush2.msra.mxu0 0.0
        %2268 = vmatprep.subr.mxu0 0.0
        %2269 = vmatpush2.msra.mxu0 0.0
        %2270 = vmatprep.subr.mxu0 0.0
        %2271 = vmatpush2.msra.mxu0 0.0
        %2272 = vmatprep.subr.mxu0 0.0
        %2273 = vmatpush2.msra.mxu0 0.0
        %2274 = vmatprep.subr.mxu0 0.0
        %2275 = vmatpush2.msra.mxu0 0.0
        %2276 = vmatprep.subr.mxu0 0.0
        %2277 = vmatpush2.msra.mxu0 0.0
        %2278 = vmatprep.subr.mxu0 0.0
        %2279 = vmatpush2.msra.mxu0 0.0
        %2280 = vmatprep.subr.mxu0 0.0
        %2281 = vmatpush2.msra.mxu0 0.0
        %2282 = vmatprep.subr.mxu0 0.0
        %2283 = vmatpush2.msra.mxu0 0.0
        %2284 = vmatprep.subr.mxu0 0.0
        %2285 = vmatpush2.msra.mxu0 0.0
        %2286 = vmatprep.subr.mxu0 0.0
        %2287 = vmatpush2.msra.mxu0 0.0
        %2288 = vmatprep.subr.mxu0 0.0
        %2289 = vmatpush2.msra.mxu0 0.0
        %2290 = vmatprep.mubr.f32.mxu0 0.0
        %2291 = vmatmul.mubr.f32.gmra.mxu0 %v2224
        %v2292 = vpop.f32.mrf.mxu0
        %v2293 = vadd.f32 %v2221, %v2292
        %v2294 = vpop.f32.mrf.mxu0
        %2295 = vdwg.mxu0
        %2296 = vrot.lane.b32.xlu0 %v690, 96
        %v2297 = vpop.permute.xlu0 %2296
        %2298 = vrot.lane.b32.xlu0 %v695, 96
        %v2299 = vpop.permute.xlu0 %2298
        %2303 = vrot.lane.b32.xlu0 %v1877, 96
        %v2304 = vpop.permute.xlu0 %2303
        %v2307 = vsel %vm1890, %v1861, 0
        %2309 = vmatprep.subr.mxu0 0.0
        %2310 = vmatpush1.msra.mxu0 0.0
        %2311 = vmatprep.subr.mxu0 0.0
        %2312 = vmatpush1.msra.mxu0 0.0
        %2313 = vmatprep.subr.mxu0 0.0
        %2314 = vmatpush1.msra.mxu0 0.0
        %2315 = vmatprep.subr.mxu0 0.0
        %2316 = vmatpush1.msra.mxu0 0.0
        %2317 = vmatprep.subr.mxu0 0.0
        %2318 = vmatpush1.msra.mxu0 0.0
        %2319 = vmatprep.subr.mxu0 0.0
        %2320 = vmatpush1.msra.mxu0 0.0
        %2321 = vmatprep.subr.mxu0 0.0
        %2322 = vmatpush1.msra.mxu0 0.0
        %2323 = vmatprep.subr.mxu0 0.0
        %2324 = vmatpush1.msra.mxu0 0.0
        %2325 = vmatprep.subr.mxu0 0.0
        %2326 = vmatpush1.msra.mxu0 0.0
        %2327 = vmatprep.subr.mxu0 0.0
        %2328 = vmatpush1.msra.mxu0 0.0
        %2329 = vmatprep.subr.mxu0 0.0
        %2330 = vmatpush1.msra.mxu0 0.0
        %2331 = vmatprep.subr.mxu0 0.0
        %2332 = vmatpush1.msra.mxu0 0.0
        %2333 = vmatprep.subr.mxu0 0.0
        %2334 = vmatpush1.msra.mxu0 0.0
        %2335 = vmatprep.subr.mxu0 0.0
        %2336 = vmatpush1.msra.mxu0 0.0
        %2337 = vmatprep.subr.mxu0 0.0
        %2338 = vmatpush1.msra.mxu0 %v2299
        %2339 = vmatprep.subr.mxu0 0.0
        %2340 = vmatpush1.msra.mxu0 %v2297
        %2341 = vmatprep.subr.mxu0 0.0
        %2342 = vmatpush2.msra.mxu0 0.0
        %2343 = vmatprep.subr.mxu0 0.0
        %2344 = vmatpush2.msra.mxu0 0.0
        %2345 = vmatprep.subr.mxu0 0.0
        %2346 = vmatpush2.msra.mxu0 0.0
        %2347 = vmatprep.subr.mxu0 0.0
        %2348 = vmatpush2.msra.mxu0 0.0
        %2349 = vmatprep.subr.mxu0 0.0
        %2350 = vmatpush2.msra.mxu0 0.0
        %2351 = vmatprep.subr.mxu0 0.0
        %2352 = vmatpush2.msra.mxu0 0.0
        %2353 = vmatprep.subr.mxu0 0.0
        %2354 = vmatpush2.msra.mxu0 0.0
        %2355 = vmatprep.subr.mxu0 0.0
        %2356 = vmatpush2.msra.mxu0 0.0
        %2357 = vmatprep.subr.mxu0 0.0
        %2358 = vmatpush2.msra.mxu0 0.0
        %2359 = vmatprep.subr.mxu0 0.0
        %2360 = vmatpush2.msra.mxu0 0.0
        %2361 = vmatprep.subr.mxu0 0.0
        %2362 = vmatpush2.msra.mxu0 0.0
        %2363 = vmatprep.subr.mxu0 0.0
        %2364 = vmatpush2.msra.mxu0 0.0
        %2365 = vmatprep.subr.mxu0 0.0
        %2366 = vmatpush2.msra.mxu0 0.0
        %2367 = vmatprep.subr.mxu0 0.0
        %2368 = vmatpush2.msra.mxu0 0.0
        %2369 = vmatprep.subr.mxu0 0.0
        %2370 = vmatpush2.msra.mxu0 0.0
        %2371 = vmatprep.subr.mxu0 0.0
        %2372 = vmatpush2.msra.mxu0 0.0
        %2373 = vmatprep.mubr.f32.mxu0 0.0
        %2374 = vmatmul.mubr.f32.gmra.mxu0 %v2307
        %v2375 = vpop.f32.mrf.mxu0
        %v2376 = vadd.f32 %v2304, %v2375
        %v2377 = vpop.f32.mrf.mxu0
        %2378 = vdwg.mxu0
        %2379 = vrot.lane.b32.xlu0 %v700, 96
        %v2380 = vpop.permute.xlu0 %2379
        %2381 = vrot.lane.b32.xlu0 %v705, 96
        %v2382 = vpop.permute.xlu0 %2381
        %2386 = vrot.lane.b32.xlu0 %v1878, 96
        %v2387 = vpop.permute.xlu0 %2386
        %v2390 = vsel %vm1890, %v1862, 0
        %2392 = vmatprep.subr.mxu0 0.0
        %2393 = vmatpush1.msra.mxu0 0.0
        %2394 = vmatprep.subr.mxu0 0.0
        %2395 = vmatpush1.msra.mxu0 0.0
        %2396 = vmatprep.subr.mxu0 0.0
        %2397 = vmatpush1.msra.mxu0 0.0
        %2398 = vmatprep.subr.mxu0 0.0
        %2399 = vmatpush1.msra.mxu0 0.0
        %2400 = vmatprep.subr.mxu0 0.0
        %2401 = vmatpush1.msra.mxu0 0.0
        %2402 = vmatprep.subr.mxu0 0.0
        %2403 = vmatpush1.msra.mxu0 0.0
        %2404 = vmatprep.subr.mxu0 0.0
        %2405 = vmatpush1.msra.mxu0 0.0
        %2406 = vmatprep.subr.mxu0 0.0
        %2407 = vmatpush1.msra.mxu0 0.0
        %2408 = vmatprep.subr.mxu0 0.0
        %2409 = vmatpush1.msra.mxu0 0.0
        %2410 = vmatprep.subr.mxu0 0.0
        %2411 = vmatpush1.msra.mxu0 0.0
        %2412 = vmatprep.subr.mxu0 0.0
        %2413 = vmatpush1.msra.mxu0 0.0
        %2414 = vmatprep.subr.mxu0 0.0
        %2415 = vmatpush1.msra.mxu0 0.0
        %2416 = vmatprep.subr.mxu0 0.0
        %2417 = vmatpush1.msra.mxu0 0.0
        %2418 = vmatprep.subr.mxu0 0.0
        %2419 = vmatpush1.msra.mxu0 0.0
        %2420 = vmatprep.subr.mxu0 0.0
        %2421 = vmatpush1.msra.mxu0 %v2382
        %2422 = vmatprep.subr.mxu0 0.0
        %2423 = vmatpush1.msra.mxu0 %v2380
        %2424 = vmatprep.subr.mxu0 0.0
        %2425 = vmatpush2.msra.mxu0 0.0
        %2426 = vmatprep.subr.mxu0 0.0
        %2427 = vmatpush2.msra.mxu0 0.0
        %2428 = vmatprep.subr.mxu0 0.0
        %2429 = vmatpush2.msra.mxu0 0.0
        %2430 = vmatprep.subr.mxu0 0.0
        %2431 = vmatpush2.msra.mxu0 0.0
        %2432 = vmatprep.subr.mxu0 0.0
        %2433 = vmatpush2.msra.mxu0 0.0
        %2434 = vmatprep.subr.mxu0 0.0
        %2435 = vmatpush2.msra.mxu0 0.0
        %2436 = vmatprep.subr.mxu0 0.0
        %2437 = vmatpush2.msra.mxu0 0.0
        %2438 = vmatprep.subr.mxu0 0.0
        %2439 = vmatpush2.msra.mxu0 0.0
        %2440 = vmatprep.subr.mxu0 0.0
        %2441 = vmatpush2.msra.mxu0 0.0
        %2442 = vmatprep.subr.mxu0 0.0
        %2443 = vmatpush2.msra.mxu0 0.0
        %2444 = vmatprep.subr.mxu0 0.0
        %2445 = vmatpush2.msra.mxu0 0.0
        %2446 = vmatprep.subr.mxu0 0.0
        %2447 = vmatpush2.msra.mxu0 0.0
        %2448 = vmatprep.subr.mxu0 0.0
        %2449 = vmatpush2.msra.mxu0 0.0
        %2450 = vmatprep.subr.mxu0 0.0
        %2451 = vmatpush2.msra.mxu0 0.0
        %2452 = vmatprep.subr.mxu0 0.0
        %2453 = vmatpush2.msra.mxu0 0.0
        %2454 = vmatprep.subr.mxu0 0.0
        %2455 = vmatpush2.msra.mxu0 0.0
        %2456 = vmatprep.mubr.f32.mxu0 0.0
        %2457 = vmatmul.mubr.f32.gmra.mxu0 %v2390
        %v2458 = vpop.f32.mrf.mxu0
        %v2459 = vadd.f32 %v2387, %v2458
        %v2460 = vpop.f32.mrf.mxu0
        %2461 = vdwg.mxu0
        %2462 = vrot.lane.b32.xlu0 %v710, 96
        %v2463 = vpop.permute.xlu0 %2462
        %2464 = vrot.lane.b32.xlu0 %v715, 96
        %v2465 = vpop.permute.xlu0 %2464
        %2469 = vrot.lane.b32.xlu0 %v1879, 96
        %v2470 = vpop.permute.xlu0 %2469
        %v2473 = vsel %vm1890, %v1863, 0
        %2475 = vmatprep.subr.mxu0 0.0
        %2476 = vmatpush1.msra.mxu0 0.0
        %2477 = vmatprep.subr.mxu0 0.0
        %2478 = vmatpush1.msra.mxu0 0.0
        %2479 = vmatprep.subr.mxu0 0.0
        %2480 = vmatpush1.msra.mxu0 0.0
        %2481 = vmatprep.subr.mxu0 0.0
        %2482 = vmatpush1.msra.mxu0 0.0
        %2483 = vmatprep.subr.mxu0 0.0
        %2484 = vmatpush1.msra.mxu0 0.0
        %2485 = vmatprep.subr.mxu0 0.0
        %2486 = vmatpush1.msra.mxu0 0.0
        %2487 = vmatprep.subr.mxu0 0.0
        %2488 = vmatpush1.msra.mxu0 0.0
        %2489 = vmatprep.subr.mxu0 0.0
        %2490 = vmatpush1.msra.mxu0 0.0
        %2491 = vmatprep.subr.mxu0 0.0
        %2492 = vmatpush1.msra.mxu0 0.0
        %2493 = vmatprep.subr.mxu0 0.0
        %2494 = vmatpush1.msra.mxu0 0.0
        %2495 = vmatprep.subr.mxu0 0.0
        %2496 = vmatpush1.msra.mxu0 0.0
        %2497 = vmatprep.subr.mxu0 0.0
        %2498 = vmatpush1.msra.mxu0 0.0
        %2499 = vmatprep.subr.mxu0 0.0
        %2500 = vmatpush1.msra.mxu0 0.0
        %2501 = vmatprep.subr.mxu0 0.0
        %2502 = vmatpush1.msra.mxu0 0.0
        %2503 = vmatprep.subr.mxu0 0.0
        %2504 = vmatpush1.msra.mxu0 %v2465
        %2505 = vmatprep.subr.mxu0 0.0
        %2506 = vmatpush1.msra.mxu0 %v2463
        %2507 = vmatprep.subr.mxu0 0.0
        %2508 = vmatpush2.msra.mxu0 0.0
        %2509 = vmatprep.subr.mxu0 0.0
        %2510 = vmatpush2.msra.mxu0 0.0
        %2511 = vmatprep.subr.mxu0 0.0
        %2512 = vmatpush2.msra.mxu0 0.0
        %2513 = vmatprep.subr.mxu0 0.0
        %2514 = vmatpush2.msra.mxu0 0.0
        %2515 = vmatprep.subr.mxu0 0.0
        %2516 = vmatpush2.msra.mxu0 0.0
        %2517 = vmatprep.subr.mxu0 0.0
        %2518 = vmatpush2.msra.mxu0 0.0
        %2519 = vmatprep.subr.mxu0 0.0
        %2520 = vmatpush2.msra.mxu0 0.0
        %2521 = vmatprep.subr.mxu0 0.0
        %2522 = vmatpush2.msra.mxu0 0.0
        %2523 = vmatprep.subr.mxu0 0.0
        %2524 = vmatpush2.msra.mxu0 0.0
        %2525 = vmatprep.subr.mxu0 0.0
        %2526 = vmatpush2.msra.mxu0 0.0
        %2527 = vmatprep.subr.mxu0 0.0
        %2528 = vmatpush2.msra.mxu0 0.0
        %2529 = vmatprep.subr.mxu0 0.0
        %2530 = vmatpush2.msra.mxu0 0.0
        %2531 = vmatprep.subr.mxu0 0.0
        %2532 = vmatpush2.msra.mxu0 0.0
        %2533 = vmatprep.subr.mxu0 0.0
        %2534 = vmatpush2.msra.mxu0 0.0
        %2535 = vmatprep.subr.mxu0 0.0
        %2536 = vmatpush2.msra.mxu0 0.0
        %2537 = vmatprep.subr.mxu0 0.0
        %2538 = vmatpush2.msra.mxu0 0.0
        %2539 = vmatprep.mubr.f32.mxu0 0.0
        %2540 = vmatmul.mubr.f32.gmra.mxu0 %v2473
        %v2541 = vpop.f32.mrf.mxu0
        %v2542 = vadd.f32 %v2470, %v2541
        %v2543 = vpop.f32.mrf.mxu0
        %2544 = vdwg.mxu0
        %v2545 = vmul.f32 %v1961, %v873
        %v2546 = vmul.f32 %v2044, %v873
        %v2547 = vmul.f32 %v2127, %v873
        %v2548 = vmul.f32 %v2210, %v873
        %v2549 = vmul.f32 %v2293, %v873
        %v2550 = vmul.f32 %v2376, %v873
        %v2551 = vmul.f32 %v2459, %v873
        %v2552 = vmul.f32 %v2542, %v873
        %v2553 = vsel %vm1702, %v2545, 0.0
        %v2554 = vrot.slane %v2553, 4
        %v2555 = vadd.f32 %v2553, %v2554
        %v2556 = vrot.slane %v2555, 2
        %v2557 = vadd.f32 %v2555, %v2556
        %v2558 = vrot.slane %v2557, 1
        %v2559 = vadd.f32 %v2557, %v2558
        %v2560 = vsel %vm1702, %v2546, 0.0
        %v2561 = vrot.slane %v2560, 4
        %v2562 = vadd.f32 %v2560, %v2561
        %v2563 = vrot.slane %v2562, 2
        %v2564 = vadd.f32 %v2562, %v2563
        %v2565 = vrot.slane %v2564, 1
        %v2566 = vadd.f32 %v2564, %v2565
        %v2567 = vsel %vm1702, %v2547, 0.0
        %v2568 = vrot.slane %v2567, 4
        %v2569 = vadd.f32 %v2567, %v2568
        %v2570 = vrot.slane %v2569, 2
        %v2571 = vadd.f32 %v2569, %v2570
        %v2572 = vrot.slane %v2571, 1
        %v2573 = vadd.f32 %v2571, %v2572
        %v2574 = vsel %vm1702, %v2548, 0.0
        %v2575 = vrot.slane %v2574, 4
        %v2576 = vadd.f32 %v2574, %v2575
        %v2577 = vrot.slane %v2576, 2
        %v2578 = vadd.f32 %v2576, %v2577
        %v2579 = vrot.slane %v2578, 1
        %v2580 = vadd.f32 %v2578, %v2579
        %v2581 = vsel %vm1702, %v2549, 0.0
        %v2582 = vrot.slane %v2581, 4
        %v2583 = vadd.f32 %v2581, %v2582
        %v2584 = vrot.slane %v2583, 2
        %v2585 = vadd.f32 %v2583, %v2584
        %v2586 = vrot.slane %v2585, 1
        %v2587 = vadd.f32 %v2585, %v2586
        %v2588 = vsel %vm1702, %v2550, 0.0
        %v2589 = vrot.slane %v2588, 4
        %v2590 = vadd.f32 %v2588, %v2589
        %v2591 = vrot.slane %v2590, 2
        %v2592 = vadd.f32 %v2590, %v2591
        %v2593 = vrot.slane %v2592, 1
        %v2594 = vadd.f32 %v2592, %v2593
        %v2595 = vsel %vm1702, %v2551, 0.0
        %v2596 = vrot.slane %v2595, 4
        %v2597 = vadd.f32 %v2595, %v2596
        %v2598 = vrot.slane %v2597, 2
        %v2599 = vadd.f32 %v2597, %v2598
        %v2600 = vrot.slane %v2599, 1
        %v2601 = vadd.f32 %v2599, %v2600
        %v2602 = vsel %vm1702, %v2552, 0.0
        %v2603 = vrot.slane %v2602, 4
        %v2604 = vadd.f32 %v2602, %v2603
        %v2605 = vrot.slane %v2604, 2
        %v2606 = vadd.f32 %v2604, %v2605
        %v2607 = vrot.slane %v2606, 1
        %v2608 = vadd.f32 %v2606, %v2607
        %v2609 = vld [vmem:[%s9] sm:$0xff]
        %v2610 = vld [vmem:[%s9 + $0x8] sm:$0xff]
        %v2611 = vld [vmem:[%s9 + $0x10] sm:$0xff]
        %v2612 = vld [vmem:[%s9 + $0x18] sm:$0xff]
        %v2613 = vld [vmem:[%s10] sm:$0x1]
        %v2615 = vlaneseq
        %v2616 = vshrl.u32 %v2615, 7
        %v2617 = vsub.s32 0, %v2616
        %v2618 = vrot.slane %v2613, %v2617
        %vm2628 = vcmask 1041409
        %v2629 = vsel %vm2628, %v2566, %v2559
        %vm2630 = vcmask 1042434
        %v2631 = vsel %vm2630, %v2573, %v2629
        %vm2632 = vcmask 1043459
        %v2633 = vsel %vm2632, %v2580, %v2631
        %vm2634 = vcmask 1044484
        %v2635 = vsel %vm2634, %v2587, %v2633
        %vm2636 = vcmask 1045509
        %v2637 = vsel %vm2636, %v2594, %v2635
        %vm2638 = vcmask 1046534
        %v2639 = vsel %vm2638, %v2601, %v2637
        %vm2640 = vcmask 1047559
        %v2641 = vsel %vm2640, %v2608, %v2639
        %v2642 = vsel %vm524, %v2641, 0
        %2644 = vmatprep.subr.mxu0 0.0
        %2645 = vmatpush1.msra.mxu0 0.0
        %2646 = vmatprep.subr.mxu0 0.0
        %2647 = vmatpush1.msra.mxu0 0.0
        %2648 = vmatprep.subr.mxu0 0.0
        %2649 = vmatpush1.msra.mxu0 0.0
        %2650 = vmatprep.subr.mxu0 0.0
        %2651 = vmatpush1.msra.mxu0 0.0
        %2652 = vmatprep.subr.mxu0 0.0
        %2653 = vmatpush1.msra.mxu0 0.0
        %2654 = vmatprep.subr.mxu0 0.0
        %2655 = vmatpush1.msra.mxu0 0.0
        %2656 = vmatprep.subr.mxu0 0.0
        %2657 = vmatpush1.msra.mxu0 0.0
        %2658 = vmatprep.subr.mxu0 0.0
        %2659 = vmatpush1.msra.mxu0 0.0
        %2660 = vmatprep.subr.mxu0 0.0
        %2661 = vmatpush1.msra.mxu0 0.0
        %2662 = vmatprep.subr.mxu0 0.0
        %2663 = vmatpush1.msra.mxu0 0.0
        %2664 = vmatprep.subr.mxu0 0.0
        %2665 = vmatpush1.msra.mxu0 0.0
        %2666 = vmatprep.subr.mxu0 0.0
        %2667 = vmatpush1.msra.mxu0 0.0
        %2668 = vmatprep.subr.mxu0 0.0
        %2669 = vmatpush1.msra.mxu0 %v2612
        %2670 = vmatprep.subr.mxu0 0.0
        %2671 = vmatpush1.msra.mxu0 %v2611
        %2672 = vmatprep.subr.mxu0 0.0
        %2673 = vmatpush1.msra.mxu0 %v2610
        %2674 = vmatprep.subr.mxu0 0.0
        %2675 = vmatpush1.msra.mxu0 %v2609
        %2676 = vmatprep.subr.mxu0 0.0
        %2677 = vmatpush2.msra.mxu0 0.0
        %2678 = vmatprep.subr.mxu0 0.0
        %2679 = vmatpush2.msra.mxu0 0.0
        %2680 = vmatprep.subr.mxu0 0.0
        %2681 = vmatpush2.msra.mxu0 0.0
        %2682 = vmatprep.subr.mxu0 0.0
        %2683 = vmatpush2.msra.mxu0 0.0
        %2684 = vmatprep.subr.mxu0 0.0
        %2685 = vmatpush2.msra.mxu0 0.0
        %2686 = vmatprep.subr.mxu0 0.0
        %2687 = vmatpush2.msra.mxu0 0.0
        %2688 = vmatprep.subr.mxu0 0.0
        %2689 = vmatpush2.msra.mxu0 0.0
        %2690 = vmatprep.subr.mxu0 0.0
        %2691 = vmatpush2.msra.mxu0 0.0
        %2692 = vmatprep.subr.mxu0 0.0
        %2693 = vmatpush2.msra.mxu0 0.0
        %2694 = vmatprep.subr.mxu0 0.0
        %2695 = vmatpush2.msra.mxu0 0.0
        %2696 = vmatprep.subr.mxu0 0.0
        %2697 = vmatpush2.msra.mxu0 0.0
        %2698 = vmatprep.subr.mxu0 0.0
        %2699 = vmatpush2.msra.mxu0 0.0
        %2700 = vmatprep.subr.mxu0 0.0
        %2701 = vmatpush2.msra.mxu0 0.0
        %2702 = vmatprep.subr.mxu0 0.0
        %2703 = vmatpush2.msra.mxu0 0.0
        %2704 = vmatprep.subr.mxu0 0.0
        %2705 = vmatpush2.msra.mxu0 0.0
        %2706 = vmatprep.subr.mxu0 0.0
        %2707 = vmatpush2.msra.mxu0 0.0
        %2708 = vmatprep.mubr.f32.mxu0 0.0
        %2709 = vmatmul.mubr.f32.gmra.mxu0 %v2642
        %v2710 = vpop.f32.mrf.mxu0
        %v2711 = vadd.f32 %v2618, %v2710
        %v2712 = vpop.f32.mrf.mxu0
        %2713 = vdwg.mxu0
        %2714 = vst.msk [vmem:[%s380] sm:$0xff] %vm1890, %v2711
        %s2715 = sand.u32 %s269, 1
        %s2716 = scalar_lea.sflag [#allocation3], %s2715
        %s2717 = sand.u32 %s269, 1
        %s2718 = smul.addr %s2717, 8
        %s2719 = scalar_lea.vmem [#allocation2], %s2718
        // Predicated region
        $region65: #{tpu_custom_call.1} parent=63 // pred_check
          %p2720 = pneg %p279
        $region66: #{tpu_custom_call.1} parent=63 // pred_check_branch
          %2722 = sbr.rel (%p2720) target = $region68
        $region67: #{tpu_custom_call.1} parent=63 // pred_region
          %s2724 = ssub.s32 128, 128
          %2725 = vsyncadd %s2716, %s2724
          %s2726 = smul.addr %s25, 128
          %s2727 = scalar_lea.hbm %s11, %s2726
          %s2729 = sshll.u32 %s2719, 4
          %s2730 = int_to_ptr.vmem [resolvable:$true] %s2729
          %2732 = dma.vmem_to_hbm [thread:$0]  %s2730, 128, %s2727, %s2716
        $region68: #{tpu_custom_call.1} parent=63 // pred_fallthru
          _
      $region64: #{tpu_custom_call.1} parent=5 // pred_fallthru
        _
      %p2733 = scmp.le.s32.totalorder 2, %s20
      // Predicated region
      $region69: #{tpu_custom_call.1} parent=5 // pred_check
        %p2734 = pneg %p2733
      $region70: #{tpu_custom_call.1} parent=5 // pred_check_branch
        %2736 = sbr.rel (%p2734) target = $region72
      $region71: #{tpu_custom_call.1} parent=5 // pred_region
        %s2737 = ssub.s32 %s20, 2
        // Predicated region
        $region73: #{tpu_custom_call.1} parent=71 // pred_check
          %p2738 = pneg %p285
        $region74: #{tpu_custom_call.1} parent=71 // pred_check_branch
          %2740 = sbr.rel (%p2738) target = $region76
        $region75: #{tpu_custom_call.1} parent=71 // pred_region
          %s2741 = sand.u32 %s270, 1
          %s2742 = scalar_lea.sflag [#allocation3], %s2741
          %s2743 = sand.u32 %s270, 1
          %s2744 = smul.addr %s2743, 8
          %s2745 = scalar_lea.vmem [#allocation2], %s2744
          %2746 = dma.done %s2742, 128
        $region76: #{tpu_custom_call.1} parent=71 // pred_fallthru
          _
      $region72: #{tpu_custom_call.1} parent=5 // pred_fallthru
        _
    $region6: #{tpu_custom_call.1} parent=1 // loop_footer
      %s24 = sadd.s32 1, %s20
    $region7: #{tpu_custom_call.1} parent=1 // loop_footer_branch
      %19 = sbr.rel target = $region3
    $region8: #{tpu_custom_call.1} parent=1 // loop_exit
      _
    %2747 = vsyncpa [#allocation3], 1
    %s2748 = scalar_lea.sflag [#allocation3], 1
    %2749 = vsyncpa %s2748, 1

</llo_original>
